<compile_context>
chip_gen: v5e
topology: v5e:2x2
jax: 0.10.0
libtpu: 0.0.40
codegen_flags: <defaults>
</compile_context>

<pallas_src>
import functools
import math

import jax
import jax.numpy as jnp
from jax.experimental import pallas as pl
from jax.experimental.pallas import tpu as pltpu

_GELU_C = math.sqrt(2.0 / math.pi)

# Conservative defaults; overridden in __main__ via _configure_for_device().
_VMEM_LIMIT = 48 * 1024 * 1024
_MAX_ROW_TILE = 256
_BUFFERED_WEIGHTS = False


# ----------------------------- device config ---------------------------------

def _configure_for_device():
    """Derive VMEM limit / max row tile from the actual chip."""
    vmem_limit, max_tile = 48 * 1024 * 1024, 256
    try:
        cap = int(pltpu.get_tpu_info().vmem_capacity_bytes)
        vmem_limit = min(int(cap * 0.85), 112 * 1024 * 1024)
        max_tile = 512 if cap >= 100 * 1024 * 1024 else 256
    except Exception:
        pass
    return vmem_limit, max_tile


def _probe_kernel(x_ref, o_ref):
    o_ref[...] = x_ref[...] * 2.0


def _probe_buffered_weights():
    """Check whether pipeline_mode=pl.Buffered(1) compiles & runs here."""
    if not hasattr(pl, "Buffered"):
        return False
    try:
        spec = pl.BlockSpec((8, 128), lambda i: (0, 0),
                            pipeline_mode=pl.Buffered(1))
        fn = pl.pallas_call(
            _probe_kernel,
            out_shape=jax.ShapeDtypeStruct((8, 128), jnp.float32),
            grid=(1,),
            in_specs=[spec],
            out_specs=pl.BlockSpec((8, 128), lambda i: (0, 0)))
        jax.block_until_ready(fn(jnp.ones((8, 128), jnp.float32)))
        return True
    except Exception:
        return False


def _const_spec(shape):
    """BlockSpec for a grid-invariant (weight) operand; single-buffered when possible."""
    idx = lambda *_: (0,) * len(shape)
    if _BUFFERED_WEIGHTS:
        try:
            return pl.BlockSpec(shape, idx, pipeline_mode=pl.Buffered(1))
        except TypeError:
            pass
    return pl.BlockSpec(shape, idx)


# ----------------------------- in-kernel helpers -----------------------------

def _gelu(y):
    # module-level tanh gelu, kept in f32
    return 0.5 * y * (1.0 + jnp.tanh(_GELU_C * (y + 0.044715 * y * y * y)))


def _ln(x, g, b, eps):
    mu = jnp.mean(x, axis=-1, keepdims=True)
    var = jnp.mean(jnp.square(x - mu), axis=-1, keepdims=True)
    return (x - mu) * jax.lax.rsqrt(var + eps) * g + b


def _recip(x):
    if hasattr(pl, "reciprocal"):
        return pl.reciprocal(x, approx=True)   # EUP slot, ~free next to MXU/VPU
    return 1.0 / x


# ----------------------------- Pallas kernels --------------------------------

def _layernorm_kernel(x_ref, g_ref, b_ref, o_ref, *, eps):
    x = x_ref[0].astype(jnp.float32)
    o_ref[0] = _ln(x, g_ref[...], b_ref[...], eps).astype(o_ref.dtype)


def _ln_qkv_kernel(x_ref, g_ref, be_ref, wqkv_ref, bqkv_ref, qkv_ref,
                   *, eps, do_ln):
    if do_ln:
        xb = _ln(x_ref[0].astype(jnp.float32), g_ref[...], be_ref[...],
                 eps).astype(jnp.bfloat16)
    else:
        xb = x_ref[0]                         # already bf16
    qkv = (jnp.dot(xb, wqkv_ref[...], preferred_element_type=jnp.float32)
           + bqkv_ref[...])
    qkv_ref[0] = qkv.astype(jnp.bfloat16)


def _attn_kernel(qkv_ref, m_ref, o_ref, *, heads, dh, d):
    """Per-batch attention; heads split with static lane slices (no transposes)."""
    madd = m_ref[0]                           # (1, S) additive key mask
    for h in range(heads):                    # static, unrolled
        q = qkv_ref[0, :, pl.ds(h * dh, dh)]              # (S, dh) bf16
        k = qkv_ref[0, :, pl.ds(d + h * dh, dh)]
        v = qkv_ref[0, :, pl.ds(2 * d + h * dh, dh)]
        s = jax.lax.dot_general(q, k, (((1,), (1,)), ((), ())),
                                preferred_element_type=jnp.float32)  # q @ k.T
        s = s + madd
        s = s - jnp.max(s, axis=-1, keepdims=True)
        p = jnp.exp(s)
        p = p * _recip(jnp.sum(p, axis=-1, keepdims=True))
        ctx = jnp.dot(p.astype(jnp.bfloat16), v,
                      preferred_element_type=jnp.float32)
        o_ref[0, :, pl.ds(h * dh, dh)] = ctx.astype(jnp.bfloat16)


def _proj_ffn_kernel(ctx_ref, res_ref, wo_ref, bo_ref, ga_ref, ba_ref,
                     w1_ref, b1_ref, w2_ref, b2_ref, gb_ref, bb_ref, o_ref,
                     *, eps_a, eps_b, residual_from_normed, post_ln):
    # attention output projection + residual add (residual read as bf16, math f32)
    y = (jnp.dot(ctx_ref[0], wo_ref[...], preferred_element_type=jnp.float32)
         + bo_ref[...] + res_ref[0].astype(jnp.float32))
    h = _ln(y, ga_ref[...], ba_ref[...], eps_a)
    # FFN; the (tile, FF) intermediate stays in VMEM
    inter = (jnp.dot(h.astype(jnp.bfloat16), w1_ref[...],
                     preferred_element_type=jnp.float32) + b1_ref[...])
    inter = _gelu(inter)
    ff = (jnp.dot(inter.astype(jnp.bfloat16), w2_ref[...],
                  preferred_element_type=jnp.float32) + b2_ref[...])
    z = ff + (h if residual_from_normed else y)
    if post_ln:
        z = _ln(z, gb_ref[...], bb_ref[...], eps_b)
    o_ref[0] = z.astype(jnp.bfloat16)


def _final_score_kernel(x_ref, g_ref, b_ref, w_ref, bo_ref, o_ref, *, eps):
    xn = _ln(x_ref[0].astype(jnp.float32), g_ref[...], b_ref[...], eps)
    t = jnp.sum(xn * w_ref[...], axis=-1, keepdims=True) + bo_ref[0]
    s = 0.5 * (jnp.tanh(0.5 * t) + 1.0)                 # sigmoid via EUP tanh
    o_ref[0] = jnp.broadcast_to(s, o_ref.shape[1:])     # lane-dense store


# ----------------------------- tiling helpers --------------------------------

def _round_up(x, m):
    return ((x + m - 1) // m) * m


def _seq_tiling(n):
    """Row tile (multiple of 16 for bf16 packing) and padded sequence length."""
    tile = min(_MAX_ROW_TILE, _round_up(n, 16))
    return tile, _round_up(n, tile)


# ----------------------------- kernel wrappers --------------------------------

def layernorm3d(x, g, b, *, eps, tile, out_dtype=jnp.bfloat16):
    bsz, s, d = x.shape
    row_in = pl.BlockSpec((1, tile, d), lambda i, j: (i, j, 0))
    vec = pl.BlockSpec((1, d), lambda i, j: (0, 0))
    return pl.pallas_call(
        functools.partial(_layernorm_kernel, eps=eps),
        out_shape=jax.ShapeDtypeStruct((bsz, s, d), out_dtype),
        grid=(bsz, s // tile),
        in_specs=[row_in, vec, vec],
        out_specs=row_in,
        compiler_params=pltpu.CompilerParams(
            dimension_semantics=("parallel", "parallel")),
    )(x, g.reshape(1, d), b.reshape(1, d))


def ln_qkv(x, ln_g, ln_b, wqkv, bqkv, *, do_ln, eps, tile):
    bsz, s, d = x.shape
    d3 = wqkv.shape[1]
    if ln_g is None:
        ln_g = jnp.ones((d,), jnp.float32)
        ln_b = jnp.zeros((d,), jnp.float32)
    row = pl.BlockSpec((1, tile, d), lambda i, j: (i, j, 0))
    vec = pl.BlockSpec((1, d), lambda i, j: (0, 0))
    return pl.pallas_call(
        functools.partial(_ln_qkv_kernel, eps=eps, do_ln=do_ln),
        out_shape=jax.ShapeDtypeStruct((bsz, s, d3), jnp.bfloat16),
        grid=(bsz, s // tile),
        in_specs=[row, vec, vec,
                  _const_spec((d, d3)),
                  pl.BlockSpec((1, d3), lambda i, j: (0, 0))],
        out_specs=pl.BlockSpec((1, tile, d3), lambda i, j: (i, j, 0)),
        compiler_params=pltpu.CompilerParams(
            dimension_semantics=("parallel", "parallel"),
            vmem_limit_bytes=_VMEM_LIMIT),
    )(x, ln_g.reshape(1, d), ln_b.reshape(1, d), wqkv, bqkv.reshape(1, d3))


def batched_attention(qkv, mask_add, heads):
    """qkv: [B, S, 3D] bf16; mask_add: [B, 1, S] f32 -> ctx [B, S, D] bf16."""
    bsz, s, d3 = qkv.shape
    d = d3 // 3
    dh = d // heads
    return pl.pallas_call(
        functools.partial(_attn_kernel, heads=heads, dh=dh, d=d),
        out_shape=jax.ShapeDtypeStruct((bsz, s, d), jnp.bfloat16),
        grid=(bsz,),
        in_specs=[pl.BlockSpec((1, s, d3), lambda i: (i, 0, 0)),
                  pl.BlockSpec((1, 1, s), lambda i: (i, 0, 0))],
        out_specs=pl.BlockSpec((1, s, d), lambda i: (i, 0, 0)),
        compiler_params=pltpu.CompilerParams(
            dimension_semantics=("parallel",),
            vmem_limit_bytes=_VMEM_LIMIT),
    )(qkv, mask_add)


def attn_out_ffn(ctx, res, wo, bo, ga, ba, w1, b1, w2, b2, gb, bb, *,
                 eps_a, eps_b, residual_from_normed, post_ln, tile):
    bsz, s, d = res.shape
    ff = w1.shape[1]
    row = pl.BlockSpec((1, tile, d), lambda i, j: (i, j, 0))
    vec_d = pl.BlockSpec((1, d), lambda i, j: (0, 0))
    vec_ff = pl.BlockSpec((1, ff), lambda i, j: (0, 0))
    return pl.pallas_call(
        functools.partial(_proj_ffn_kernel, eps_a=eps_a, eps_b=eps_b,
                          residual_from_normed=residual_from_normed,
                          post_ln=post_ln),
        out_shape=jax.ShapeDtypeStruct((bsz, s, d), jnp.bfloat16),
        grid=(bsz, s // tile),
        in_specs=[row, row,
                  _const_spec((d, d)), vec_d,        # wo, bo
                  vec_d, vec_d,                      # LN after attention
                  _const_spec((d, ff)), vec_ff,      # w1, b1
                  _const_spec((ff, d)), vec_d,       # w2, b2
                  vec_d, vec_d],                     # optional post-LN
        out_specs=row,
        compiler_params=pltpu.CompilerParams(
            dimension_semantics=("parallel", "parallel"),
            vmem_limit_bytes=_VMEM_LIMIT),
    )(ctx, res, wo, bo.reshape(1, d), ga.reshape(1, d), ba.reshape(1, d),
      w1, b1.reshape(1, ff), w2, b2.reshape(1, d),
      gb.reshape(1, d), bb.reshape(1, d))


def final_ln_score(x, g, b, w_out, b_out, *, eps, tile):
    bsz, s, d = x.shape
    out = pl.pallas_call(
        functools.partial(_final_score_kernel, eps=eps),
        out_shape=jax.ShapeDtypeStruct((bsz, s, 128), jnp.float32),
        grid=(bsz, s // tile),
        in_specs=[pl.BlockSpec((1, tile, d), lambda i, j: (i, j, 0)),
                  pl.BlockSpec((1, d), lambda i, j: (0, 0)),
                  pl.BlockSpec((1, d), lambda i, j: (0, 0)),
                  pl.BlockSpec((1, d), lambda i, j: (0, 0)),
                  pl.BlockSpec(memory_space=pltpu.MemorySpace.SMEM)],
        out_specs=pl.BlockSpec((1, tile, 128), lambda i, j: (i, j, 0)),
        compiler_params=pltpu.CompilerParams(
            dimension_semantics=("parallel", "parallel")),
    )(x, g.reshape(1, d), b.reshape(1, d), w_out.reshape(1, d),
      jnp.reshape(b_out, (1,)).astype(jnp.float32))
    return out[:, :, 0]                         # [B, S]


# ----------------------------- model forward ---------------------------------

def bert_layer_fwd(x, mask_add, p, heads, tile):
    """x: [B, S_pad, D] bf16 residual stream."""
    qkv = ln_qkv(x, None, None, p["attn"]["wqkv"], p["attn"]["bqkv"],
                 do_ln=False, eps=1e-12, tile=tile)
    ctx = batched_attention(qkv, mask_add, heads)
    return attn_out_ffn(ctx, x, p["attn"]["wo"], p["attn"]["bo"],
                        p["ln1_g"], p["ln1_b"],
                        p["w1"], p["b1"], p["w2"], p["b2"],
                        p["ln2_g"], p["ln2_b"],
                        eps_a=1e-12, eps_b=1e-12,
                        residual_from_normed=True, post_ln=True, tile=tile)


def ext_layer_fwd(i, x, mask_add, p, heads, tile):
    d = x.shape[-1]
    ln_g = p["ln_g"] if i != 0 else None
    ln_b = p["ln_b"] if i != 0 else None
    qkv = ln_qkv(x, ln_g, ln_b, p["attn"]["wqkv"], p["attn"]["bqkv"],
                 do_ln=(i != 0), eps=1e-6, tile=tile)
    ctx = batched_attention(qkv, mask_add, heads)
    dummy_g = jnp.ones((d,), jnp.float32)
    dummy_b = jnp.zeros((d,), jnp.float32)
    return attn_out_ffn(ctx, x, p["attn"]["wo"], p["attn"]["bo"],
                        p["ff_ln_g"], p["ff_ln_b"],
                        p["w1"], p["b1"], p["w2"], p["b2"],
                        dummy_g, dummy_b,
                        eps_a=1e-6, eps_b=1e-6,
                        residual_from_normed=False, post_ln=False, tile=tile)


def sinusoid_pe(n, dim):
    position = jnp.arange(n, dtype=jnp.float32)[:, None]
    div_term = jnp.exp(jnp.arange(0, dim, 2, dtype=jnp.float32)
                       * -(math.log(10000.0) / dim))
    pe = jnp.zeros((n, dim), jnp.float32)
    pe = pe.at[:, 0::2].set(jnp.sin(position * div_term))
    pe = pe.at[:, 1::2].set(jnp.cos(position * div_term))
    return pe[None]  # [1, n, dim]


def bert_forward(input_ids, segs, mask, p, heads):
    b, t = input_ids.shape
    tile, s_pad = _seq_tiling(t)
    emb = (p["word_emb"][input_ids]
           + p["pos_emb"][None, :t, :]
           + p["type_emb"][segs])
    emb = jnp.pad(emb, ((0, 0), (0, s_pad - t), (0, 0)))     # pad once at entry
    x = layernorm3d(emb, p["emb_ln_g"], p["emb_ln_b"], eps=1e-12, tile=tile)
    # additive key mask covers both the user mask and sequence padding
    mask_pad = jnp.pad(mask.astype(jnp.float32), ((0, 0), (0, s_pad - t)))
    mask_add = ((mask_pad - 1.0) * 1e9).reshape(b, 1, s_pad)
    for lp in p["layers"]:
        x = bert_layer_fwd(x, mask_add, lp, heads, tile)
    return x  # last_hidden_state [B, S_pad, D] bf16


def ext_transformer_encoder(top_vecs, mask_clss, p, heads):
    b, n, d = top_vecs.shape
    tile, n_pad = _seq_tiling(n)
    mask_f = mask_clss.astype(jnp.float32)
    x = top_vecs.astype(jnp.float32) * mask_f[:, :, None] + sinusoid_pe(n, d)
    x = jnp.pad(x, ((0, 0), (0, n_pad - n), (0, 0))).astype(jnp.bfloat16)
    # keys where mask_clss == 0 (and padded sentences) are masked out
    mask_pad = jnp.pad(mask_f, ((0, 0), (0, n_pad - n)))
    mask_add = ((mask_pad - 1.0) * 1e9).reshape(b, 1, n_pad)
    for i, lp in enumerate(p["layers"]):
        x = ext_layer_fwd(i, x, mask_add, lp, heads, tile)
    scores = final_ln_score(x, p["ln_g"], p["ln_b"], p["wo"], p["bo"],
                            eps=1e-6, tile=tile)
    return scores[:, :n] * mask_f


def bert_ext_forward(params, x, segs, clss, mask, mask_clss,
                     bert_heads, ext_heads):
    top_vec = bert_forward(x, segs, mask, params["bert"], bert_heads)
    b = x.shape[0]
    sents_vec = top_vec[jnp.arange(b)[:, None], clss]        # gather [CLS] rows
    sents_vec = (sents_vec.astype(jnp.float32)
                 * mask_clss.astype(jnp.float32)[:, :, None])
    return ext_transformer_encoder(sents_vec, mask_clss, params["ext"], ext_heads)


# ----------------------------- parameter init --------------------------------

class KeyGen:
    def __init__(self, key):
        self.key = key

    def __call__(self):
        self.key, sub = jax.random.split(self.key)
        return sub


def xavier(kg, shape):
    a = math.sqrt(6.0 / (shape[0] + shape[1]))
    return jax.random.uniform(kg(), shape, jnp.float32, -a, a)


def bias_init(kg, n, fan_in):
    bound = 1.0 / math.sqrt(fan_in)
    return jax.random.uniform(kg(), (n,), jnp.float32, -bound, bound)


def init_attn_params(kg, d, heads):
    dh = d // heads
    scale = 1.0 / math.sqrt(dh)      # fold 1/sqrt(d_head) into the query proj
    wq = xavier(kg, (d, d)) * scale
    bq = bias_init(kg, d, d) * scale
    wk = xavier(kg, (d, d))
    bk = bias_init(kg, d, d)
    wv = xavier(kg, (d, d))
    bv = bias_init(kg, d, d)
    return {
        "wqkv": jnp.concatenate([wq, wk, wv], axis=1).astype(jnp.bfloat16),
        "bqkv": jnp.concatenate([bq, bk, bv], axis=0),
        "wo": xavier(kg, (d, d)).astype(jnp.bfloat16),
        "bo": bias_init(kg, d, d),
    }


def init_bert_params(kg, vocab, types, max_pos, d, ff, n_layers, heads):
    p = {
        "word_emb": 0.02 * jax.random.normal(kg(), (vocab, d), jnp.float32),
        "pos_emb": 0.02 * jax.random.normal(kg(), (max_pos, d), jnp.float32),
        "type_emb": 0.02 * jax.random.normal(kg(), (types, d), jnp.float32),
        "emb_ln_g": jnp.ones((d,), jnp.float32),
        "emb_ln_b": jnp.zeros((d,), jnp.float32),
        "layers": [],
    }
    for _ in range(n_layers):
        p["layers"].append({
            "attn": init_attn_params(kg, d, heads),
            "ln1_g": jnp.ones((d,), jnp.float32),
            "ln1_b": jnp.zeros((d,), jnp.float32),
            "w1": xavier(kg, (d, ff)).astype(jnp.bfloat16),
            "b1": bias_init(kg, ff, d),
            "w2": xavier(kg, (ff, d)).astype(jnp.bfloat16),
            "b2": bias_init(kg, d, ff),
            "ln2_g": jnp.ones((d,), jnp.float32),
            "ln2_b": jnp.zeros((d,), jnp.float32),
        })
    return p


def init_ext_params(kg, d, ff, n_layers, heads):
    p = {"layers": []}
    for _ in range(n_layers):
        p["layers"].append({
            "ln_g": jnp.ones((d,), jnp.float32),
            "ln_b": jnp.zeros((d,), jnp.float32),
            "attn": init_attn_params(kg, d, heads),
            "ff_ln_g": jnp.ones((d,), jnp.float32),
            "ff_ln_b": jnp.zeros((d,), jnp.float32),
            "w1": xavier(kg, (d, ff)).astype(jnp.bfloat16),
            "b1": bias_init(kg, ff, d),
            "w2": xavier(kg, (ff, d)).astype(jnp.bfloat16),
            "b2": bias_init(kg, d, ff),
        })
    p["ln_g"] = jnp.ones((d,), jnp.float32)
    p["ln_b"] = jnp.zeros((d,), jnp.float32)
    p["wo"] = xavier(kg, (d, 1))     # score head stays f32 (VPU row reduction)
    p["bo"] = bias_init(kg, 1, d)
    return p


# ----------------------------- main -------------------------------------------

if __name__ == "__main__":
    # device-aware tiling / buffering (runs outside any trace)
    _VMEM_LIMIT, _MAX_ROW_TILE = _configure_for_device()
    _BUFFERED_WEIGHTS = _probe_buffered_weights()

    # small, forward-consistent shapes
    B, T, N_SENTS = 2, 16, 4
    D, FF = 32, 64
    VOCAB, TYPES, MAX_POS = 100, 2, 64
    BERT_LAYERS, BERT_HEADS = 2, 2
    EXT_LAYERS, EXT_HEADS, EXT_FF = 2, 2, 64

    kg = KeyGen(jax.random.PRNGKey(0))
    params = {
        "bert": init_bert_params(kg, VOCAB, TYPES, MAX_POS, D, FF,
                                 BERT_LAYERS, BERT_HEADS),
        "ext": init_ext_params(kg, D, EXT_FF, EXT_LAYERS, EXT_HEADS),
    }

    k_ids, _ = jax.random.split(jax.random.PRNGKey(0))
    x = jax.random.randint(k_ids, (B, T), 0, VOCAB, dtype=jnp.int32)
    segs = jnp.concatenate(
        [jnp.zeros((B, T // 2), jnp.int32), jnp.ones((B, T // 2), jnp.int32)],
        axis=1)
    clss = jnp.tile(jnp.array([0, 4, 8, 12], jnp.int32)[None, :], (B, 1))
    mask = jnp.ones((B, T), jnp.float32).at[1, 12:].set(0.0)
    mask_clss = jnp.ones((B, N_SENTS), jnp.float32).at[1, 3].set(0.0)

    fwd = jax.jit(functools.partial(bert_ext_forward,
                                    bert_heads=BERT_HEADS, ext_heads=EXT_HEADS))
    sent_scores = fwd(params, x, segs, clss, mask, mask_clss)
    jax.block_until_ready(sent_scores)
    assert sent_scores.shape == (B, N_SENTS)
    assert bool(jnp.all(jnp.isfinite(sent_scores)))
    print("KERNEL_OK")
</pallas_src>

<mosaic_0001>
module attributes {stable_mosaic.version = 11 : i64} {
  func.func @_probe_kernel(%arg0: i32, %arg1: memref<8x128xf32, #tpu.memory_space<vmem>>, %arg2: memref<8x128xf32, #tpu.memory_space<vmem>>) attributes {dimension_semantics = [#tpu.dimension_semantics<arbitrary>], iteration_bounds = array<i64: 1>, scalar_prefetch = 0 : i64, scratch_operands = 0 : i64, tpu.core_type = #tpu.core_type<tc>, window_params = [{pipeline_mode = #tpu.pipeline_mode<synchronous>, transform_indices = @transform_0, window_bounds = array<i64: 8, 128>}, {pipeline_mode = #tpu.pipeline_mode<synchronous>, transform_indices = @transform_1, window_bounds = array<i64: 8, 128>}]} {
    %c0 = arith.constant 0 : index
    %c0_0 = arith.constant 0 : index
    %0 = vector.load %arg1[%c0, %c0_0] : memref<8x128xf32, #tpu.memory_space<vmem>>, vector<8x128xf32>
    %cst = arith.constant 2.000000e+00 : f32
    %1 = vector.broadcast %cst : f32 to vector<8x128xf32>
    %2 = arith.mulf %0, %1 : vector<8x128xf32>
    %c0_1 = arith.constant 0 : index
    %c0_2 = arith.constant 0 : index
    %3 = vector.load %arg2[%c0_1, %c0_2] : memref<8x128xf32, #tpu.memory_space<vmem>>, vector<8x128xf32>
    tpu.vector_store %arg2[%c0_1, %c0_2], %2 {strides = array<i32>} : memref<8x128xf32, #tpu.memory_space<vmem>>, vector<8x128xf32>,
    return
  }
  func.func @transform_0(%arg0: i32) -> (i32, i32) {
    %c0_i32 = arith.constant 0 : i32
    %c0_i32_0 = arith.constant 0 : i32
    %c0_i32_1 = arith.constant 0 : i32
    return %c0_i32, %c0_i32_0 : i32, i32
  }
  func.func @transform_1(%arg0: i32) -> (i32, i32) {
    %c0_i32 = arith.constant 0 : i32
    %c0_i32_0 = arith.constant 0 : i32
    %c0_i32_1 = arith.constant 0 : i32
    return %c0_i32, %c0_i32_0 : i32, i32
  }
}

module attributes {stable_mosaic.version = 11 : i64} {
  func.func @_ln_qkv_kernel(%arg0: i32, %arg1: i32, %arg2: memref<1x16x32xbf16, #tpu.memory_space<vmem>>, %arg3: memref<1x32xf32, #tpu.memory_space<vmem>>, %arg4: memref<1x32xf32, #tpu.memory_space<vmem>>, %arg5: memref<32x96xbf16, #tpu.memory_space<vmem>>, %arg6: memref<1x96xf32, #tpu.memory_space<vmem>>, %arg7: memref<1x16x96xbf16, #tpu.memory_space<vmem>>) attributes {dimension_semantics = [#tpu.dimension_semantics<parallel>, #tpu.dimension_semantics<parallel>], iteration_bounds = array<i64: 2, 1>, scalar_prefetch = 0 : i64, scratch_operands = 0 : i64, tpu.core_type = #tpu.core_type<tc>, window_params = [{transform_indices = @transform_0, window_bounds = array<i64: 1, 16, 32>}, {pipeline_mode = #tpu.pipeline_mode<synchronous>, transform_indices = @transform_1, window_bounds = array<i64: 1, 32>}, {pipeline_mode = #tpu.pipeline_mode<synchronous>, transform_indices = @transform_2, window_bounds = array<i64: 1, 32>}, {pipeline_mode = #tpu.pipeline_mode<synchronous>, transform_indices = @transform_3, window_bounds = array<i64: 32, 96>}, {pipeline_mode = #tpu.pipeline_mode<synchronous>, transform_indices = @transform_4, window_bounds = array<i64: 1, 96>}, {transform_indices = @transform_5, window_bounds = array<i64: 1, 16, 96>}]} {
    %c0 = arith.constant 0 : index
    %c0_0 = arith.constant 0 : index
    %c0_1 = arith.constant 0 : index
    %0 = vector.load %arg2[%c0, %c0_0, %c0_1] : memref<1x16x32xbf16, #tpu.memory_space<vmem>>, vector<1x16x32xbf16>
    %1 = vector.shape_cast %0 : vector<1x16x32xbf16> to vector<16x32xbf16>
    %c0_2 = arith.constant 0 : index
    %c0_3 = arith.constant 0 : index
    %2 = vector.load %arg5[%c0_2, %c0_3] : memref<32x96xbf16, #tpu.memory_space<vmem>>, vector<32x96xbf16>
    %cst = arith.constant dense<0.000000e+00> : vector<16x96xf32>
    %3 = tpu.matmul %1, %2, %cst {dimension_numbers = #tpu.dot_dimension_numbers<[1], [0], [0], [1], [0, 0, 1, 1], [], []>} : vector<16x32xbf16>, vector<32x96xbf16>, vector<16x96xf32> -> vector<16x96xf32>
    %c0_4 = arith.constant 0 : index
    %c0_5 = arith.constant 0 : index
    %4 = vector.load %arg6[%c0_4, %c0_5] : memref<1x96xf32, #tpu.memory_space<vmem>>, vector<1x96xf32>
    %5 = vector.broadcast %4 : vector<1x96xf32> to vector<16x96xf32>
    %6 = arith.addf %3, %5 : vector<16x96xf32>
    %7 = arith.truncf %6 : vector<16x96xf32> to vector<16x96xbf16>
    %c0_6 = arith.constant 0 : index
    %c0_7 = arith.constant 0 : index
    %c0_8 = arith.constant 0 : index
    %8 = vector.load %arg7[%c0_6, %c0_7, %c0_8] : memref<1x16x96xbf16, #tpu.memory_space<vmem>>, vector<1x16x96xbf16>
    %9 = vector.shape_cast %8 : vector<1x16x96xbf16> to vector<16x96xbf16>
    %10 = vector.shape_cast %7 : vector<16x96xbf16> to vector<1x16x96xbf16>
    tpu.vector_store %arg7[%c0_6, %c0_7, %c0_8], %10 {strides = array<i32>} : memref<1x16x96xbf16, #tpu.memory_space<vmem>>, vector<1x16x96xbf16>,
    return
  }
  func.func @transform_0(%arg0: i32, %arg1: i32) -> (i32, i32, i32) {
    %c0_i32 = arith.constant 0 : i32
    %c0_i32_0 = arith.constant 0 : i32
    return %arg0, %arg1, %c0_i32 : i32, i32, i32
  }
  func.func @transform_1(%arg0: i32, %arg1: i32) -> (i32, i32) {
    %c0_i32 = arith.constant 0 : i32
    %c0_i32_0 = arith.constant 0 : i32
    %c0_i32_1 = arith.constant 0 : i32
    return %c0_i32, %c0_i32_0 : i32, i32
  }
  func.func @transform_2(%arg0: i32, %arg1: i32) -> (i32, i32) {
    %c0_i32 = arith.constant 0 : i32
    %c0_i32_0 = arith.constant 0 : i32
    %c0_i32_1 = arith.constant 0 : i32
    return %c0_i32, %c0_i32_0 : i32, i32
  }
  func.func @transform_3(%arg0: i32, %arg1: i32) -> (i32, i32) {
    %c0_i32 = arith.constant 0 : i32
    %c0_i32_0 = arith.constant 0 : i32
    %c0_i32_1 = arith.constant 0 : i32
    return %c0_i32, %c0_i32_0 : i32, i32
  }
  func.func @transform_4(%arg0: i32, %arg1: i32) -> (i32, i32) {
    %c0_i32 = arith.constant 0 : i32
    %c0_i32_0 = arith.constant 0 : i32
    %c0_i32_1 = arith.constant 0 : i32
    return %c0_i32, %c0_i32_0 : i32, i32
  }
  func.func @transform_5(%arg0: i32, %arg1: i32) -> (i32, i32, i32) {
    %c0_i32 = arith.constant 0 : i32
    %c0_i32_0 = arith.constant 0 : i32
    return %arg0, %arg1, %c0_i32 : i32, i32, i32
  }
}

module attributes {stable_mosaic.version = 11 : i64} {
  func.func @_layernorm_kernel(%arg0: i32, %arg1: i32, %arg2: memref<1x16x32xf32, #tpu.memory_space<vmem>>, %arg3: memref<1x32xf32, #tpu.memory_space<vmem>>, %arg4: memref<1x32xf32, #tpu.memory_space<vmem>>, %arg5: memref<1x16x32xbf16, #tpu.memory_space<vmem>>) attributes {dimension_semantics = [#tpu.dimension_semantics<parallel>, #tpu.dimension_semantics<parallel>], iteration_bounds = array<i64: 2, 1>, scalar_prefetch = 0 : i64, scratch_operands = 0 : i64, tpu.core_type = #tpu.core_type<tc>, window_params = [{transform_indices = @transform_0, window_bounds = array<i64: 1, 16, 32>}, {pipeline_mode = #tpu.pipeline_mode<synchronous>, transform_indices = @transform_1, window_bounds = array<i64: 1, 32>}, {pipeline_mode = #tpu.pipeline_mode<synchronous>, transform_indices = @transform_2, window_bounds = array<i64: 1, 32>}, {transform_indices = @transform_3, window_bounds = array<i64: 1, 16, 32>}]} {
    %c0 = arith.constant 0 : index
    %c0_0 = arith.constant 0 : index
    %c0_1 = arith.constant 0 : index
    %0 = vector.load %arg2[%c0, %c0_0, %c0_1] : memref<1x16x32xf32, #tpu.memory_space<vmem>>, vector<1x16x32xf32>
    %1 = vector.shape_cast %0 : vector<1x16x32xf32> to vector<16x32xf32>
    %c0_2 = arith.constant 0 : index
    %c0_3 = arith.constant 0 : index
    %2 = vector.load %arg3[%c0_2, %c0_3] : memref<1x32xf32, #tpu.memory_space<vmem>>, vector<1x32xf32>
    %c0_4 = arith.constant 0 : index
    %c0_5 = arith.constant 0 : index
    %3 = vector.load %arg4[%c0_4, %c0_5] : memref<1x32xf32, #tpu.memory_space<vmem>>, vector<1x32xf32>
    %cst = arith.constant dense<0.000000e+00> : vector<16xf32>
    %4 = vector.multi_reduction <add>, %1, %cst [1] : vector<16x32xf32> to vector<16xf32>
    %5 = vector.shape_cast %4 : vector<16xf32> to vector<16x1xf32>
    %cst_6 = arith.constant 3.200000e+01 : f32
    %6 = vector.broadcast %cst_6 : f32 to vector<16x1xf32>
    %7 = arith.divf %5, %6 : vector<16x1xf32>
    %8 = vector.broadcast %7 : vector<16x1xf32> to vector<16x32xf32>
    %9 = arith.subf %1, %8 : vector<16x32xf32>
    %10 = arith.mulf %9, %9 : vector<16x32xf32>
    %cst_7 = arith.constant dense<0.000000e+00> : vector<16xf32>
    %11 = vector.multi_reduction <add>, %10, %cst_7 [1] : vector<16x32xf32> to vector<16xf32>
    %12 = vector.shape_cast %11 : vector<16xf32> to vector<16x1xf32>
    %cst_8 = arith.constant 3.200000e+01 : f32
    %13 = vector.broadcast %cst_8 : f32 to vector<16x1xf32>
    %14 = arith.divf %12, %13 : vector<16x1xf32>
    %15 = vector.broadcast %7 : vector<16x1xf32> to vector<16x32xf32>
    %16 = arith.subf %1, %15 : vector<16x32xf32>
    %cst_9 = arith.constant 9.99999996E-13 : f32
    %17 = vector.broadcast %cst_9 : f32 to vector<16x1xf32>
    %18 = arith.addf %14, %17 : vector<16x1xf32>
    %19 = math.rsqrt %18 : vector<16x1xf32>
    %20 = vector.broadcast %19 : vector<16x1xf32> to vector<16x32xf32>
    %21 = arith.mulf %16, %20 : vector<16x32xf32>
    %22 = vector.broadcast %2 : vector<1x32xf32> to vector<16x32xf32>
    %23 = arith.mulf %21, %22 : vector<16x32xf32>
    %24 = vector.broadcast %3 : vector<1x32xf32> to vector<16x32xf32>
    %25 = arith.addf %23, %24 : vector<16x32xf32>
    %26 = arith.truncf %25 : vector<16x32xf32> to vector<16x32xbf16>
    %c0_10 = arith.constant 0 : index
    %c0_11 = arith.constant 0 : index
    %c0_12 = arith.constant 0 : index
    %27 = vector.load %arg5[%c0_10, %c0_11, %c0_12] : memref<1x16x32xbf16, #tpu.memory_space<vmem>>, vector<1x16x32xbf16>
    %28 = vector.shape_cast %27 : vector<1x16x32xbf16> to vector<16x32xbf16>
    %29 = vector.shape_cast %26 : vector<16x32xbf16> to vector<1x16x32xbf16>
    tpu.vector_store %arg5[%c0_10, %c0_11, %c0_12], %29 {strides = array<i32>} : memref<1x16x32xbf16, #tpu.memory_space<vmem>>, vector<1x16x32xbf16>,
    return
  }
  func.func @transform_0(%arg0: i32, %arg1: i32) -> (i32, i32, i32) {
    %c0_i32 = arith.constant 0 : i32
    %c0_i32_0 = arith.constant 0 : i32
    return %arg0, %arg1, %c0_i32 : i32, i32, i32
  }
  func.func @transform_1(%arg0: i32, %arg1: i32) -> (i32, i32) {
    %c0_i32 = arith.constant 0 : i32
    %c0_i32_0 = arith.constant 0 : i32
    %c0_i32_1 = arith.constant 0 : i32
    return %c0_i32, %c0_i32_0 : i32, i32
  }
  func.func @transform_2(%arg0: i32, %arg1: i32) -> (i32, i32) {
    %c0_i32 = arith.constant 0 : i32
    %c0_i32_0 = arith.constant 0 : i32
    %c0_i32_1 = arith.constant 0 : i32
    return %c0_i32, %c0_i32_0 : i32, i32
  }
  func.func @transform_3(%arg0: i32, %arg1: i32) -> (i32, i32, i32) {
    %c0_i32 = arith.constant 0 : i32
    %c0_i32_0 = arith.constant 0 : i32
    return %arg0, %arg1, %c0_i32 : i32, i32, i32
  }
}

module attributes {stable_mosaic.version = 11 : i64} {
  func.func @_attn_kernel(%arg0: i32, %arg1: memref<1x16x96xbf16, #tpu.memory_space<vmem>>, %arg2: memref<1x1x16xf32, #tpu.memory_space<vmem>>, %arg3: memref<1x16x32xbf16, #tpu.memory_space<vmem>>) attributes {dimension_semantics = [#tpu.dimension_semantics<parallel>], iteration_bounds = array<i64: 2>, scalar_prefetch = 0 : i64, scratch_operands = 0 : i64, tpu.core_type = #tpu.core_type<tc>, window_params = [{transform_indices = @transform_0, window_bounds = array<i64: 1, 16, 96>}, {transform_indices = @transform_1, window_bounds = array<i64: 1, 1, 16>}, {transform_indices = @transform_2, window_bounds = array<i64: 1, 16, 32>}]} {
    %c0 = arith.constant 0 : index
    %c0_0 = arith.constant 0 : index
    %c0_1 = arith.constant 0 : index
    %0 = vector.load %arg2[%c0, %c0_0, %c0_1] : memref<1x1x16xf32, #tpu.memory_space<vmem>>, vector<1x1x16xf32>
    %1 = vector.shape_cast %0 : vector<1x1x16xf32> to vector<1x16xf32>
    %c0_2 = arith.constant 0 : index
    %c0_3 = arith.constant 0 : index
    %c0_4 = arith.constant 0 : index
    %2 = vector.load %arg1[%c0_2, %c0_3, %c0_4] : memref<1x16x96xbf16, #tpu.memory_space<vmem>>, vector<1x16x16xbf16>
    %3 = vector.shape_cast %2 : vector<1x16x16xbf16> to vector<16x16xbf16>
    %c0_5 = arith.constant 0 : index
    %c0_6 = arith.constant 0 : index
    %c32 = arith.constant 32 : index
    %4 = vector.load %arg1[%c0_5, %c0_6, %c32] : memref<1x16x96xbf16, #tpu.memory_space<vmem>>, vector<1x16x16xbf16>
    %5 = vector.shape_cast %4 : vector<1x16x16xbf16> to vector<16x16xbf16>
    %c0_7 = arith.constant 0 : index
    %c0_8 = arith.constant 0 : index
    %c64 = arith.constant 64 : index
    %6 = vector.load %arg1[%c0_7, %c0_8, %c64] : memref<1x16x96xbf16, #tpu.memory_space<vmem>>, vector<1x16x16xbf16>
    %7 = vector.shape_cast %6 : vector<1x16x16xbf16> to vector<16x16xbf16>
    %cst = arith.constant dense<0.000000e+00> : vector<16x16xf32>
    %8 = tpu.matmul %3, %5, %cst {dimension_numbers = #tpu.dot_dimension_numbers<[1], [1], [0], [0], [0, 0, 1, 0], [], []>} : vector<16x16xbf16>, vector<16x16xbf16>, vector<16x16xf32> -> vector<16x16xf32>
    %9 = vector.broadcast %1 : vector<1x16xf32> to vector<16x16xf32>
    %10 = arith.addf %8, %9 : vector<16x16xf32>
    %cst_9 = arith.constant dense<0xFF800000> : vector<16xf32>
    %11 = vector.multi_reduction <maximumf>, %10, %cst_9 [1] : vector<16x16xf32> to vector<16xf32>
    %12 = vector.shape_cast %11 : vector<16xf32> to vector<16x1xf32>
    %13 = vector.broadcast %12 : vector<16x1xf32> to vector<16x16xf32>
    %14 = arith.subf %10, %13 : vector<16x16xf32>
    %15 = math.exp %14 : vector<16x16xf32>
    %cst_10 = arith.constant dense<0.000000e+00> : vector<16xf32>
    %16 = vector.multi_reduction <add>, %15, %cst_10 [1] : vector<16x16xf32> to vector<16xf32>
    %17 = vector.shape_cast %16 : vector<16xf32> to vector<16x1xf32>
    %18 = tpu.reciprocal %17 {approx = true} : vector<16x1xf32> -> vector<16x1xf32>
    %19 = vector.broadcast %18 : vector<16x1xf32> to vector<16x16xf32>
    %20 = arith.mulf %15, %19 : vector<16x16xf32>
    %21 = arith.truncf %20 : vector<16x16xf32> to vector<16x16xbf16>
    %cst_11 = arith.constant dense<0.000000e+00> : vector<16x16xf32>
    %22 = tpu.matmul %21, %7, %cst_11 {dimension_numbers = #tpu.dot_dimension_numbers<[1], [0], [0], [1], [0, 0, 1, 1], [], []>} : vector<16x16xbf16>, vector<16x16xbf16>, vector<16x16xf32> -> vector<16x16xf32>
    %23 = arith.truncf %22 : vector<16x16xf32> to vector<16x16xbf16>
    %c0_12 = arith.constant 0 : index
    %c0_13 = arith.constant 0 : index
    %c0_14 = arith.constant 0 : index
    %24 = vector.load %arg3[%c0_12, %c0_13, %c0_14] : memref<1x16x32xbf16, #tpu.memory_space<vmem>>, vector<1x16x16xbf16>
    %25 = vector.shape_cast %24 : vector<1x16x16xbf16> to vector<16x16xbf16>
    %26 = vector.shape_cast %23 : vector<16x16xbf16> to vector<1x16x16xbf16>
    tpu.vector_store %arg3[%c0_12, %c0_13, %c0_14], %26 {strides = array<i32>} : memref<1x16x32xbf16, #tpu.memory_space<vmem>>, vector<1x16x16xbf16>,
    %c0_15 = arith.constant 0 : index
    %c0_16 = arith.constant 0 : index
    %c16 = arith.constant 16 : index
    %27 = vector.load %arg1[%c0_15, %c0_16, %c16] : memref<1x16x96xbf16, #tpu.memory_space<vmem>>, vector<1x16x16xbf16>
    %28 = vector.shape_cast %27 : vector<1x16x16xbf16> to vector<16x16xbf16>
    %c0_17 = arith.constant 0 : index
    %c0_18 = arith.constant 0 : index
    %c48 = arith.constant 48 : index
    %29 = vector.load %arg1[%c0_17, %c0_18, %c48] : memref<1x16x96xbf16, #tpu.memory_space<vmem>>, vector<1x16x16xbf16>
    %30 = vector.shape_cast %29 : vector<1x16x16xbf16> to vector<16x16xbf16>
    %c0_19 = arith.constant 0 : index
    %c0_20 = arith.constant 0 : index
    %c80 = arith.constant 80 : index
    %31 = vector.load %arg1[%c0_19, %c0_20, %c80] : memref<1x16x96xbf16, #tpu.memory_space<vmem>>, vector<1x16x16xbf16>
    %32 = vector.shape_cast %31 : vector<1x16x16xbf16> to vector<16x16xbf16>
    %cst_21 = arith.constant dense<0.000000e+00> : vector<16x16xf32>
    %33 = tpu.matmul %28, %30, %cst_21 {dimension_numbers = #tpu.dot_dimension_numbers<[1], [1], [0], [0], [0, 0, 1, 0], [], []>} : vector<16x16xbf16>, vector<16x16xbf16>, vector<16x16xf32> -> vector<16x16xf32>
    %34 = vector.broadcast %1 : vector<1x16xf32> to vector<16x16xf32>
    %35 = arith.addf %33, %34 : vector<16x16xf32>
    %cst_22 = arith.constant dense<0xFF800000> : vector<16xf32>
    %36 = vector.multi_reduction <maximumf>, %35, %cst_22 [1] : vector<16x16xf32> to vector<16xf32>
    %37 = vector.shape_cast %36 : vector<16xf32> to vector<16x1xf32>
    %38 = vector.broadcast %37 : vector<16x1xf32> to vector<16x16xf32>
    %39 = arith.subf %35, %38 : vector<16x16xf32>
    %40 = math.exp %39 : vector<16x16xf32>
    %cst_23 = arith.constant dense<0.000000e+00> : vector<16xf32>
    %41 = vector.multi_reduction <add>, %40, %cst_23 [1] : vector<16x16xf32> to vector<16xf32>
    %42 = vector.shape_cast %41 : vector<16xf32> to vector<16x1xf32>
    %43 = tpu.reciprocal %42 {approx = true} : vector<16x1xf32> -> vector<16x1xf32>
    %44 = vector.broadcast %43 : vector<16x1xf32> to vector<16x16xf32>
    %45 = arith.mulf %40, %44 : vector<16x16xf32>
    %46 = arith.truncf %45 : vector<16x16xf32> to vector<16x16xbf16>
    %cst_24 = arith.constant dense<0.000000e+00> : vector<16x16xf32>
    %47 = tpu.matmul %46, %32, %cst_24 {dimension_numbers = #tpu.dot_dimension_numbers<[1], [0], [0], [1], [0, 0, 1, 1], [], []>} : vector<16x16xbf16>, vector<16x16xbf16>, vector<16x16xf32> -> vector<16x16xf32>
    %48 = arith.truncf %47 : vector<16x16xf32> to vector<16x16xbf16>
    %c0_25 = arith.constant 0 : index
    %c0_26 = arith.constant 0 : index
    %c16_27 = arith.constant 16 : index
    %49 = vector.load %arg3[%c0_25, %c0_26, %c16_27] : memref<1x16x32xbf16, #tpu.memory_space<vmem>>, vector<1x16x16xbf16>
    %50 = vector.shape_cast %49 : vector<1x16x16xbf16> to vector<16x16xbf16>
    %51 = vector.shape_cast %48 : vector<16x16xbf16> to vector<1x16x16xbf16>
    tpu.vector_store %arg3[%c0_25, %c0_26, %c16_27], %51 {strides = array<i32>} : memref<1x16x32xbf16, #tpu.memory_space<vmem>>, vector<1x16x16xbf16>,
    return
  }
  func.func @transform_0(%arg0: i32) -> (i32, i32, i32) {
    %c0_i32 = arith.constant 0 : i32
    %c0_i32_0 = arith.constant 0 : i32
    %c0_i32_1 = arith.constant 0 : i32
    return %arg0, %c0_i32, %c0_i32_0 : i32, i32, i32
  }
  func.func @transform_1(%arg0: i32) -> (i32, i32, i32) {
    %c0_i32 = arith.constant 0 : i32
    %c0_i32_0 = arith.constant 0 : i32
    %c0_i32_1 = arith.constant 0 : i32
    return %arg0, %c0_i32, %c0_i32_0 : i32, i32, i32
  }
  func.func @transform_2(%arg0: i32) -> (i32, i32, i32) {
    %c0_i32 = arith.constant 0 : i32
    %c0_i32_0 = arith.constant 0 : i32
    %c0_i32_1 = arith.constant 0 : i32
    return %arg0, %c0_i32, %c0_i32_0 : i32, i32, i32
  }
}

module attributes {stable_mosaic.version = 11 : i64} {
  func.func @_proj_ffn_kernel(%arg0: i32, %arg1: i32, %arg2: memref<1x16x32xbf16, #tpu.memory_space<vmem>>, %arg3: memref<1x16x32xbf16, #tpu.memory_space<vmem>>, %arg4: memref<32x32xbf16, #tpu.memory_space<vmem>>, %arg5: memref<1x32xf32, #tpu.memory_space<vmem>>, %arg6: memref<1x32xf32, #tpu.memory_space<vmem>>, %arg7: memref<1x32xf32, #tpu.memory_space<vmem>>, %arg8: memref<32x64xbf16, #tpu.memory_space<vmem>>, %arg9: memref<1x64xf32, #tpu.memory_space<vmem>>, %arg10: memref<64x32xbf16, #tpu.memory_space<vmem>>, %arg11: memref<1x32xf32, #tpu.memory_space<vmem>>, %arg12: memref<1x32xf32, #tpu.memory_space<vmem>>, %arg13: memref<1x32xf32, #tpu.memory_space<vmem>>, %arg14: memref<1x16x32xbf16, #tpu.memory_space<vmem>>) attributes {dimension_semantics = [#tpu.dimension_semantics<parallel>, #tpu.dimension_semantics<parallel>], iteration_bounds = array<i64: 2, 1>, scalar_prefetch = 0 : i64, scratch_operands = 0 : i64, tpu.core_type = #tpu.core_type<tc>, window_params = [{transform_indices = @transform_0, window_bounds = array<i64: 1, 16, 32>}, {transform_indices = @transform_1, window_bounds = array<i64: 1, 16, 32>}, {pipeline_mode = #tpu.pipeline_mode<synchronous>, transform_indices = @transform_2, window_bounds = array<i64: 32, 32>}, {pipeline_mode = #tpu.pipeline_mode<synchronous>, transform_indices = @transform_3, window_bounds = array<i64: 1, 32>}, {pipeline_mode = #tpu.pipeline_mode<synchronous>, transform_indices = @transform_4, window_bounds = array<i64: 1, 32>}, {pipeline_mode = #tpu.pipeline_mode<synchronous>, transform_indices = @transform_5, window_bounds = array<i64: 1, 32>}, {pipeline_mode = #tpu.pipeline_mode<synchronous>, transform_indices = @transform_6, window_bounds = array<i64: 32, 64>}, {pipeline_mode = #tpu.pipeline_mode<synchronous>, transform_indices = @transform_7, window_bounds = array<i64: 1, 64>}, {pipeline_mode = #tpu.pipeline_mode<synchronous>, transform_indices = @transform_8, window_bounds = array<i64: 64, 32>}, {pipeline_mode = #tpu.pipeline_mode<synchronous>, transform_indices = @transform_9, window_bounds = array<i64: 1, 32>}, {pipeline_mode = #tpu.pipeline_mode<synchronous>, transform_indices = @transform_10, window_bounds = array<i64: 1, 32>}, {pipeline_mode = #tpu.pipeline_mode<synchronous>, transform_indices = @transform_11, window_bounds = array<i64: 1, 32>}, {transform_indices = @transform_12, window_bounds = array<i64: 1, 16, 32>}]} {
    %c0 = arith.constant 0 : index
    %c0_0 = arith.constant 0 : index
    %c0_1 = arith.constant 0 : index
    %0 = vector.load %arg2[%c0, %c0_0, %c0_1] : memref<1x16x32xbf16, #tpu.memory_space<vmem>>, vector<1x16x32xbf16>
    %1 = vector.shape_cast %0 : vector<1x16x32xbf16> to vector<16x32xbf16>
    %c0_2 = arith.constant 0 : index
    %c0_3 = arith.constant 0 : index
    %2 = vector.load %arg4[%c0_2, %c0_3] : memref<32x32xbf16, #tpu.memory_space<vmem>>, vector<32x32xbf16>
    %cst = arith.constant dense<0.000000e+00> : vector<16x32xf32>
    %3 = tpu.matmul %1, %2, %cst {dimension_numbers = #tpu.dot_dimension_numbers<[1], [0], [0], [1], [0, 0, 1, 1], [], []>} : vector<16x32xbf16>, vector<32x32xbf16>, vector<16x32xf32> -> vector<16x32xf32>
    %c0_4 = arith.constant 0 : index
    %c0_5 = arith.constant 0 : index
    %4 = vector.load %arg5[%c0_4, %c0_5] : memref<1x32xf32, #tpu.memory_space<vmem>>, vector<1x32xf32>
    %5 = vector.broadcast %4 : vector<1x32xf32> to vector<16x32xf32>
    %6 = arith.addf %3, %5 : vector<16x32xf32>
    %c0_6 = arith.constant 0 : index
    %c0_7 = arith.constant 0 : index
    %c0_8 = arith.constant 0 : index
    %7 = vector.load %arg3[%c0_6, %c0_7, %c0_8] : memref<1x16x32xbf16, #tpu.memory_space<vmem>>, vector<1x16x32xbf16>
    %8 = vector.shape_cast %7 : vector<1x16x32xbf16> to vector<16x32xbf16>
    %9 = arith.extf %8 : vector<16x32xbf16> to vector<16x32xf32>
    %10 = arith.addf %6, %9 : vector<16x32xf32>
    %c0_9 = arith.constant 0 : index
    %c0_10 = arith.constant 0 : index
    %11 = vector.load %arg6[%c0_9, %c0_10] : memref<1x32xf32, #tpu.memory_space<vmem>>, vector<1x32xf32>
    %c0_11 = arith.constant 0 : index
    %c0_12 = arith.constant 0 : index
    %12 = vector.load %arg7[%c0_11, %c0_12] : memref<1x32xf32, #tpu.memory_space<vmem>>, vector<1x32xf32>
    %cst_13 = arith.constant dense<0.000000e+00> : vector<16xf32>
    %13 = vector.multi_reduction <add>, %10, %cst_13 [1] : vector<16x32xf32> to vector<16xf32>
    %14 = vector.shape_cast %13 : vector<16xf32> to vector<16x1xf32>
    %cst_14 = arith.constant 3.200000e+01 : f32
    %15 = vector.broadcast %cst_14 : f32 to vector<16x1xf32>
    %16 = arith.divf %14, %15 : vector<16x1xf32>
    %17 = vector.broadcast %16 : vector<16x1xf32> to vector<16x32xf32>
    %18 = arith.subf %10, %17 : vector<16x32xf32>
    %19 = arith.mulf %18, %18 : vector<16x32xf32>
    %cst_15 = arith.constant dense<0.000000e+00> : vector<16xf32>
    %20 = vector.multi_reduction <add>, %19, %cst_15 [1] : vector<16x32xf32> to vector<16xf32>
    %21 = vector.shape_cast %20 : vector<16xf32> to vector<16x1xf32>
    %cst_16 = arith.constant 3.200000e+01 : f32
    %22 = vector.broadcast %cst_16 : f32 to vector<16x1xf32>
    %23 = arith.divf %21, %22 : vector<16x1xf32>
    %24 = vector.broadcast %16 : vector<16x1xf32> to vector<16x32xf32>
    %25 = arith.subf %10, %24 : vector<16x32xf32>
    %cst_17 = arith.constant 9.99999996E-13 : f32
    %26 = vector.broadcast %cst_17 : f32 to vector<16x1xf32>
    %27 = arith.addf %23, %26 : vector<16x1xf32>
    %28 = math.rsqrt %27 : vector<16x1xf32>
    %29 = vector.broadcast %28 : vector<16x1xf32> to vector<16x32xf32>
    %30 = arith.mulf %25, %29 : vector<16x32xf32>
    %31 = vector.broadcast %11 : vector<1x32xf32> to vector<16x32xf32>
    %32 = arith.mulf %30, %31 : vector<16x32xf32>
    %33 = vector.broadcast %12 : vector<1x32xf32> to vector<16x32xf32>
    %34 = arith.addf %32, %33 : vector<16x32xf32>
    %35 = arith.truncf %34 : vector<16x32xf32> to vector<16x32xbf16>
    %c0_18 = arith.constant 0 : index
    %c0_19 = arith.constant 0 : index
    %36 = vector.load %arg8[%c0_18, %c0_19] : memref<32x64xbf16, #tpu.memory_space<vmem>>, vector<32x64xbf16>
    %cst_20 = arith.constant dense<0.000000e+00> : vector<16x64xf32>
    %37 = tpu.matmul %35, %36, %cst_20 {dimension_numbers = #tpu.dot_dimension_numbers<[1], [0], [0], [1], [0, 0, 1, 1], [], []>} : vector<16x32xbf16>, vector<32x64xbf16>, vector<16x64xf32> -> vector<16x64xf32>
    %c0_21 = arith.constant 0 : index
    %c0_22 = arith.constant 0 : index
    %38 = vector.load %arg9[%c0_21, %c0_22] : memref<1x64xf32, #tpu.memory_space<vmem>>, vector<1x64xf32>
    %39 = vector.broadcast %38 : vector<1x64xf32> to vector<16x64xf32>
    %40 = arith.addf %37, %39 : vector<16x64xf32>
    %cst_23 = arith.constant 5.000000e-01 : f32
    %41 = vector.broadcast %cst_23 : f32 to vector<16x64xf32>
    %42 = arith.mulf %41, %40 : vector<16x64xf32>
    %cst_24 = arith.constant 4.471500e-02 : f32
    %43 = vector.broadcast %cst_24 : f32 to vector<16x64xf32>
    %44 = arith.mulf %43, %40 : vector<16x64xf32>
    %45 = arith.mulf %44, %40 : vector<16x64xf32>
    %46 = arith.mulf %45, %40 : vector<16x64xf32>
    %47 = arith.addf %40, %46 : vector<16x64xf32>
    %cst_25 = arith.constant 0.797884583 : f32
    %48 = vector.broadcast %cst_25 : f32 to vector<16x64xf32>
    %49 = arith.mulf %48, %47 : vector<16x64xf32>
    %50 = math.tanh %49 : vector<16x64xf32>
    %cst_26 = arith.constant 1.000000e+00 : f32
    %51 = vector.broadcast %cst_26 : f32 to vector<16x64xf32>
    %52 = arith.addf %51, %50 : vector<16x64xf32>
    %53 = arith.mulf %42, %52 : vector<16x64xf32>
    %54 = arith.truncf %53 : vector<16x64xf32> to vector<16x64xbf16>
    %c0_27 = arith.constant 0 : index
    %c0_28 = arith.constant 0 : index
    %55 = vector.load %arg10[%c0_27, %c0_28] : memref<64x32xbf16, #tpu.memory_space<vmem>>, vector<64x32xbf16>
    %cst_29 = arith.constant dense<0.000000e+00> : vector<16x32xf32>
    %56 = tpu.matmul %54, %55, %cst_29 {dimension_numbers = #tpu.dot_dimension_numbers<[1], [0], [0], [1], [0, 0, 1, 1], [], []>} : vector<16x64xbf16>, vector<64x32xbf16>, vector<16x32xf32> -> vector<16x32xf32>
    %c0_30 = arith.constant 0 : index
    %c0_31 = arith.constant 0 : index
    %57 = vector.load %arg11[%c0_30, %c0_31] : memref<1x32xf32, #tpu.memory_space<vmem>>, vector<1x32xf32>
    %58 = vector.broadcast %57 : vector<1x32xf32> to vector<16x32xf32>
    %59 = arith.addf %56, %58 : vector<16x32xf32>
    %60 = arith.addf %59, %34 : vector<16x32xf32>
    %c0_32 = arith.constant 0 : index
    %c0_33 = arith.constant 0 : index
    %61 = vector.load %arg12[%c0_32, %c0_33] : memref<1x32xf32, #tpu.memory_space<vmem>>, vector<1x32xf32>
    %c0_34 = arith.constant 0 : index
    %c0_35 = arith.constant 0 : index
    %62 = vector.load %arg13[%c0_34, %c0_35] : memref<1x32xf32, #tpu.memory_space<vmem>>, vector<1x32xf32>
    %cst_36 = arith.constant dense<0.000000e+00> : vector<16xf32>
    %63 = vector.multi_reduction <add>, %60, %cst_36 [1] : vector<16x32xf32> to vector<16xf32>
    %64 = vector.shape_cast %63 : vector<16xf32> to vector<16x1xf32>
    %cst_37 = arith.constant 3.200000e+01 : f32
    %65 = vector.broadcast %cst_37 : f32 to vector<16x1xf32>
    %66 = arith.divf %64, %65 : vector<16x1xf32>
    %67 = vector.broadcast %66 : vector<16x1xf32> to vector<16x32xf32>
    %68 = arith.subf %60, %67 : vector<16x32xf32>
    %69 = arith.mulf %68, %68 : vector<16x32xf32>
    %cst_38 = arith.constant dense<0.000000e+00> : vector<16xf32>
    %70 = vector.multi_reduction <add>, %69, %cst_38 [1] : vector<16x32xf32> to vector<16xf32>
    %71 = vector.shape_cast %70 : vector<16xf32> to vector<16x1xf32>
    %cst_39 = arith.constant 3.200000e+01 : f32
    %72 = vector.broadcast %cst_39 : f32 to vector<16x1xf32>
    %73 = arith.divf %71, %72 : vector<16x1xf32>
    %74 = vector.broadcast %66 : vector<16x1xf32> to vector<16x32xf32>
    %75 = arith.subf %60, %74 : vector<16x32xf32>
    %cst_40 = arith.constant 9.99999996E-13 : f32
    %76 = vector.broadcast %cst_40 : f32 to vector<16x1xf32>
    %77 = arith.addf %73, %76 : vector<16x1xf32>
    %78 = math.rsqrt %77 : vector<16x1xf32>
    %79 = vector.broadcast %78 : vector<16x1xf32> to vector<16x32xf32>
    %80 = arith.mulf %75, %79 : vector<16x32xf32>
    %81 = vector.broadcast %61 : vector<1x32xf32> to vector<16x32xf32>
    %82 = arith.mulf %80, %81 : vector<16x32xf32>
    %83 = vector.broadcast %62 : vector<1x32xf32> to vector<16x32xf32>
    %84 = arith.addf %82, %83 : vector<16x32xf32>
    %85 = arith.truncf %84 : vector<16x32xf32> to vector<16x32xbf16>
    %c0_41 = arith.constant 0 : index
    %c0_42 = arith.constant 0 : index
    %c0_43 = arith.constant 0 : index
    %86 = vector.load %arg14[%c0_41, %c0_42, %c0_43] : memref<1x16x32xbf16, #tpu.memory_space<vmem>>, vector<1x16x32xbf16>
    %87 = vector.shape_cast %86 : vector<1x16x32xbf16> to vector<16x32xbf16>
    %88 = vector.shape_cast %85 : vector<16x32xbf16> to vector<1x16x32xbf16>
    tpu.vector_store %arg14[%c0_41, %c0_42, %c0_43], %88 {strides = array<i32>} : memref<1x16x32xbf16, #tpu.memory_space<vmem>>, vector<1x16x32xbf16>,
    return
  }
  func.func @transform_0(%arg0: i32, %arg1: i32) -> (i32, i32, i32) {
    %c0_i32 = arith.constant 0 : i32
    %c0_i32_0 = arith.constant 0 : i32
    return %arg0, %arg1, %c0_i32 : i32, i32, i32
  }
  func.func @transform_1(%arg0: i32, %arg1: i32) -> (i32, i32, i32) {
    %c0_i32 = arith.constant 0 : i32
    %c0_i32_0 = arith.constant 0 : i32
    return %arg0, %arg1, %c0_i32 : i32, i32, i32
  }
  func.func @transform_2(%arg0: i32, %arg1: i32) -> (i32, i32) {
    %c0_i32 = arith.constant 0 : i32
    %c0_i32_0 = arith.constant 0 : i32
    %c0_i32_1 = arith.constant 0 : i32
    return %c0_i32, %c0_i32_0 : i32, i32
  }
  func.func @transform_3(%arg0: i32, %arg1: i32) -> (i32, i32) {
    %c0_i32 = arith.constant 0 : i32
    %c0_i32_0 = arith.constant 0 : i32
    %c0_i32_1 = arith.constant 0 : i32
    return %c0_i32, %c0_i32_0 : i32, i32
  }
  func.func @transform_4(%arg0: i32, %arg1: i32) -> (i32, i32) {
    %c0_i32 = arith.constant 0 : i32
    %c0_i32_0 = arith.constant 0 : i32
    %c0_i32_1 = arith.constant 0 : i32
    return %c0_i32, %c0_i32_0 : i32, i32
  }
  func.func @transform_5(%arg0: i32, %arg1: i32) -> (i32, i32) {
    %c0_i32 = arith.constant 0 : i32
    %c0_i32_0 = arith.constant 0 : i32
    %c0_i32_1 = arith.constant 0 : i32
    return %c0_i32, %c0_i32_0 : i32, i32
  }
  func.func @transform_6(%arg0: i32, %arg1: i32) -> (i32, i32) {
    %c0_i32 = arith.constant 0 : i32
    %c0_i32_0 = arith.constant 0 : i32
    %c0_i32_1 = arith.constant 0 : i32
    return %c0_i32, %c0_i32_0 : i32, i32
  }
  func.func @transform_7(%arg0: i32, %arg1: i32) -> (i32, i32) {
    %c0_i32 = arith.constant 0 : i32
    %c0_i32_0 = arith.constant 0 : i32
    %c0_i32_1 = arith.constant 0 : i32
    return %c0_i32, %c0_i32_0 : i32, i32
  }
  func.func @transform_8(%arg0: i32, %arg1: i32) -> (i32, i32) {
    %c0_i32 = arith.constant 0 : i32
    %c0_i32_0 = arith.constant 0 : i32
    %c0_i32_1 = arith.constant 0 : i32
    return %c0_i32, %c0_i32_0 : i32, i32
  }
  func.func @transform_9(%arg0: i32, %arg1: i32) -> (i32, i32) {
    %c0_i32 = arith.constant 0 : i32
    %c0_i32_0 = arith.constant 0 : i32
    %c0_i32_1 = arith.constant 0 : i32
    return %c0_i32, %c0_i32_0 : i32, i32
  }
  func.func @transform_10(%arg0: i32, %arg1: i32) -> (i32, i32) {
    %c0_i32 = arith.constant 0 : i32
    %c0_i32_0 = arith.constant 0 : i32
    %c0_i32_1 = arith.constant 0 : i32
    return %c0_i32, %c0_i32_0 : i32, i32
  }
  func.func @transform_11(%arg0: i32, %arg1: i32) -> (i32, i32) {
    %c0_i32 = arith.constant 0 : i32
    %c0_i32_0 = arith.constant 0 : i32
    %c0_i32_1 = arith.constant 0 : i32
    return %c0_i32, %c0_i32_0 : i32, i32
  }
  func.func @transform_12(%arg0: i32, %arg1: i32) -> (i32, i32, i32) {
    %c0_i32 = arith.constant 0 : i32
    %c0_i32_0 = arith.constant 0 : i32
    return %arg0, %arg1, %c0_i32 : i32, i32, i32
  }
}

module attributes {stable_mosaic.version = 11 : i64} {
  func.func @_proj_ffn_kernel(%arg0: i32, %arg1: i32, %arg2: memref<1x16x32xbf16, #tpu.memory_space<vmem>>, %arg3: memref<1x16x32xbf16, #tpu.memory_space<vmem>>, %arg4: memref<32x32xbf16, #tpu.memory_space<vmem>>, %arg5: memref<1x32xf32, #tpu.memory_space<vmem>>, %arg6: memref<1x32xf32, #tpu.memory_space<vmem>>, %arg7: memref<1x32xf32, #tpu.memory_space<vmem>>, %arg8: memref<32x64xbf16, #tpu.memory_space<vmem>>, %arg9: memref<1x64xf32, #tpu.memory_space<vmem>>, %arg10: memref<64x32xbf16, #tpu.memory_space<vmem>>, %arg11: memref<1x32xf32, #tpu.memory_space<vmem>>, %arg12: memref<1x32xf32, #tpu.memory_space<vmem>>, %arg13: memref<1x32xf32, #tpu.memory_space<vmem>>, %arg14: memref<1x16x32xbf16, #tpu.memory_space<vmem>>) attributes {dimension_semantics = [#tpu.dimension_semantics<parallel>, #tpu.dimension_semantics<parallel>], iteration_bounds = array<i64: 2, 1>, scalar_prefetch = 0 : i64, scratch_operands = 0 : i64, tpu.core_type = #tpu.core_type<tc>, window_params = [{transform_indices = @transform_0, window_bounds = array<i64: 1, 16, 32>}, {transform_indices = @transform_1, window_bounds = array<i64: 1, 16, 32>}, {pipeline_mode = #tpu.pipeline_mode<synchronous>, transform_indices = @transform_2, window_bounds = array<i64: 32, 32>}, {pipeline_mode = #tpu.pipeline_mode<synchronous>, transform_indices = @transform_3, window_bounds = array<i64: 1, 32>}, {pipeline_mode = #tpu.pipeline_mode<synchronous>, transform_indices = @transform_4, window_bounds = array<i64: 1, 32>}, {pipeline_mode = #tpu.pipeline_mode<synchronous>, transform_indices = @transform_5, window_bounds = array<i64: 1, 32>}, {pipeline_mode = #tpu.pipeline_mode<synchronous>, transform_indices = @transform_6, window_bounds = array<i64: 32, 64>}, {pipeline_mode = #tpu.pipeline_mode<synchronous>, transform_indices = @transform_7, window_bounds = array<i64: 1, 64>}, {pipeline_mode = #tpu.pipeline_mode<synchronous>, transform_indices = @transform_8, window_bounds = array<i64: 64, 32>}, {pipeline_mode = #tpu.pipeline_mode<synchronous>, transform_indices = @transform_9, window_bounds = array<i64: 1, 32>}, {pipeline_mode = #tpu.pipeline_mode<synchronous>, transform_indices = @transform_10, window_bounds = array<i64: 1, 32>}, {pipeline_mode = #tpu.pipeline_mode<synchronous>, transform_indices = @transform_11, window_bounds = array<i64: 1, 32>}, {transform_indices = @transform_12, window_bounds = array<i64: 1, 16, 32>}]} {
    %c0 = arith.constant 0 : index
    %c0_0 = arith.constant 0 : index
    %c0_1 = arith.constant 0 : index
    %0 = vector.load %arg2[%c0, %c0_0, %c0_1] : memref<1x16x32xbf16, #tpu.memory_space<vmem>>, vector<1x16x32xbf16>
    %1 = vector.shape_cast %0 : vector<1x16x32xbf16> to vector<16x32xbf16>
    %c0_2 = arith.constant 0 : index
    %c0_3 = arith.constant 0 : index
    %2 = vector.load %arg4[%c0_2, %c0_3] : memref<32x32xbf16, #tpu.memory_space<vmem>>, vector<32x32xbf16>
    %cst = arith.constant dense<0.000000e+00> : vector<16x32xf32>
    %3 = tpu.matmul %1, %2, %cst {dimension_numbers = #tpu.dot_dimension_numbers<[1], [0], [0], [1], [0, 0, 1, 1], [], []>} : vector<16x32xbf16>, vector<32x32xbf16>, vector<16x32xf32> -> vector<16x32xf32>
    %c0_4 = arith.constant 0 : index
    %c0_5 = arith.constant 0 : index
    %4 = vector.load %arg5[%c0_4, %c0_5] : memref<1x32xf32, #tpu.memory_space<vmem>>, vector<1x32xf32>
    %5 = vector.broadcast %4 : vector<1x32xf32> to vector<16x32xf32>
    %6 = arith.addf %3, %5 : vector<16x32xf32>
    %c0_6 = arith.constant 0 : index
    %c0_7 = arith.constant 0 : index
    %c0_8 = arith.constant 0 : index
    %7 = vector.load %arg3[%c0_6, %c0_7, %c0_8] : memref<1x16x32xbf16, #tpu.memory_space<vmem>>, vector<1x16x32xbf16>
    %8 = vector.shape_cast %7 : vector<1x16x32xbf16> to vector<16x32xbf16>
    %9 = arith.extf %8 : vector<16x32xbf16> to vector<16x32xf32>
    %10 = arith.addf %6, %9 : vector<16x32xf32>
    %c0_9 = arith.constant 0 : index
    %c0_10 = arith.constant 0 : index
    %11 = vector.load %arg6[%c0_9, %c0_10] : memref<1x32xf32, #tpu.memory_space<vmem>>, vector<1x32xf32>
    %c0_11 = arith.constant 0 : index
    %c0_12 = arith.constant 0 : index
    %12 = vector.load %arg7[%c0_11, %c0_12] : memref<1x32xf32, #tpu.memory_space<vmem>>, vector<1x32xf32>
    %cst_13 = arith.constant dense<0.000000e+00> : vector<16xf32>
    %13 = vector.multi_reduction <add>, %10, %cst_13 [1] : vector<16x32xf32> to vector<16xf32>
    %14 = vector.shape_cast %13 : vector<16xf32> to vector<16x1xf32>
    %cst_14 = arith.constant 3.200000e+01 : f32
    %15 = vector.broadcast %cst_14 : f32 to vector<16x1xf32>
    %16 = arith.divf %14, %15 : vector<16x1xf32>
    %17 = vector.broadcast %16 : vector<16x1xf32> to vector<16x32xf32>
    %18 = arith.subf %10, %17 : vector<16x32xf32>
    %19 = arith.mulf %18, %18 : vector<16x32xf32>
    %cst_15 = arith.constant dense<0.000000e+00> : vector<16xf32>
    %20 = vector.multi_reduction <add>, %19, %cst_15 [1] : vector<16x32xf32> to vector<16xf32>
    %21 = vector.shape_cast %20 : vector<16xf32> to vector<16x1xf32>
    %cst_16 = arith.constant 3.200000e+01 : f32
    %22 = vector.broadcast %cst_16 : f32 to vector<16x1xf32>
    %23 = arith.divf %21, %22 : vector<16x1xf32>
    %24 = vector.broadcast %16 : vector<16x1xf32> to vector<16x32xf32>
    %25 = arith.subf %10, %24 : vector<16x32xf32>
    %cst_17 = arith.constant 9.99999997E-7 : f32
    %26 = vector.broadcast %cst_17 : f32 to vector<16x1xf32>
    %27 = arith.addf %23, %26 : vector<16x1xf32>
    %28 = math.rsqrt %27 : vector<16x1xf32>
    %29 = vector.broadcast %28 : vector<16x1xf32> to vector<16x32xf32>
    %30 = arith.mulf %25, %29 : vector<16x32xf32>
    %31 = vector.broadcast %11 : vector<1x32xf32> to vector<16x32xf32>
    %32 = arith.mulf %30, %31 : vector<16x32xf32>
    %33 = vector.broadcast %12 : vector<1x32xf32> to vector<16x32xf32>
    %34 = arith.addf %32, %33 : vector<16x32xf32>
    %35 = arith.truncf %34 : vector<16x32xf32> to vector<16x32xbf16>
    %c0_18 = arith.constant 0 : index
    %c0_19 = arith.constant 0 : index
    %36 = vector.load %arg8[%c0_18, %c0_19] : memref<32x64xbf16, #tpu.memory_space<vmem>>, vector<32x64xbf16>
    %cst_20 = arith.constant dense<0.000000e+00> : vector<16x64xf32>
    %37 = tpu.matmul %35, %36, %cst_20 {dimension_numbers = #tpu.dot_dimension_numbers<[1], [0], [0], [1], [0, 0, 1, 1], [], []>} : vector<16x32xbf16>, vector<32x64xbf16>, vector<16x64xf32> -> vector<16x64xf32>
    %c0_21 = arith.constant 0 : index
    %c0_22 = arith.constant 0 : index
    %38 = vector.load %arg9[%c0_21, %c0_22] : memref<1x64xf32, #tpu.memory_space<vmem>>, vector<1x64xf32>
    %39 = vector.broadcast %38 : vector<1x64xf32> to vector<16x64xf32>
    %40 = arith.addf %37, %39 : vector<16x64xf32>
    %cst_23 = arith.constant 5.000000e-01 : f32
    %41 = vector.broadcast %cst_23 : f32 to vector<16x64xf32>
    %42 = arith.mulf %41, %40 : vector<16x64xf32>
    %cst_24 = arith.constant 4.471500e-02 : f32
    %43 = vector.broadcast %cst_24 : f32 to vector<16x64xf32>
    %44 = arith.mulf %43, %40 : vector<16x64xf32>
    %45 = arith.mulf %44, %40 : vector<16x64xf32>
    %46 = arith.mulf %45, %40 : vector<16x64xf32>
    %47 = arith.addf %40, %46 : vector<16x64xf32>
    %cst_25 = arith.constant 0.797884583 : f32
    %48 = vector.broadcast %cst_25 : f32 to vector<16x64xf32>
    %49 = arith.mulf %48, %47 : vector<16x64xf32>
    %50 = math.tanh %49 : vector<16x64xf32>
    %cst_26 = arith.constant 1.000000e+00 : f32
    %51 = vector.broadcast %cst_26 : f32 to vector<16x64xf32>
    %52 = arith.addf %51, %50 : vector<16x64xf32>
    %53 = arith.mulf %42, %52 : vector<16x64xf32>
    %54 = arith.truncf %53 : vector<16x64xf32> to vector<16x64xbf16>
    %c0_27 = arith.constant 0 : index
    %c0_28 = arith.constant 0 : index
    %55 = vector.load %arg10[%c0_27, %c0_28] : memref<64x32xbf16, #tpu.memory_space<vmem>>, vector<64x32xbf16>
    %cst_29 = arith.constant dense<0.000000e+00> : vector<16x32xf32>
    %56 = tpu.matmul %54, %55, %cst_29 {dimension_numbers = #tpu.dot_dimension_numbers<[1], [0], [0], [1], [0, 0, 1, 1], [], []>} : vector<16x64xbf16>, vector<64x32xbf16>, vector<16x32xf32> -> vector<16x32xf32>
    %c0_30 = arith.constant 0 : index
    %c0_31 = arith.constant 0 : index
    %57 = vector.load %arg11[%c0_30, %c0_31] : memref<1x32xf32, #tpu.memory_space<vmem>>, vector<1x32xf32>
    %58 = vector.broadcast %57 : vector<1x32xf32> to vector<16x32xf32>
    %59 = arith.addf %56, %58 : vector<16x32xf32>
    %60 = arith.addf %59, %10 : vector<16x32xf32>
    %61 = arith.truncf %60 : vector<16x32xf32> to vector<16x32xbf16>
    %c0_32 = arith.constant 0 : index
    %c0_33 = arith.constant 0 : index
    %c0_34 = arith.constant 0 : index
    %62 = vector.load %arg14[%c0_32, %c0_33, %c0_34] : memref<1x16x32xbf16, #tpu.memory_space<vmem>>, vector<1x16x32xbf16>
    %63 = vector.shape_cast %62 : vector<1x16x32xbf16> to vector<16x32xbf16>
    %64 = vector.shape_cast %61 : vector<16x32xbf16> to vector<1x16x32xbf16>
    tpu.vector_store %arg14[%c0_32, %c0_33, %c0_34], %64 {strides = array<i32>} : memref<1x16x32xbf16, #tpu.memory_space<vmem>>, vector<1x16x32xbf16>,
    return
  }
  func.func @transform_0(%arg0: i32, %arg1: i32) -> (i32, i32, i32) {
    %c0_i32 = arith.constant 0 : i32
    %c0_i32_0 = arith.constant 0 : i32
    return %arg0, %arg1, %c0_i32 : i32, i32, i32
  }
  func.func @transform_1(%arg0: i32, %arg1: i32) -> (i32, i32, i32) {
    %c0_i32 = arith.constant 0 : i32
    %c0_i32_0 = arith.constant 0 : i32
    return %arg0, %arg1, %c0_i32 : i32, i32, i32
  }
  func.func @transform_2(%arg0: i32, %arg1: i32) -> (i32, i32) {
    %c0_i32 = arith.constant 0 : i32
    %c0_i32_0 = arith.constant 0 : i32
    %c0_i32_1 = arith.constant 0 : i32
    return %c0_i32, %c0_i32_0 : i32, i32
  }
  func.func @transform_3(%arg0: i32, %arg1: i32) -> (i32, i32) {
    %c0_i32 = arith.constant 0 : i32
    %c0_i32_0 = arith.constant 0 : i32
    %c0_i32_1 = arith.constant 0 : i32
    return %c0_i32, %c0_i32_0 : i32, i32
  }
  func.func @transform_4(%arg0: i32, %arg1: i32) -> (i32, i32) {
    %c0_i32 = arith.constant 0 : i32
    %c0_i32_0 = arith.constant 0 : i32
    %c0_i32_1 = arith.constant 0 : i32
    return %c0_i32, %c0_i32_0 : i32, i32
  }
  func.func @transform_5(%arg0: i32, %arg1: i32) -> (i32, i32) {
    %c0_i32 = arith.constant 0 : i32
    %c0_i32_0 = arith.constant 0 : i32
    %c0_i32_1 = arith.constant 0 : i32
    return %c0_i32, %c0_i32_0 : i32, i32
  }
  func.func @transform_6(%arg0: i32, %arg1: i32) -> (i32, i32) {
    %c0_i32 = arith.constant 0 : i32
    %c0_i32_0 = arith.constant 0 : i32
    %c0_i32_1 = arith.constant 0 : i32
    return %c0_i32, %c0_i32_0 : i32, i32
  }
  func.func @transform_7(%arg0: i32, %arg1: i32) -> (i32, i32) {
    %c0_i32 = arith.constant 0 : i32
    %c0_i32_0 = arith.constant 0 : i32
    %c0_i32_1 = arith.constant 0 : i32
    return %c0_i32, %c0_i32_0 : i32, i32
  }
  func.func @transform_8(%arg0: i32, %arg1: i32) -> (i32, i32) {
    %c0_i32 = arith.constant 0 : i32
    %c0_i32_0 = arith.constant 0 : i32
    %c0_i32_1 = arith.constant 0 : i32
    return %c0_i32, %c0_i32_0 : i32, i32
  }
  func.func @transform_9(%arg0: i32, %arg1: i32) -> (i32, i32) {
    %c0_i32 = arith.constant 0 : i32
    %c0_i32_0 = arith.constant 0 : i32
    %c0_i32_1 = arith.constant 0 : i32
    return %c0_i32, %c0_i32_0 : i32, i32
  }
  func.func @transform_10(%arg0: i32, %arg1: i32) -> (i32, i32) {
    %c0_i32 = arith.constant 0 : i32
    %c0_i32_0 = arith.constant 0 : i32
    %c0_i32_1 = arith.constant 0 : i32
    return %c0_i32, %c0_i32_0 : i32, i32
  }
  func.func @transform_11(%arg0: i32, %arg1: i32) -> (i32, i32) {
    %c0_i32 = arith.constant 0 : i32
    %c0_i32_0 = arith.constant 0 : i32
    %c0_i32_1 = arith.constant 0 : i32
    return %c0_i32, %c0_i32_0 : i32, i32
  }
  func.func @transform_12(%arg0: i32, %arg1: i32) -> (i32, i32, i32) {
    %c0_i32 = arith.constant 0 : i32
    %c0_i32_0 = arith.constant 0 : i32
    return %arg0, %arg1, %c0_i32 : i32, i32, i32
  }
}

module attributes {stable_mosaic.version = 11 : i64} {
  func.func @_ln_qkv_kernel(%arg0: i32, %arg1: i32, %arg2: memref<1x16x32xbf16, #tpu.memory_space<vmem>>, %arg3: memref<1x32xf32, #tpu.memory_space<vmem>>, %arg4: memref<1x32xf32, #tpu.memory_space<vmem>>, %arg5: memref<32x96xbf16, #tpu.memory_space<vmem>>, %arg6: memref<1x96xf32, #tpu.memory_space<vmem>>, %arg7: memref<1x16x96xbf16, #tpu.memory_space<vmem>>) attributes {dimension_semantics = [#tpu.dimension_semantics<parallel>, #tpu.dimension_semantics<parallel>], iteration_bounds = array<i64: 2, 1>, scalar_prefetch = 0 : i64, scratch_operands = 0 : i64, tpu.core_type = #tpu.core_type<tc>, window_params = [{transform_indices = @transform_0, window_bounds = array<i64: 1, 16, 32>}, {pipeline_mode = #tpu.pipeline_mode<synchronous>, transform_indices = @transform_1, window_bounds = array<i64: 1, 32>}, {pipeline_mode = #tpu.pipeline_mode<synchronous>, transform_indices = @transform_2, window_bounds = array<i64: 1, 32>}, {pipeline_mode = #tpu.pipeline_mode<synchronous>, transform_indices = @transform_3, window_bounds = array<i64: 32, 96>}, {pipeline_mode = #tpu.pipeline_mode<synchronous>, transform_indices = @transform_4, window_bounds = array<i64: 1, 96>}, {transform_indices = @transform_5, window_bounds = array<i64: 1, 16, 96>}]} {
    %c0 = arith.constant 0 : index
    %c0_0 = arith.constant 0 : index
    %c0_1 = arith.constant 0 : index
    %0 = vector.load %arg2[%c0, %c0_0, %c0_1] : memref<1x16x32xbf16, #tpu.memory_space<vmem>>, vector<1x16x32xbf16>
    %1 = vector.shape_cast %0 : vector<1x16x32xbf16> to vector<16x32xbf16>
    %2 = arith.extf %1 : vector<16x32xbf16> to vector<16x32xf32>
    %c0_2 = arith.constant 0 : index
    %c0_3 = arith.constant 0 : index
    %3 = vector.load %arg3[%c0_2, %c0_3] : memref<1x32xf32, #tpu.memory_space<vmem>>, vector<1x32xf32>
    %c0_4 = arith.constant 0 : index
    %c0_5 = arith.constant 0 : index
    %4 = vector.load %arg4[%c0_4, %c0_5] : memref<1x32xf32, #tpu.memory_space<vmem>>, vector<1x32xf32>
    %cst = arith.constant dense<0.000000e+00> : vector<16xf32>
    %5 = vector.multi_reduction <add>, %2, %cst [1] : vector<16x32xf32> to vector<16xf32>
    %6 = vector.shape_cast %5 : vector<16xf32> to vector<16x1xf32>
    %cst_6 = arith.constant 3.200000e+01 : f32
    %7 = vector.broadcast %cst_6 : f32 to vector<16x1xf32>
    %8 = arith.divf %6, %7 : vector<16x1xf32>
    %9 = vector.broadcast %8 : vector<16x1xf32> to vector<16x32xf32>
    %10 = arith.subf %2, %9 : vector<16x32xf32>
    %11 = arith.mulf %10, %10 : vector<16x32xf32>
    %cst_7 = arith.constant dense<0.000000e+00> : vector<16xf32>
    %12 = vector.multi_reduction <add>, %11, %cst_7 [1] : vector<16x32xf32> to vector<16xf32>
    %13 = vector.shape_cast %12 : vector<16xf32> to vector<16x1xf32>
    %cst_8 = arith.constant 3.200000e+01 : f32
    %14 = vector.broadcast %cst_8 : f32 to vector<16x1xf32>
    %15 = arith.divf %13, %14 : vector<16x1xf32>
    %16 = vector.broadcast %8 : vector<16x1xf32> to vector<16x32xf32>
    %17 = arith.subf %2, %16 : vector<16x32xf32>
    %cst_9 = arith.constant 9.99999997E-7 : f32
    %18 = vector.broadcast %cst_9 : f32 to vector<16x1xf32>
    %19 = arith.addf %15, %18 : vector<16x1xf32>
    %20 = math.rsqrt %19 : vector<16x1xf32>
    %21 = vector.broadcast %20 : vector<16x1xf32> to vector<16x32xf32>
    %22 = arith.mulf %17, %21 : vector<16x32xf32>
    %23 = vector.broadcast %3 : vector<1x32xf32> to vector<16x32xf32>
    %24 = arith.mulf %22, %23 : vector<16x32xf32>
    %25 = vector.broadcast %4 : vector<1x32xf32> to vector<16x32xf32>
    %26 = arith.addf %24, %25 : vector<16x32xf32>
    %27 = arith.truncf %26 : vector<16x32xf32> to vector<16x32xbf16>
    %c0_10 = arith.constant 0 : index
    %c0_11 = arith.constant 0 : index
    %28 = vector.load %arg5[%c0_10, %c0_11] : memref<32x96xbf16, #tpu.memory_space<vmem>>, vector<32x96xbf16>
    %cst_12 = arith.constant dense<0.000000e+00> : vector<16x96xf32>
    %29 = tpu.matmul %27, %28, %cst_12 {dimension_numbers = #tpu.dot_dimension_numbers<[1], [0], [0], [1], [0, 0, 1, 1], [], []>} : vector<16x32xbf16>, vector<32x96xbf16>, vector<16x96xf32> -> vector<16x96xf32>
    %c0_13 = arith.constant 0 : index
    %c0_14 = arith.constant 0 : index
    %30 = vector.load %arg6[%c0_13, %c0_14] : memref<1x96xf32, #tpu.memory_space<vmem>>, vector<1x96xf32>
    %31 = vector.broadcast %30 : vector<1x96xf32> to vector<16x96xf32>
    %32 = arith.addf %29, %31 : vector<16x96xf32>
    %33 = arith.truncf %32 : vector<16x96xf32> to vector<16x96xbf16>
    %c0_15 = arith.constant 0 : index
    %c0_16 = arith.constant 0 : index
    %c0_17 = arith.constant 0 : index
    %34 = vector.load %arg7[%c0_15, %c0_16, %c0_17] : memref<1x16x96xbf16, #tpu.memory_space<vmem>>, vector<1x16x96xbf16>
    %35 = vector.shape_cast %34 : vector<1x16x96xbf16> to vector<16x96xbf16>
    %36 = vector.shape_cast %33 : vector<16x96xbf16> to vector<1x16x96xbf16>
    tpu.vector_store %arg7[%c0_15, %c0_16, %c0_17], %36 {strides = array<i32>} : memref<1x16x96xbf16, #tpu.memory_space<vmem>>, vector<1x16x96xbf16>,
    return
  }
  func.func @transform_0(%arg0: i32, %arg1: i32) -> (i32, i32, i32) {
    %c0_i32 = arith.constant 0 : i32
    %c0_i32_0 = arith.constant 0 : i32
    return %arg0, %arg1, %c0_i32 : i32, i32, i32
  }
  func.func @transform_1(%arg0: i32, %arg1: i32) -> (i32, i32) {
    %c0_i32 = arith.constant 0 : i32
    %c0_i32_0 = arith.constant 0 : i32
    %c0_i32_1 = arith.constant 0 : i32
    return %c0_i32, %c0_i32_0 : i32, i32
  }
  func.func @transform_2(%arg0: i32, %arg1: i32) -> (i32, i32) {
    %c0_i32 = arith.constant 0 : i32
    %c0_i32_0 = arith.constant 0 : i32
    %c0_i32_1 = arith.constant 0 : i32
    return %c0_i32, %c0_i32_0 : i32, i32
  }
  func.func @transform_3(%arg0: i32, %arg1: i32) -> (i32, i32) {
    %c0_i32 = arith.constant 0 : i32
    %c0_i32_0 = arith.constant 0 : i32
    %c0_i32_1 = arith.constant 0 : i32
    return %c0_i32, %c0_i32_0 : i32, i32
  }
  func.func @transform_4(%arg0: i32, %arg1: i32) -> (i32, i32) {
    %c0_i32 = arith.constant 0 : i32
    %c0_i32_0 = arith.constant 0 : i32
    %c0_i32_1 = arith.constant 0 : i32
    return %c0_i32, %c0_i32_0 : i32, i32
  }
  func.func @transform_5(%arg0: i32, %arg1: i32) -> (i32, i32, i32) {
    %c0_i32 = arith.constant 0 : i32
    %c0_i32_0 = arith.constant 0 : i32
    return %arg0, %arg1, %c0_i32 : i32, i32, i32
  }
}

module attributes {stable_mosaic.version = 11 : i64} {
  func.func @_final_score_kernel(%arg0: i32, %arg1: i32, %arg2: memref<1x16x32xbf16, #tpu.memory_space<vmem>>, %arg3: memref<1x32xf32, #tpu.memory_space<vmem>>, %arg4: memref<1x32xf32, #tpu.memory_space<vmem>>, %arg5: memref<1x32xf32, #tpu.memory_space<vmem>>, %arg6: memref<1xf32, #tpu.memory_space<smem>>, %arg7: memref<1x16x128xf32, #tpu.memory_space<vmem>>) attributes {dimension_semantics = [#tpu.dimension_semantics<parallel>, #tpu.dimension_semantics<parallel>], iteration_bounds = array<i64: 2, 1>, scalar_prefetch = 0 : i64, scratch_operands = 0 : i64, tpu.core_type = #tpu.core_type<tc>, window_params = [{transform_indices = @transform_0, window_bounds = array<i64: 1, 16, 32>}, {pipeline_mode = #tpu.pipeline_mode<synchronous>, transform_indices = @transform_1, window_bounds = array<i64: 1, 32>}, {pipeline_mode = #tpu.pipeline_mode<synchronous>, transform_indices = @transform_2, window_bounds = array<i64: 1, 32>}, {pipeline_mode = #tpu.pipeline_mode<synchronous>, transform_indices = @transform_3, window_bounds = array<i64: 1, 32>}, {transform_indices = @transform_4, window_bounds = array<i64: 1>}, {transform_indices = @transform_5, window_bounds = array<i64: 1, 16, 128>}]} {
    %c0 = arith.constant 0 : index
    %c0_0 = arith.constant 0 : index
    %c0_1 = arith.constant 0 : index
    %0 = vector.load %arg2[%c0, %c0_0, %c0_1] : memref<1x16x32xbf16, #tpu.memory_space<vmem>>, vector<1x16x32xbf16>
    %1 = vector.shape_cast %0 : vector<1x16x32xbf16> to vector<16x32xbf16>
    %2 = arith.extf %1 : vector<16x32xbf16> to vector<16x32xf32>
    %c0_2 = arith.constant 0 : index
    %c0_3 = arith.constant 0 : index
    %3 = vector.load %arg3[%c0_2, %c0_3] : memref<1x32xf32, #tpu.memory_space<vmem>>, vector<1x32xf32>
    %c0_4 = arith.constant 0 : index
    %c0_5 = arith.constant 0 : index
    %4 = vector.load %arg4[%c0_4, %c0_5] : memref<1x32xf32, #tpu.memory_space<vmem>>, vector<1x32xf32>
    %cst = arith.constant dense<0.000000e+00> : vector<16xf32>
    %5 = vector.multi_reduction <add>, %2, %cst [1] : vector<16x32xf32> to vector<16xf32>
    %6 = vector.shape_cast %5 : vector<16xf32> to vector<16x1xf32>
    %cst_6 = arith.constant 3.200000e+01 : f32
    %7 = vector.broadcast %cst_6 : f32 to vector<16x1xf32>
    %8 = arith.divf %6, %7 : vector<16x1xf32>
    %9 = vector.broadcast %8 : vector<16x1xf32> to vector<16x32xf32>
    %10 = arith.subf %2, %9 : vector<16x32xf32>
    %11 = arith.mulf %10, %10 : vector<16x32xf32>
    %cst_7 = arith.constant dense<0.000000e+00> : vector<16xf32>
    %12 = vector.multi_reduction <add>, %11, %cst_7 [1] : vector<16x32xf32> to vector<16xf32>
    %13 = vector.shape_cast %12 : vector<16xf32> to vector<16x1xf32>
    %cst_8 = arith.constant 3.200000e+01 : f32
    %14 = vector.broadcast %cst_8 : f32 to vector<16x1xf32>
    %15 = arith.divf %13, %14 : vector<16x1xf32>
    %16 = vector.broadcast %8 : vector<16x1xf32> to vector<16x32xf32>
    %17 = arith.subf %2, %16 : vector<16x32xf32>
    %cst_9 = arith.constant 9.99999997E-7 : f32
    %18 = vector.broadcast %cst_9 : f32 to vector<16x1xf32>
    %19 = arith.addf %15, %18 : vector<16x1xf32>
    %20 = math.rsqrt %19 : vector<16x1xf32>
    %21 = vector.broadcast %20 : vector<16x1xf32> to vector<16x32xf32>
    %22 = arith.mulf %17, %21 : vector<16x32xf32>
    %23 = vector.broadcast %3 : vector<1x32xf32> to vector<16x32xf32>
    %24 = arith.mulf %22, %23 : vector<16x32xf32>
    %25 = vector.broadcast %4 : vector<1x32xf32> to vector<16x32xf32>
    %26 = arith.addf %24, %25 : vector<16x32xf32>
    %c0_10 = arith.constant 0 : index
    %c0_11 = arith.constant 0 : index
    %27 = vector.load %arg5[%c0_10, %c0_11] : memref<1x32xf32, #tpu.memory_space<vmem>>, vector<1x32xf32>
    %28 = vector.broadcast %27 : vector<1x32xf32> to vector<16x32xf32>
    %29 = arith.mulf %26, %28 : vector<16x32xf32>
    %cst_12 = arith.constant dense<0.000000e+00> : vector<16xf32>
    %30 = vector.multi_reduction <add>, %29, %cst_12 [1] : vector<16x32xf32> to vector<16xf32>
    %31 = vector.shape_cast %30 : vector<16xf32> to vector<16x1xf32>
    %c0_13 = arith.constant 0 : index
    %32 = memref.load %arg6[%c0_13] : memref<1xf32, #tpu.memory_space<smem>>
    %33 = vector.broadcast %32 : f32 to vector<16x1xf32>
    %34 = arith.addf %31, %33 : vector<16x1xf32>
    %cst_14 = arith.constant 5.000000e-01 : f32
    %35 = vector.broadcast %cst_14 : f32 to vector<16x1xf32>
    %36 = arith.mulf %35, %34 : vector<16x1xf32>
    %37 = math.tanh %36 : vector<16x1xf32>
    %cst_15 = arith.constant 1.000000e+00 : f32
    %38 = vector.broadcast %cst_15 : f32 to vector<16x1xf32>
    %39 = arith.addf %37, %38 : vector<16x1xf32>
    %cst_16 = arith.constant 5.000000e-01 : f32
    %40 = vector.broadcast %cst_16 : f32 to vector<16x1xf32>
    %41 = arith.mulf %40, %39 : vector<16x1xf32>
    %42 = vector.shape_cast %41 : vector<16x1xf32> to vector<16x1xf32>
    %43 = vector.broadcast %42 : vector<16x1xf32> to vector<16x128xf32>
    %c0_17 = arith.constant 0 : index
    %c0_18 = arith.constant 0 : index
    %c0_19 = arith.constant 0 : index
    %44 = vector.load %arg7[%c0_17, %c0_18, %c0_19] : memref<1x16x128xf32, #tpu.memory_space<vmem>>, vector<1x16x128xf32>
    %45 = vector.shape_cast %44 : vector<1x16x128xf32> to vector<16x128xf32>
    %46 = vector.shape_cast %43 : vector<16x128xf32> to vector<1x16x128xf32>
    tpu.vector_store %arg7[%c0_17, %c0_18, %c0_19], %46 {strides = array<i32>} : memref<1x16x128xf32, #tpu.memory_space<vmem>>, vector<1x16x128xf32>,
    return
  }
  func.func @transform_0(%arg0: i32, %arg1: i32) -> (i32, i32, i32) {
    %c0_i32 = arith.constant 0 : i32
    %c0_i32_0 = arith.constant 0 : i32
    return %arg0, %arg1, %c0_i32 : i32, i32, i32
  }
  func.func @transform_1(%arg0: i32, %arg1: i32) -> (i32, i32) {
    %c0_i32 = arith.constant 0 : i32
    %c0_i32_0 = arith.constant 0 : i32
    %c0_i32_1 = arith.constant 0 : i32
    return %c0_i32, %c0_i32_0 : i32, i32
  }
  func.func @transform_2(%arg0: i32, %arg1: i32) -> (i32, i32) {
    %c0_i32 = arith.constant 0 : i32
    %c0_i32_0 = arith.constant 0 : i32
    %c0_i32_1 = arith.constant 0 : i32
    return %c0_i32, %c0_i32_0 : i32, i32
  }
  func.func @transform_3(%arg0: i32, %arg1: i32) -> (i32, i32) {
    %c0_i32 = arith.constant 0 : i32
    %c0_i32_0 = arith.constant 0 : i32
    %c0_i32_1 = arith.constant 0 : i32
    return %c0_i32, %c0_i32_0 : i32, i32
  }
  func.func @transform_4(%arg0: i32, %arg1: i32) -> i32 {
    %c0_i32 = arith.constant 0 : i32
    %c0_i32_0 = arith.constant 0 : i32
    return %c0_i32 : i32
  }
  func.func @transform_5(%arg0: i32, %arg1: i32) -> (i32, i32, i32) {
    %c0_i32 = arith.constant 0 : i32
    %c0_i32_0 = arith.constant 0 : i32
    return %arg0, %arg1, %c0_i32 : i32, i32, i32
  }
}

</mosaic_0001>

<llo_original>
// kernel: tpu_custom_call.1
$region0: #{tpu_custom_call.1}
  #allocation0 [shape = 'u32[]', space=smem, size = 0x4, offset = 0x4, fixed_abs, tag = 'smem constant byte address 0x4 - core index']
  #allocation1 [shape = 'u32[72,128]{1,0:T(1,128)}', space=vmem, size = 0x9000, scoped, tag = 'internal scratch']
  %s0 = inlined_call_operand.hbm [shape: f32[8,128], index: 0, kind: input, shape index: {}]
  %s1 = inlined_call_operand.hbm [shape: f32[8,128], index: 1, kind: output, shape index: {}]
  %s2 = sld [smem:[#allocation0]]
  $region18: #{tpu_custom_call.1} parent=0
    _
  %s4 = ssub.s32 1, %s2
  %s5 = scalar_select 0, %s4, %s2
  $region1: #{tpu_custom_call.1} parent=0
    #allocation2 [shape = 'u8[4096]{0}', space=vmem, size = 0x1000, scoped, tag = 'input window, operand 0, single buffered']
    #allocation3 [shape = 's32[1]{0}', space=sflag, size = 0x4, scoped, tag = 'scoped memory for tpu_custom_call.1']
    #allocation4 [shape = 's32[1]{0}', space=sflag, size = 0x4, scoped, tag = 'scoped memory for tpu_custom_call.1']
    #allocation5 [shape = 'u8[4096]{0}', space=vmem, size = 0x1000, scoped, tag = 'output window, operand 0, single buffered']
    %6 = vsyncpa [#allocation3], 0
    %7 = vsyncpa [#allocation4], 0
    // Predicated region
    $region2: #{tpu_custom_call.1} parent=1 // pred_check
      _
    $region3: #{tpu_custom_call.1} parent=1 // pred_check_branch
      %9 = sbr.rel (0) target = $region5
    $region4: #{tpu_custom_call.1} parent=1 // pred_region
      %11 = vsyncadd [#allocation3], 0
      %s13 = sshll.u32 %s0, 4
      %s14 = int_to_ptr.hbm [resolvable:$true] %s13
      %s15 = sshll.u32 [#allocation2], 4
      %s16 = int_to_ptr.vmem [resolvable:$true] %s15
      %18 = dma.hbm_to_vmem [thread:$0]  %s14, 128, %s16, [#allocation3]
    $region5: #{tpu_custom_call.1} parent=1 // pred_fallthru
      _
    // Predicated region
    $region6: #{tpu_custom_call.1} parent=1 // pred_check
      _
    $region7: #{tpu_custom_call.1} parent=1 // pred_check_branch
      %20 = sbr.rel (0) target = $region9
    $region8: #{tpu_custom_call.1} parent=1 // pred_region
      %22 = dma.done [#allocation3], 128
    $region9: #{tpu_custom_call.1} parent=1 // pred_fallthru
      _
    %v23 = vld [vmem:[#allocation2] sm:$0xff]
    %v24 = vmul.f32 %v23, 2.0
    %25 = vst [vmem:[#allocation5] sm:$0xff] %v24
    // Predicated region
    $region10: #{tpu_custom_call.1} parent=1 // pred_check
      _
    $region11: #{tpu_custom_call.1} parent=1 // pred_check_branch
      %27 = sbr.rel (0) target = $region13
    $region12: #{tpu_custom_call.1} parent=1 // pred_region
      %29 = vsyncadd [#allocation4], 0
      %s31 = sshll.u32 [#allocation5], 4
      %s32 = int_to_ptr.vmem [resolvable:$true] %s31
      %s33 = sshll.u32 %s1, 4
      %s34 = int_to_ptr.hbm [resolvable:$true] %s33
      %36 = dma.vmem_to_hbm [thread:$0]  %s32, 128, %s34, [#allocation4]
    $region13: #{tpu_custom_call.1} parent=1 // pred_fallthru
      _
    // Predicated region
    $region14: #{tpu_custom_call.1} parent=1 // pred_check
      _
    $region15: #{tpu_custom_call.1} parent=1 // pred_check_branch
      %38 = sbr.rel (0) target = $region17
    $region16: #{tpu_custom_call.1} parent=1 // pred_region
      %40 = dma.done [#allocation4], 128
    $region17: #{tpu_custom_call.1} parent=1 // pred_fallthru
      _
    %41 = vsyncpa [#allocation3], 1
    %42 = vsyncpa [#allocation4], 1

// kernel: bert_ext_forward.15
$region0: #{bert_ext_forward.15}
  #allocation0 [shape = 'u32[]', space=smem, size = 0x4, offset = 0x4, fixed_abs, tag = 'smem constant byte address 0x4 - core index']
  #allocation1 [shape = 'u32[72,128]{1,0:T(1,128)}', space=vmem, size = 0x9000, scoped, tag = 'internal scratch']
  %s0 = inlined_call_operand.vmem [shape: bf16[2,16,32], index: 0, kind: input, shape index: {}]
  %s1 = inlined_call_operand.vmem [shape: f32[1,32], index: 1, kind: input, shape index: {}]
  %s2 = inlined_call_operand.vmem [shape: f32[1,32], index: 2, kind: input, shape index: {}]
  %s3 = inlined_call_operand.vmem [shape: bf16[32,96], index: 3, kind: input, shape index: {}]
  %s4 = inlined_call_operand.vmem [shape: f32[1,96], index: 4, kind: input, shape index: {}]
  %s5 = inlined_call_operand.vmem [shape: bf16[2,16,96], index: 5, kind: output, shape index: {}]
  %s6 = sld [smem:[#allocation0]]
  $region53: #{bert_ext_forward.15} parent=0
    _
  %s8 = ssub.s32 1, %s6
  %s9 = scalar_select 0, %s8, %s6
  loop: start=0, step=1, limit=4
  $region2: #{bert_ext_forward.15} parent=0 // loop_pre_header
    _
  $region3: #{bert_ext_forward.15} parent=0 // loop_header
    %s11 = sphi 0, %s15
    %p12 = scmp.ge.s32.totalorder %s11, 4
    %s18 = sphi 0, %s30
    %s19 = sphi 0, %s26
    %s20 = sphi 0, %s18
    %s21 = sphi 0, %s19
    %s22 = sphi 0, %s20
    %s23 = sphi 0, %s21
    %s35 = sphi 0, %s37
    %s38 = sphi 0, %s35
    %s39 = sphi 0, %s38
    %s55 = sphi 0, %s39
    %s59 = sphi 0, %s59
    %s61 = sphi 0, %s59
    %s62 = sphi 0, %s61
    %s76 = sphi 0, %s62
    %s80 = sphi 0, %s80
    %s82 = sphi 0, %s80
    %s83 = sphi 0, %s82
    %s97 = sphi 0, %s83
    %s101 = sphi 0, %s101
    %s103 = sphi 0, %s101
    %s104 = sphi 0, %s103
    %s118 = sphi 0, %s104
    %s122 = sphi 0, %s122
    %s124 = sphi 0, %s122
    %s125 = sphi 0, %s124
    %s139 = sphi 0, %s125
    %s147 = sphi 0, %s149
    %s150 = sphi 0, %s147
    %s151 = sphi 0, %s150
    %s167 = sphi 0, %s151
  $region4: #{bert_ext_forward.15} parent=0 // loop_header_branch
    %14 = sbr.rel (%p12) target = $region8
  $region5: #{bert_ext_forward.15} parent=0 // loop_body
    %s16 = ssub.s32 %s11, 1
    %s17 = ssub.s32 %s11, 2
    %s24 = sadd.s32 1, %s19
    %p25 = scmp.ge.s32.totalorder %s24, 1
    %s26 = scalar_select %p25, 0, %s24
    %s27 = sadd.s32 1, %s18
    %s28 = scalar_select %p25, %s27, %s18
    %p29 = scmp.ge.s32.totalorder %s28, 2
    %s30 = scalar_select %p29, 0, %s28
    %s31 = ssub.s32 %s18, %s30
    %s32 = ssub.s32 %s19, %s26
    %s33 = sor.u32 %s31, %s32
    %p34 = scmp.eq.s32.totalorder %s33, 0
    %s36 = sadd.s32 %s35, 1
    %s37 = scalar_select %p34, %s35, %s36
    %p40 = pneg %p34
    %p41 = scmp.eq.s32.totalorder %s11, 1
    %p42 = por %p40, %p41
    %p43 = scmp.ne.s32.totalorder %s35, %s38
    %p44 = scmp.eq.s32.totalorder %s11, 0
    %p45 = por %p43, %p44
    %p46 = scmp.ne.s32.totalorder %s35, %s38
    %p47 = scmp.eq.s32.totalorder %s16, 1
    %p48 = por %p46, %p47
    %p49 = scmp.ne.s32.totalorder %s38, %s39
    %p50 = scmp.eq.s32.totalorder %s16, 0
    %p51 = por %p49, %p50
    %p52 = scmp.ne.s32.totalorder %s38, %s39
    %p53 = scmp.eq.s32.totalorder %s17, 1
    %p54 = por %p52, %p53
    %p56 = scmp.ne.s32.totalorder %s39, %s55
    %p57 = scmp.eq.s32.totalorder %s17, 0
    %p58 = por %p56, %p57
    %s60 = sadd.s32 %s59, 1
    %p63 = scmp.eq.s32.totalorder %s11, 1
    %p64 = scmp.ne.s32.totalorder %s59, %s61
    %p65 = scmp.eq.s32.totalorder %s11, 0
    %p66 = por %p64, %p65
    %p67 = scmp.ne.s32.totalorder %s59, %s61
    %p68 = scmp.eq.s32.totalorder %s16, 1
    %p69 = por %p67, %p68
    %p70 = scmp.ne.s32.totalorder %s61, %s62
    %p71 = scmp.eq.s32.totalorder %s16, 0
    %p72 = por %p70, %p71
    %p73 = scmp.ne.s32.totalorder %s61, %s62
    %p74 = scmp.eq.s32.totalorder %s17, 1
    %p75 = por %p73, %p74
    %p77 = scmp.ne.s32.totalorder %s62, %s76
    %p78 = scmp.eq.s32.totalorder %s17, 0
    %p79 = por %p77, %p78
    %s81 = sadd.s32 %s80, 1
    %p84 = scmp.eq.s32.totalorder %s11, 1
    %p85 = scmp.ne.s32.totalorder %s80, %s82
    %p86 = scmp.eq.s32.totalorder %s11, 0
    %p87 = por %p85, %p86
    %p88 = scmp.ne.s32.totalorder %s80, %s82
    %p89 = scmp.eq.s32.totalorder %s16, 1
    %p90 = por %p88, %p89
    %p91 = scmp.ne.s32.totalorder %s82, %s83
    %p92 = scmp.eq.s32.totalorder %s16, 0
    %p93 = por %p91, %p92
    %p94 = scmp.ne.s32.totalorder %s82, %s83
    %p95 = scmp.eq.s32.totalorder %s17, 1
    %p96 = por %p94, %p95
    %p98 = scmp.ne.s32.totalorder %s83, %s97
    %p99 = scmp.eq.s32.totalorder %s17, 0
    %p100 = por %p98, %p99
    %s102 = sadd.s32 %s101, 1
    %p105 = scmp.eq.s32.totalorder %s11, 1
    %p106 = scmp.ne.s32.totalorder %s101, %s103
    %p107 = scmp.eq.s32.totalorder %s11, 0
    %p108 = por %p106, %p107
    %p109 = scmp.ne.s32.totalorder %s101, %s103
    %p110 = scmp.eq.s32.totalorder %s16, 1
    %p111 = por %p109, %p110
    %p112 = scmp.ne.s32.totalorder %s103, %s104
    %p113 = scmp.eq.s32.totalorder %s16, 0
    %p114 = por %p112, %p113
    %p115 = scmp.ne.s32.totalorder %s103, %s104
    %p116 = scmp.eq.s32.totalorder %s17, 1
    %p117 = por %p115, %p116
    %p119 = scmp.ne.s32.totalorder %s104, %s118
    %p120 = scmp.eq.s32.totalorder %s17, 0
    %p121 = por %p119, %p120
    %s123 = sadd.s32 %s122, 1
    %p126 = scmp.eq.s32.totalorder %s11, 1
    %p127 = scmp.ne.s32.totalorder %s122, %s124
    %p128 = scmp.eq.s32.totalorder %s11, 0
    %p129 = por %p127, %p128
    %p130 = scmp.ne.s32.totalorder %s122, %s124
    %p131 = scmp.eq.s32.totalorder %s16, 1
    %p132 = por %p130, %p131
    %p133 = scmp.ne.s32.totalorder %s124, %s125
    %p134 = scmp.eq.s32.totalorder %s16, 0
    %p135 = por %p133, %p134
    %p136 = scmp.ne.s32.totalorder %s124, %s125
    %p137 = scmp.eq.s32.totalorder %s17, 1
    %p138 = por %p136, %p137
    %p140 = scmp.ne.s32.totalorder %s125, %s139
    %p141 = scmp.eq.s32.totalorder %s17, 0
    %p142 = por %p140, %p141
    %s143 = ssub.s32 %s18, %s30
    %s144 = ssub.s32 %s19, %s26
    %s145 = sor.u32 %s143, %s144
    %p146 = scmp.eq.s32.totalorder %s145, 0
    %s148 = sadd.s32 %s147, 1
    %s149 = scalar_select %p146, %s147, %s148
    %p152 = pneg %p146
    %p153 = scmp.eq.s32.totalorder %s11, 1
    %p154 = por %p152, %p153
    %p155 = scmp.ne.s32.totalorder %s147, %s150
    %p156 = scmp.eq.s32.totalorder %s11, 0
    %p157 = por %p155, %p156
    %p158 = scmp.ne.s32.totalorder %s147, %s150
    %p159 = scmp.eq.s32.totalorder %s16, 1
    %p160 = por %p158, %p159
    %p161 = scmp.ne.s32.totalorder %s150, %s151
    %p162 = scmp.eq.s32.totalorder %s16, 0
    %p163 = por %p161, %p162
    %p164 = scmp.ne.s32.totalorder %s150, %s151
    %p165 = scmp.eq.s32.totalorder %s17, 1
    %p166 = por %p164, %p165
    %p168 = scmp.ne.s32.totalorder %s151, %s167
    %p169 = scmp.eq.s32.totalorder %s17, 0
    %p170 = por %p168, %p169
    %p171 = scmp.le.s32.totalorder 1, %s11
    %p172 = scmp.lt.s32.totalorder %s11, 3
    %p173 = pnand %p171, %p172
    %p174 = pneg %p173
    // Predicated region
    $region9: #{bert_ext_forward.15} parent=5 // pred_check
      _
    $region10: #{bert_ext_forward.15} parent=5 // pred_check_branch
      %176 = sbr.rel (%p173) target = $region12
    $region11: #{bert_ext_forward.15} parent=5 // pred_region
      %s177 = ssub.s32 %s11, 1
      // Predicated region
      $region13: #{bert_ext_forward.15} parent=11 // pred_check
        %p178 = pneg %p72
      $region14: #{bert_ext_forward.15} parent=11 // pred_check_branch
        %180 = sbr.rel (%p178) target = $region16
      $region15: #{bert_ext_forward.15} parent=11 // pred_region
        _
      $region16: #{bert_ext_forward.15} parent=11 // pred_fallthru
        _
      // Predicated region
      $region17: #{bert_ext_forward.15} parent=11 // pred_check
        %p181 = pneg %p93
      $region18: #{bert_ext_forward.15} parent=11 // pred_check_branch
        %183 = sbr.rel (%p181) target = $region20
      $region19: #{bert_ext_forward.15} parent=11 // pred_region
        _
      $region20: #{bert_ext_forward.15} parent=11 // pred_fallthru
        _
      // Predicated region
      $region21: #{bert_ext_forward.15} parent=11 // pred_check
        %p184 = pneg %p114
      $region22: #{bert_ext_forward.15} parent=11 // pred_check_branch
        %186 = sbr.rel (%p184) target = $region24
      $region23: #{bert_ext_forward.15} parent=11 // pred_region
        _
      $region24: #{bert_ext_forward.15} parent=11 // pred_fallthru
        _
      // Predicated region
      $region25: #{bert_ext_forward.15} parent=11 // pred_check
        %p187 = pneg %p135
      $region26: #{bert_ext_forward.15} parent=11 // pred_check_branch
        %189 = sbr.rel (%p187) target = $region28
      $region27: #{bert_ext_forward.15} parent=11 // pred_region
        _
      $region28: #{bert_ext_forward.15} parent=11 // pred_fallthru
        _
    $region12: #{bert_ext_forward.15} parent=5 // pred_fallthru
      _
    %p190 = scmp.lt.s32.totalorder %s11, 2
    // Predicated region
    $region29: #{bert_ext_forward.15} parent=5 // pred_check
      %p191 = pneg %p190
    $region30: #{bert_ext_forward.15} parent=5 // pred_check_branch
      %193 = sbr.rel (%p191) target = $region32
    $region31: #{bert_ext_forward.15} parent=5 // pred_region
      // Predicated region
      $region33: #{bert_ext_forward.15} parent=31 // pred_check
        %p194 = pneg %p45
      $region34: #{bert_ext_forward.15} parent=31 // pred_check_branch
        %196 = sbr.rel (%p194) target = $region36
      $region35: #{bert_ext_forward.15} parent=31 // pred_region
        %s197 = smul.u32 2, %s19
        %p198 = scmp.lt.s32.totalorder %s18, 1
        %s199 = scalar_select %p198, %s18, 1
        %p200 = scmp.lt.s32.totalorder %s197, 1
        %s201 = scalar_select %p200, %s197, 1
        %s202 = smul.addr %s199, 2
        %s203 = sadd.s32 %s201, %s202
        %s204 = smul.addr %s203, 4
        %s205 = scalar_lea.vmem %s0, %s204
        %s206 = smul.u32 2, %s19
      $region36: #{bert_ext_forward.15} parent=31 // pred_fallthru
        _
    $region32: #{bert_ext_forward.15} parent=5 // pred_fallthru
      _
    %p207 = scmp.le.s32.totalorder 1, %s11
    %p208 = scmp.lt.s32.totalorder %s11, 3
    %p209 = pnand %p207, %p208
    %p210 = pneg %p209
    // Predicated region
    $region37: #{bert_ext_forward.15} parent=5 // pred_check
      _
    $region38: #{bert_ext_forward.15} parent=5 // pred_check_branch
      %212 = sbr.rel (%p209) target = $region40
    $region39: #{bert_ext_forward.15} parent=5 // pred_region
      %s213 = ssub.s32 %s11, 1
      %s214 = smul.u32 2, %s21
      %p215 = scmp.lt.s32.totalorder %s20, 1
      %s216 = scalar_select %p215, %s20, 1
      %p217 = scmp.lt.s32.totalorder %s214, 1
      %s218 = scalar_select %p217, %s214, 1
      %s219 = smul.addr %s216, 2
      %s220 = sadd.s32 %s218, %s219
      %s221 = smul.addr %s220, 4
      %s222 = scalar_lea.vmem %s0, %s221
      %p223 = pneg %p51
      %p224 = pneg %p48
      %p225 = pneg %p72
      %p226 = pneg %p69
      %p227 = pneg %p93
      %p228 = pneg %p90
      %p229 = pneg %p114
      %p230 = pneg %p111
      %p231 = pneg %p135
      %p232 = pneg %p132
      %p233 = pneg %p163
      %p234 = pneg %p160
      %s235 = smul.u32 2, %s21
      %p236 = scmp.lt.s32.totalorder %s20, 1
      %s237 = scalar_select %p236, %s20, 1
      %p238 = scmp.lt.s32.totalorder %s235, 1
      %s239 = scalar_select %p238, %s235, 1
      %s240 = smul.addr %s237, 2
      %s241 = sadd.s32 %s239, %s240
      %s242 = smul.addr %s241, 4
      %s243 = scalar_lea.vmem %s5, %s242
      %s244 = smul.u32 2, %s21
      %p245 = scmp.lt.s32.totalorder %s20, 1
      %s246 = scalar_select %p245, %s20, 1
      %p247 = scmp.lt.s32.totalorder %s244, 1
      %s248 = scalar_select %p247, %s244, 1
      %s249 = smul.addr %s246, 2
      %s250 = sadd.s32 %s248, %s249
      %s251 = smul.addr %s250, 4
      %s252 = scalar_lea.vmem %s0, %s251
      %s253 = smul.u32 2, %s21
      %s254 = smul.u32 2, %s21
      %p255 = scmp.lt.s32.totalorder %s20, 1
      %s256 = scalar_select %p255, %s20, 1
      %p257 = scmp.lt.s32.totalorder %s254, 1
      %s258 = scalar_select %p257, %s254, 1
      %s259 = smul.addr %s256, 2
      %s260 = sadd.s32 %s258, %s259
      %s261 = smul.addr %s260, 4
      %s262 = scalar_lea.vmem %s5, %s261
      %s263 = smul.u32 2, %s21
      %v265 = vld [vmem:[%s252] sm:$0xf]
      %v266 = vld [vmem:[%s252 + $0x4] sm:$0xf]
      %v267 = vld [vmem:[%s3] sm:$0xf]
      %v268 = vld [vmem:[%s3 + $0x4] sm:$0xf]
      %v269 = vld [vmem:[%s3 + $0x8] sm:$0xf]
      %v270 = vld [vmem:[%s3 + $0xc] sm:$0xf]
      %v271 = vld [vmem:[%s4] sm:$0x1]
      %v273 = vperm.slane %v271, 0
      %v277 = vunpack.c.l.b16 %v265
      %v278 = vunpack.c.l.b16 %v266
      %v279 = vpack.c.b16 %v278, %v277
      %v284 = vunpack.c.l.b16 %v267
      %v285 = vunpack.c.l.b16 %v268
      %v286 = vunpack.c.l.b16 %v269
      %v287 = vunpack.c.l.b16 %v270
      %v288 = vpack.c.b16 %v285, %v284
      %v289 = vpack.c.b16 %v287, %v286
      %vm292 = vcmask 261120
      %v294 = vsel %vm292, %v279, 0
      %296 = vmatpush.bf16.msra.mxu0 0
      %297 = vmatpush.bf16.msra.mxu0 0
      %298 = vmatpush.bf16.msra.mxu0 0
      %299 = vmatpush.bf16.msra.mxu0 0
      %300 = vmatpush.bf16.msra.mxu0 0
      %301 = vmatpush.bf16.msra.mxu0 0
      %302 = vmatpush.bf16.msra.mxu0 %v289
      %303 = vmatpush.bf16.msra.mxu0 %v288
      %304 = vmatmul.bf16.gmra.mxu0 %v294
      %v305 = vpop.f32.mrf.mxu0
      %v306 = vadd.f32 %v273, %v305
      %v307 = vpop.f32.mrf.mxu0
      %v308 = vadd.f32 %v273, %v307
      %309 = vdwg.mxu0
      %v310 = vpack.c.bf16 %v306, %v306
      %v311 = vpack.c.bf16 %v308, %v308
      %vm312 = vcmask 781312
      %313 = vst.msk [vmem:[%s262] sm:$0xf] %vm312, %v310
      %314 = vst.msk [vmem:[%s262 + $0x4] sm:$0xf] %vm312, %v311
      %s315 = smul.u32 2, %s21
      %p316 = scmp.lt.s32.totalorder %s20, 1
      %s317 = scalar_select %p316, %s20, 1
      %p318 = scmp.lt.s32.totalorder %s315, 1
      %s319 = scalar_select %p318, %s315, 1
      %s320 = smul.addr %s317, 2
      %s321 = sadd.s32 %s319, %s320
      %s322 = smul.addr %s321, 4
      %s323 = scalar_lea.vmem %s5, %s322
      // Predicated region
      $region41: #{bert_ext_forward.15} parent=39 // pred_check
        %p324 = pneg %p160
      $region42: #{bert_ext_forward.15} parent=39 // pred_check_branch
        %326 = sbr.rel (%p324) target = $region44
      $region43: #{bert_ext_forward.15} parent=39 // pred_region
        %s327 = smul.u32 2, %s21
      $region44: #{bert_ext_forward.15} parent=39 // pred_fallthru
        _
    $region40: #{bert_ext_forward.15} parent=5 // pred_fallthru
      _
    %p328 = scmp.le.s32.totalorder 2, %s11
    // Predicated region
    $region45: #{bert_ext_forward.15} parent=5 // pred_check
      %p329 = pneg %p328
    $region46: #{bert_ext_forward.15} parent=5 // pred_check_branch
      %331 = sbr.rel (%p329) target = $region48
    $region47: #{bert_ext_forward.15} parent=5 // pred_region
      %s332 = ssub.s32 %s11, 2
      // Predicated region
      $region49: #{bert_ext_forward.15} parent=47 // pred_check
        %p333 = pneg %p166
      $region50: #{bert_ext_forward.15} parent=47 // pred_check_branch
        %335 = sbr.rel (%p333) target = $region52
      $region51: #{bert_ext_forward.15} parent=47 // pred_region
        %s336 = smul.u32 2, %s23
        %p337 = scmp.lt.s32.totalorder %s22, 1
        %s338 = scalar_select %p337, %s22, 1
        %p339 = scmp.lt.s32.totalorder %s336, 1
        %s340 = scalar_select %p339, %s336, 1
        %s341 = smul.addr %s338, 2
        %s342 = sadd.s32 %s340, %s341
        %s343 = smul.addr %s342, 4
        %s344 = scalar_lea.vmem %s5, %s343
      $region52: #{bert_ext_forward.15} parent=47 // pred_fallthru
        _
    $region48: #{bert_ext_forward.15} parent=5 // pred_fallthru
      _
  $region6: #{bert_ext_forward.15} parent=0 // loop_footer
    %s15 = sadd.s32 1, %s11
  $region7: #{bert_ext_forward.15} parent=0 // loop_footer_branch
    %10 = sbr.rel target = $region3
  $region8: #{bert_ext_forward.15} parent=0 // loop_exit
    _

// kernel: bert_ext_forward.14
$region0: #{bert_ext_forward.14}
  #allocation0 [shape = 'u32[]', space=smem, size = 0x4, offset = 0x4, fixed_abs, tag = 'smem constant byte address 0x4 - core index']
  #allocation1 [shape = 'u32[72,128]{1,0:T(1,128)}', space=vmem, size = 0x9000, scoped, tag = 'internal scratch']
  %s0 = inlined_call_operand.vmem [shape: f32[2,16,32], index: 0, kind: input, shape index: {}]
  %s1 = inlined_call_operand.vmem [shape: f32[1,32], index: 1, kind: input, shape index: {}]
  %s2 = inlined_call_operand.vmem [shape: f32[1,32], index: 2, kind: input, shape index: {}]
  %s3 = inlined_call_operand.vmem [shape: bf16[2,16,32], index: 3, kind: output, shape index: {}]
  %s4 = sld [smem:[#allocation0]]
  $region45: #{bert_ext_forward.14} parent=0
    _
  %s6 = ssub.s32 1, %s4
  %s7 = scalar_select 0, %s6, %s4
  loop: start=0, step=1, limit=4
  $region2: #{bert_ext_forward.14} parent=0 // loop_pre_header
    _
  $region3: #{bert_ext_forward.14} parent=0 // loop_header
    %s9 = sphi 0, %s13
    %p10 = scmp.ge.s32.totalorder %s9, 4
    %s16 = sphi 0, %s28
    %s17 = sphi 0, %s24
    %s18 = sphi 0, %s16
    %s19 = sphi 0, %s17
    %s20 = sphi 0, %s18
    %s21 = sphi 0, %s19
    %s33 = sphi 0, %s35
    %s36 = sphi 0, %s33
    %s37 = sphi 0, %s36
    %s53 = sphi 0, %s37
    %s57 = sphi 0, %s57
    %s59 = sphi 0, %s57
    %s60 = sphi 0, %s59
    %s74 = sphi 0, %s60
    %s78 = sphi 0, %s78
    %s80 = sphi 0, %s78
    %s81 = sphi 0, %s80
    %s95 = sphi 0, %s81
    %s103 = sphi 0, %s105
    %s106 = sphi 0, %s103
    %s107 = sphi 0, %s106
    %s123 = sphi 0, %s107
  $region4: #{bert_ext_forward.14} parent=0 // loop_header_branch
    %12 = sbr.rel (%p10) target = $region8
  $region5: #{bert_ext_forward.14} parent=0 // loop_body
    %s14 = ssub.s32 %s9, 1
    %s15 = ssub.s32 %s9, 2
    %s22 = sadd.s32 1, %s17
    %p23 = scmp.ge.s32.totalorder %s22, 1
    %s24 = scalar_select %p23, 0, %s22
    %s25 = sadd.s32 1, %s16
    %s26 = scalar_select %p23, %s25, %s16
    %p27 = scmp.ge.s32.totalorder %s26, 2
    %s28 = scalar_select %p27, 0, %s26
    %s29 = ssub.s32 %s16, %s28
    %s30 = ssub.s32 %s17, %s24
    %s31 = sor.u32 %s29, %s30
    %p32 = scmp.eq.s32.totalorder %s31, 0
    %s34 = sadd.s32 %s33, 1
    %s35 = scalar_select %p32, %s33, %s34
    %p38 = pneg %p32
    %p39 = scmp.eq.s32.totalorder %s9, 1
    %p40 = por %p38, %p39
    %p41 = scmp.ne.s32.totalorder %s33, %s36
    %p42 = scmp.eq.s32.totalorder %s9, 0
    %p43 = por %p41, %p42
    %p44 = scmp.ne.s32.totalorder %s33, %s36
    %p45 = scmp.eq.s32.totalorder %s14, 1
    %p46 = por %p44, %p45
    %p47 = scmp.ne.s32.totalorder %s36, %s37
    %p48 = scmp.eq.s32.totalorder %s14, 0
    %p49 = por %p47, %p48
    %p50 = scmp.ne.s32.totalorder %s36, %s37
    %p51 = scmp.eq.s32.totalorder %s15, 1
    %p52 = por %p50, %p51
    %p54 = scmp.ne.s32.totalorder %s37, %s53
    %p55 = scmp.eq.s32.totalorder %s15, 0
    %p56 = por %p54, %p55
    %s58 = sadd.s32 %s57, 1
    %p61 = scmp.eq.s32.totalorder %s9, 1
    %p62 = scmp.ne.s32.totalorder %s57, %s59
    %p63 = scmp.eq.s32.totalorder %s9, 0
    %p64 = por %p62, %p63
    %p65 = scmp.ne.s32.totalorder %s57, %s59
    %p66 = scmp.eq.s32.totalorder %s14, 1
    %p67 = por %p65, %p66
    %p68 = scmp.ne.s32.totalorder %s59, %s60
    %p69 = scmp.eq.s32.totalorder %s14, 0
    %p70 = por %p68, %p69
    %p71 = scmp.ne.s32.totalorder %s59, %s60
    %p72 = scmp.eq.s32.totalorder %s15, 1
    %p73 = por %p71, %p72
    %p75 = scmp.ne.s32.totalorder %s60, %s74
    %p76 = scmp.eq.s32.totalorder %s15, 0
    %p77 = por %p75, %p76
    %s79 = sadd.s32 %s78, 1
    %p82 = scmp.eq.s32.totalorder %s9, 1
    %p83 = scmp.ne.s32.totalorder %s78, %s80
    %p84 = scmp.eq.s32.totalorder %s9, 0
    %p85 = por %p83, %p84
    %p86 = scmp.ne.s32.totalorder %s78, %s80
    %p87 = scmp.eq.s32.totalorder %s14, 1
    %p88 = por %p86, %p87
    %p89 = scmp.ne.s32.totalorder %s80, %s81
    %p90 = scmp.eq.s32.totalorder %s14, 0
    %p91 = por %p89, %p90
    %p92 = scmp.ne.s32.totalorder %s80, %s81
    %p93 = scmp.eq.s32.totalorder %s15, 1
    %p94 = por %p92, %p93
    %p96 = scmp.ne.s32.totalorder %s81, %s95
    %p97 = scmp.eq.s32.totalorder %s15, 0
    %p98 = por %p96, %p97
    %s99 = ssub.s32 %s16, %s28
    %s100 = ssub.s32 %s17, %s24
    %s101 = sor.u32 %s99, %s100
    %p102 = scmp.eq.s32.totalorder %s101, 0
    %s104 = sadd.s32 %s103, 1
    %s105 = scalar_select %p102, %s103, %s104
    %p108 = pneg %p102
    %p109 = scmp.eq.s32.totalorder %s9, 1
    %p110 = por %p108, %p109
    %p111 = scmp.ne.s32.totalorder %s103, %s106
    %p112 = scmp.eq.s32.totalorder %s9, 0
    %p113 = por %p111, %p112
    %p114 = scmp.ne.s32.totalorder %s103, %s106
    %p115 = scmp.eq.s32.totalorder %s14, 1
    %p116 = por %p114, %p115
    %p117 = scmp.ne.s32.totalorder %s106, %s107
    %p118 = scmp.eq.s32.totalorder %s14, 0
    %p119 = por %p117, %p118
    %p120 = scmp.ne.s32.totalorder %s106, %s107
    %p121 = scmp.eq.s32.totalorder %s15, 1
    %p122 = por %p120, %p121
    %p124 = scmp.ne.s32.totalorder %s107, %s123
    %p125 = scmp.eq.s32.totalorder %s15, 0
    %p126 = por %p124, %p125
    %p127 = scmp.le.s32.totalorder 1, %s9
    %p128 = scmp.lt.s32.totalorder %s9, 3
    %p129 = pnand %p127, %p128
    %p130 = pneg %p129
    // Predicated region
    $region9: #{bert_ext_forward.14} parent=5 // pred_check
      _
    $region10: #{bert_ext_forward.14} parent=5 // pred_check_branch
      %132 = sbr.rel (%p129) target = $region12
    $region11: #{bert_ext_forward.14} parent=5 // pred_region
      %s133 = ssub.s32 %s9, 1
      // Predicated region
      $region13: #{bert_ext_forward.14} parent=11 // pred_check
        %p134 = pneg %p70
      $region14: #{bert_ext_forward.14} parent=11 // pred_check_branch
        %136 = sbr.rel (%p134) target = $region16
      $region15: #{bert_ext_forward.14} parent=11 // pred_region
        _
      $region16: #{bert_ext_forward.14} parent=11 // pred_fallthru
        _
      // Predicated region
      $region17: #{bert_ext_forward.14} parent=11 // pred_check
        %p137 = pneg %p91
      $region18: #{bert_ext_forward.14} parent=11 // pred_check_branch
        %139 = sbr.rel (%p137) target = $region20
      $region19: #{bert_ext_forward.14} parent=11 // pred_region
        _
      $region20: #{bert_ext_forward.14} parent=11 // pred_fallthru
        _
    $region12: #{bert_ext_forward.14} parent=5 // pred_fallthru
      _
    %p140 = scmp.lt.s32.totalorder %s9, 2
    // Predicated region
    $region21: #{bert_ext_forward.14} parent=5 // pred_check
      %p141 = pneg %p140
    $region22: #{bert_ext_forward.14} parent=5 // pred_check_branch
      %143 = sbr.rel (%p141) target = $region24
    $region23: #{bert_ext_forward.14} parent=5 // pred_region
      // Predicated region
      $region25: #{bert_ext_forward.14} parent=23 // pred_check
        %p144 = pneg %p43
      $region26: #{bert_ext_forward.14} parent=23 // pred_check_branch
        %146 = sbr.rel (%p144) target = $region28
      $region27: #{bert_ext_forward.14} parent=23 // pred_region
        %s147 = smul.u32 2, %s17
        %p148 = scmp.lt.s32.totalorder %s16, 1
        %s149 = scalar_select %p148, %s16, 1
        %p150 = scmp.lt.s32.totalorder %s147, 1
        %s151 = scalar_select %p150, %s147, 1
        %s152 = smul.addr %s149, 2
        %s153 = sadd.s32 %s151, %s152
        %s154 = smul.addr %s153, 8
        %s155 = scalar_lea.vmem %s0, %s154
        %s156 = smul.u32 2, %s17
      $region28: #{bert_ext_forward.14} parent=23 // pred_fallthru
        _
    $region24: #{bert_ext_forward.14} parent=5 // pred_fallthru
      _
    %p157 = scmp.le.s32.totalorder 1, %s9
    %p158 = scmp.lt.s32.totalorder %s9, 3
    %p159 = pnand %p157, %p158
    %p160 = pneg %p159
    // Predicated region
    $region29: #{bert_ext_forward.14} parent=5 // pred_check
      _
    $region30: #{bert_ext_forward.14} parent=5 // pred_check_branch
      %162 = sbr.rel (%p159) target = $region32
    $region31: #{bert_ext_forward.14} parent=5 // pred_region
      %s163 = ssub.s32 %s9, 1
      %s164 = smul.u32 2, %s19
      %p165 = scmp.lt.s32.totalorder %s18, 1
      %s166 = scalar_select %p165, %s18, 1
      %p167 = scmp.lt.s32.totalorder %s164, 1
      %s168 = scalar_select %p167, %s164, 1
      %s169 = smul.addr %s166, 2
      %s170 = sadd.s32 %s168, %s169
      %s171 = smul.addr %s170, 8
      %s172 = scalar_lea.vmem %s0, %s171
      %p173 = pneg %p49
      %p174 = pneg %p46
      %p175 = pneg %p70
      %p176 = pneg %p67
      %p177 = pneg %p91
      %p178 = pneg %p88
      %p179 = pneg %p119
      %p180 = pneg %p116
      %s181 = smul.u32 2, %s19
      %p182 = scmp.lt.s32.totalorder %s18, 1
      %s183 = scalar_select %p182, %s18, 1
      %p184 = scmp.lt.s32.totalorder %s181, 1
      %s185 = scalar_select %p184, %s181, 1
      %s186 = smul.addr %s183, 2
      %s187 = sadd.s32 %s185, %s186
      %s188 = smul.addr %s187, 4
      %s189 = scalar_lea.vmem %s3, %s188
      %s190 = smul.u32 2, %s19
      %p191 = scmp.lt.s32.totalorder %s18, 1
      %s192 = scalar_select %p191, %s18, 1
      %p193 = scmp.lt.s32.totalorder %s190, 1
      %s194 = scalar_select %p193, %s190, 1
      %s195 = smul.addr %s192, 2
      %s196 = sadd.s32 %s194, %s195
      %s197 = smul.addr %s196, 8
      %s198 = scalar_lea.vmem %s0, %s197
      %s199 = smul.u32 2, %s19
      %s200 = smul.u32 2, %s19
      %p201 = scmp.lt.s32.totalorder %s18, 1
      %s202 = scalar_select %p201, %s18, 1
      %p203 = scmp.lt.s32.totalorder %s200, 1
      %s204 = scalar_select %p203, %s200, 1
      %s205 = smul.addr %s202, 2
      %s206 = sadd.s32 %s204, %s205
      %s207 = smul.addr %s206, 4
      %s208 = scalar_lea.vmem %s3, %s207
      %s209 = smul.u32 2, %s19
      %v210 = vld [vmem:[%s198] sm:$0xff]
      %v211 = vld [vmem:[%s198 + $0x8] sm:$0xff]
      %v212 = vld [vmem:[%s1] sm:$0x1]
      %v213 = vld [vmem:[%s2] sm:$0x1]
      %vm214 = vcmask 261120
      %v215 = vsel %vm214, %v210, 0.0
      %216 = vadd.xlane.f32.xlu0 %v215
      %v217 = vpop.xlane.xlu0 %216
      %v218 = vsel %vm214, %v211, 0.0
      %219 = vadd.xlane.f32.xlu0 %v218
      %v220 = vpop.xlane.xlu0 %219
      %v221 = vrcp.pop 32.0
      %v222 = vmul.f32 32.0, %v221
      %v223 = vsub.f32 1.0, %v222
      %v224 = vmul.f32 %v221, %v223
      %v225 = vadd.f32 %v221, %v224
      %vm226 = vweird.f32 %v221
      %v227 = vsel %vm226, %v221, %v225
      %v228 = vmul.f32 %v217, %v227
      %v229 = vmul.f32 %v220, %v227
      %v230 = vsub.f32 %v210, %v228
      %v231 = vsub.f32 %v211, %v229
      %v232 = vmul.f32 %v230, %v230
      %v233 = vmul.f32 %v231, %v231
      %v234 = vsel %vm214, %v232, 0.0
      %235 = vadd.xlane.f32.xlu0 %v234
      %v236 = vpop.xlane.xlu0 %235
      %v237 = vsel %vm214, %v233, 0.0
      %238 = vadd.xlane.f32.xlu0 %v237
      %v239 = vpop.xlane.xlu0 %238
      %v240 = vmul.f32 %v236, %v227
      %v241 = vmul.f32 %v239, %v227
      %v242 = vadd.f32 %v240, 1e-12
      %v243 = vadd.f32 %v241, 1e-12
      %v244 = vrsqrt.pop %v242
      %v245 = vmul.f32 %v244, %v242
      %v246 = vmul.f32 %v245, %v244
      %v247 = vmul.f32 0.5, %v246
      %v248 = vsub.f32 1.5, %v247
      %v249 = vmul.f32 %v244, %v248
      %vm250 = vweird.f32 %v242
      %vm251 = vweird.f32 %v244
      %vm252 = vmor %vm250, %vm251
      %v253 = vsel %vm252, %v244, %v249
      %v254 = vrsqrt.pop %v243
      %v255 = vmul.f32 %v254, %v243
      %v256 = vmul.f32 %v255, %v254
      %v257 = vmul.f32 0.5, %v256
      %v258 = vsub.f32 1.5, %v257
      %v259 = vmul.f32 %v254, %v258
      %vm260 = vweird.f32 %v243
      %vm261 = vweird.f32 %v254
      %vm262 = vmor %vm260, %vm261
      %v263 = vsel %vm262, %v254, %v259
      %v264 = vmul.f32 %v230, %v253
      %v265 = vmul.f32 %v231, %v263
      %v267 = vperm.slane %v212, 0
      %v269 = vmul.f32 %v264, %v267
      %v270 = vmul.f32 %v265, %v267
      %v272 = vperm.slane %v213, 0
      %v274 = vadd.f32 %v269, %v272
      %v275 = vadd.f32 %v270, %v272
      %v276 = vpack.c.bf16 %v274, %v274
      %v277 = vpack.c.bf16 %v275, %v275
      %vm278 = vcmask 257024
      %279 = vst.msk [vmem:[%s208] sm:$0xf] %vm278, %v276
      %280 = vst.msk [vmem:[%s208 + $0x4] sm:$0xf] %vm278, %v277
      %s281 = smul.u32 2, %s19
      %p282 = scmp.lt.s32.totalorder %s18, 1
      %s283 = scalar_select %p282, %s18, 1
      %p284 = scmp.lt.s32.totalorder %s281, 1
      %s285 = scalar_select %p284, %s281, 1
      %s286 = smul.addr %s283, 2
      %s287 = sadd.s32 %s285, %s286
      %s288 = smul.addr %s287, 4
      %s289 = scalar_lea.vmem %s3, %s288
      // Predicated region
      $region33: #{bert_ext_forward.14} parent=31 // pred_check
        %p290 = pneg %p116
      $region34: #{bert_ext_forward.14} parent=31 // pred_check_branch
        %292 = sbr.rel (%p290) target = $region36
      $region35: #{bert_ext_forward.14} parent=31 // pred_region
        %s293 = smul.u32 2, %s19
      $region36: #{bert_ext_forward.14} parent=31 // pred_fallthru
        _
    $region32: #{bert_ext_forward.14} parent=5 // pred_fallthru
      _
    %p294 = scmp.le.s32.totalorder 2, %s9
    // Predicated region
    $region37: #{bert_ext_forward.14} parent=5 // pred_check
      %p295 = pneg %p294
    $region38: #{bert_ext_forward.14} parent=5 // pred_check_branch
      %297 = sbr.rel (%p295) target = $region40
    $region39: #{bert_ext_forward.14} parent=5 // pred_region
      %s298 = ssub.s32 %s9, 2
      // Predicated region
      $region41: #{bert_ext_forward.14} parent=39 // pred_check
        %p299 = pneg %p122
      $region42: #{bert_ext_forward.14} parent=39 // pred_check_branch
        %301 = sbr.rel (%p299) target = $region44
      $region43: #{bert_ext_forward.14} parent=39 // pred_region
        %s302 = smul.u32 2, %s21
        %p303 = scmp.lt.s32.totalorder %s20, 1
        %s304 = scalar_select %p303, %s20, 1
        %p305 = scmp.lt.s32.totalorder %s302, 1
        %s306 = scalar_select %p305, %s302, 1
        %s307 = smul.addr %s304, 2
        %s308 = sadd.s32 %s306, %s307
        %s309 = smul.addr %s308, 4
        %s310 = scalar_lea.vmem %s3, %s309
      $region44: #{bert_ext_forward.14} parent=39 // pred_fallthru
        _
    $region40: #{bert_ext_forward.14} parent=5 // pred_fallthru
      _
  $region6: #{bert_ext_forward.14} parent=0 // loop_footer
    %s13 = sadd.s32 1, %s9
  $region7: #{bert_ext_forward.14} parent=0 // loop_footer_branch
    %8 = sbr.rel target = $region3
  $region8: #{bert_ext_forward.14} parent=0 // loop_exit
    _

// kernel: bert_ext_forward.16
$region0: #{bert_ext_forward.16}
  #allocation0 [shape = 'u32[]', space=smem, size = 0x4, offset = 0x4, fixed_abs, tag = 'smem constant byte address 0x4 - core index']
  #allocation1 [shape = 'u32[72,128]{1,0:T(1,128)}', space=vmem, size = 0x9000, scoped, tag = 'internal scratch']
  %s0 = inlined_call_operand.vmem [shape: bf16[2,16,96], index: 0, kind: input, shape index: {}]
  %s1 = inlined_call_operand.vmem [shape: f32[2,1,16], index: 1, kind: input, shape index: {}]
  %s2 = inlined_call_operand.vmem [shape: bf16[2,16,32], index: 2, kind: output, shape index: {}]
  %s3 = sld [smem:[#allocation0]]
  $region41: #{bert_ext_forward.16} parent=0
    _
  %s5 = ssub.s32 1, %s3
  %s6 = scalar_select 0, %s5, %s3
  loop: start=0, step=1, limit=4
  $region2: #{bert_ext_forward.16} parent=0 // loop_pre_header
    _
  $region3: #{bert_ext_forward.16} parent=0 // loop_header
    %s8 = sphi 0, %s12
    %p9 = scmp.ge.s32.totalorder %s8, 4
    %s18 = sphi 0, %s20
    %s21 = sphi 0, %s18
    %s22 = sphi 0, %s21
    %s38 = sphi 0, %s22
    %s44 = sphi 0, %s46
    %s47 = sphi 0, %s44
    %s48 = sphi 0, %s47
    %s64 = sphi 0, %s48
    %s70 = sphi 0, %s72
    %s73 = sphi 0, %s70
    %s74 = sphi 0, %s73
    %s90 = sphi 0, %s74
  $region4: #{bert_ext_forward.16} parent=0 // loop_header_branch
    %11 = sbr.rel (%p9) target = $region8
  $region5: #{bert_ext_forward.16} parent=0 // loop_body
    %s13 = ssub.s32 %s8, 1
    %s14 = ssub.s32 %s8, 2
    %s15 = sadd.s32 %s8, 1
    %s16 = ssub.s32 %s8, %s15
    %p17 = scmp.eq.s32.totalorder %s16, 0
    %s19 = sadd.s32 %s18, 1
    %s20 = scalar_select %p17, %s18, %s19
    %p23 = pneg %p17
    %p24 = scmp.eq.s32.totalorder %s8, 1
    %p25 = por %p23, %p24
    %p26 = scmp.ne.s32.totalorder %s18, %s21
    %p27 = scmp.eq.s32.totalorder %s8, 0
    %p28 = por %p26, %p27
    %p29 = scmp.ne.s32.totalorder %s18, %s21
    %p30 = scmp.eq.s32.totalorder %s13, 1
    %p31 = por %p29, %p30
    %p32 = scmp.ne.s32.totalorder %s21, %s22
    %p33 = scmp.eq.s32.totalorder %s13, 0
    %p34 = por %p32, %p33
    %p35 = scmp.ne.s32.totalorder %s21, %s22
    %p36 = scmp.eq.s32.totalorder %s14, 1
    %p37 = por %p35, %p36
    %p39 = scmp.ne.s32.totalorder %s22, %s38
    %p40 = scmp.eq.s32.totalorder %s14, 0
    %p41 = por %p39, %p40
    %s42 = ssub.s32 %s8, %s15
    %p43 = scmp.eq.s32.totalorder %s42, 0
    %s45 = sadd.s32 %s44, 1
    %s46 = scalar_select %p43, %s44, %s45
    %p49 = pneg %p43
    %p50 = scmp.eq.s32.totalorder %s8, 1
    %p51 = por %p49, %p50
    %p52 = scmp.ne.s32.totalorder %s44, %s47
    %p53 = scmp.eq.s32.totalorder %s8, 0
    %p54 = por %p52, %p53
    %p55 = scmp.ne.s32.totalorder %s44, %s47
    %p56 = scmp.eq.s32.totalorder %s13, 1
    %p57 = por %p55, %p56
    %p58 = scmp.ne.s32.totalorder %s47, %s48
    %p59 = scmp.eq.s32.totalorder %s13, 0
    %p60 = por %p58, %p59
    %p61 = scmp.ne.s32.totalorder %s47, %s48
    %p62 = scmp.eq.s32.totalorder %s14, 1
    %p63 = por %p61, %p62
    %p65 = scmp.ne.s32.totalorder %s48, %s64
    %p66 = scmp.eq.s32.totalorder %s14, 0
    %p67 = por %p65, %p66
    %s68 = ssub.s32 %s8, %s15
    %p69 = scmp.eq.s32.totalorder %s68, 0
    %s71 = sadd.s32 %s70, 1
    %s72 = scalar_select %p69, %s70, %s71
    %p75 = pneg %p69
    %p76 = scmp.eq.s32.totalorder %s8, 1
    %p77 = por %p75, %p76
    %p78 = scmp.ne.s32.totalorder %s70, %s73
    %p79 = scmp.eq.s32.totalorder %s8, 0
    %p80 = por %p78, %p79
    %p81 = scmp.ne.s32.totalorder %s70, %s73
    %p82 = scmp.eq.s32.totalorder %s13, 1
    %p83 = por %p81, %p82
    %p84 = scmp.ne.s32.totalorder %s73, %s74
    %p85 = scmp.eq.s32.totalorder %s13, 0
    %p86 = por %p84, %p85
    %p87 = scmp.ne.s32.totalorder %s73, %s74
    %p88 = scmp.eq.s32.totalorder %s14, 1
    %p89 = por %p87, %p88
    %p91 = scmp.ne.s32.totalorder %s74, %s90
    %p92 = scmp.eq.s32.totalorder %s14, 0
    %p93 = por %p91, %p92
    %p94 = scmp.le.s32.totalorder 1, %s8
    %p95 = scmp.lt.s32.totalorder %s8, 3
    %p96 = pnand %p94, %p95
    %p97 = pneg %p96
    // Predicated region
    $region9: #{bert_ext_forward.16} parent=5 // pred_check
      _
    $region10: #{bert_ext_forward.16} parent=5 // pred_check_branch
      %99 = sbr.rel (%p96) target = $region12
    $region11: #{bert_ext_forward.16} parent=5 // pred_region
      %s100 = ssub.s32 %s8, 1
    $region12: #{bert_ext_forward.16} parent=5 // pred_fallthru
      _
    %p101 = scmp.lt.s32.totalorder %s8, 2
    // Predicated region
    $region13: #{bert_ext_forward.16} parent=5 // pred_check
      %p102 = pneg %p101
    $region14: #{bert_ext_forward.16} parent=5 // pred_check_branch
      %104 = sbr.rel (%p102) target = $region16
    $region15: #{bert_ext_forward.16} parent=5 // pred_region
      // Predicated region
      $region17: #{bert_ext_forward.16} parent=15 // pred_check
        %p105 = pneg %p28
      $region18: #{bert_ext_forward.16} parent=15 // pred_check_branch
        %107 = sbr.rel (%p105) target = $region20
      $region19: #{bert_ext_forward.16} parent=15 // pred_region
        %p108 = scmp.lt.s32.totalorder %s8, 1
        %s109 = scalar_select %p108, %s8, 1
        %s110 = smul.addr %s109, 2
        %s111 = smul.addr %s110, 4
        %s112 = scalar_lea.vmem %s0, %s111
      $region20: #{bert_ext_forward.16} parent=15 // pred_fallthru
        _
      // Predicated region
      $region21: #{bert_ext_forward.16} parent=15 // pred_check
        %p113 = pneg %p54
      $region22: #{bert_ext_forward.16} parent=15 // pred_check_branch
        %115 = sbr.rel (%p113) target = $region24
      $region23: #{bert_ext_forward.16} parent=15 // pred_region
        %p116 = scmp.lt.s32.totalorder %s8, 1
        %s117 = scalar_select %p116, %s8, 1
        %s118 = scalar_lea.vmem %s1, %s117
      $region24: #{bert_ext_forward.16} parent=15 // pred_fallthru
        _
    $region16: #{bert_ext_forward.16} parent=5 // pred_fallthru
      _
    %p119 = scmp.le.s32.totalorder 1, %s8
    %p120 = scmp.lt.s32.totalorder %s8, 3
    %p121 = pnand %p119, %p120
    %p122 = pneg %p121
    // Predicated region
    $region25: #{bert_ext_forward.16} parent=5 // pred_check
      _
    $region26: #{bert_ext_forward.16} parent=5 // pred_check_branch
      %124 = sbr.rel (%p121) target = $region28
    $region27: #{bert_ext_forward.16} parent=5 // pred_region
      %s125 = ssub.s32 %s8, 1
      %p126 = scmp.lt.s32.totalorder %s13, 1
      %s127 = scalar_select %p126, %s13, 1
      %s128 = smul.addr %s127, 2
      %s129 = smul.addr %s128, 4
      %s130 = scalar_lea.vmem %s0, %s129
      %p131 = pneg %p34
      %p132 = pneg %p31
      %p133 = scmp.lt.s32.totalorder %s13, 1
      %s134 = scalar_select %p133, %s13, 1
      %s135 = scalar_lea.vmem %s1, %s134
      %p136 = pneg %p60
      %p137 = pneg %p57
      %p138 = pneg %p86
      %p139 = pneg %p83
      %p140 = scmp.lt.s32.totalorder %s13, 1
      %s141 = scalar_select %p140, %s13, 1
      %s142 = smul.addr %s141, 2
      %s143 = smul.addr %s142, 4
      %s144 = scalar_lea.vmem %s2, %s143
      %p145 = scmp.lt.s32.totalorder %s13, 1
      %s146 = scalar_select %p145, %s13, 1
      %s147 = smul.addr %s146, 2
      %s148 = smul.addr %s147, 4
      %s149 = scalar_lea.vmem %s0, %s148
      %p150 = scmp.lt.s32.totalorder %s13, 1
      %s151 = scalar_select %p150, %s13, 1
      %s152 = scalar_lea.vmem %s1, %s151
      %p153 = scmp.lt.s32.totalorder %s13, 1
      %s154 = scalar_select %p153, %s13, 1
      %s155 = smul.addr %s154, 2
      %s156 = smul.addr %s155, 4
      %s157 = scalar_lea.vmem %s2, %s156
      %v159 = vld [vmem:[%s152] sm:$0x1]
      %v160 = vld [vmem:[%s149] sm:$0xf]
      %v161 = vld [vmem:[%s149 + $0x4] sm:$0xf]
      %v163 = vperm.slane %v159, 0
      %v167 = vunpack.c.l.b16 %v160
      %v168 = vunpack.c.l.b16 %v161
      %v169 = vpack.c.b16 %v168, %v167
      %170 = vrot.lane.b32.xlu0 %v169, 96
      %v171 = vpop.permute.xlu0 %170
      %vm172 = vcmask 130048
      %v174 = vsel %vm172, %v169, 0
      %v177 = vsel %vm172, %v171, 0
      %179 = vmatpush.bf16.xpose.msra.mxu0 0
      %180 = vmatpush.bf16.xpose.msra.mxu0 0
      %181 = vmatpush.bf16.xpose.msra.mxu0 0
      %182 = vmatpush.bf16.xpose.msra.mxu0 0
      %183 = vmatpush.bf16.xpose.msra.mxu0 0
      %184 = vmatpush.bf16.xpose.msra.mxu0 0
      %185 = vmatpush.bf16.xpose.msra.mxu0 0
      %186 = vmatpush.bf16.xpose.msra.mxu0 %v177
      %187 = vmatmul.bf16.gmra.mxu0 %v174
      %v188 = vpop.f32.mrf.mxu0
      %v189 = vadd.f32 %v163, %v188
      %v190 = vpop.f32.mrf.mxu0
      %v191 = vadd.f32 %v163, %v190
      %192 = vdwg.mxu0
      %v193 = vsel %vm172, %v189, -inf
      %194 = vmax.xlane.f32.xlu0 %v193
      %v195 = vpop.xlane.xlu0 %194
      %v196 = vsel %vm172, %v191, -inf
      %197 = vmax.xlane.f32.xlu0 %v196
      %v198 = vpop.xlane.xlu0 %197
      %v199 = vsub.f32 %v189, %v195
      %v200 = vsub.f32 %v191, %v198
      %v201 = vmul.f32 %v199, 1.442695
      %v202 = vpow.pop %v201
      %v203 = vmul.f32 %v200, 1.442695
      %v204 = vpow.pop %v203
      %v205 = vsel %vm172, %v202, 0.0
      %206 = vadd.xlane.f32.xlu0 %v205
      %v207 = vpop.xlane.xlu0 %206
      %v208 = vsel %vm172, %v204, 0.0
      %209 = vadd.xlane.f32.xlu0 %v208
      %v210 = vpop.xlane.xlu0 %209
      %v211 = vrcp.pop %v207
      %v212 = vrcp.pop %v210
      %v213 = vmul.f32 %v202, %v211
      %v214 = vmul.f32 %v204, %v212
      %v215 = vpack.c.bf16 %v214, %v213
      %216 = vrot.lane.b32.xlu0 %v169, 64
      %v217 = vpop.permute.xlu0 %216
      %v220 = vsel %vm172, %v215, 0
      %222 = vmatpush.bf16.msra.mxu0 0
      %223 = vmatpush.bf16.msra.mxu0 0
      %224 = vmatpush.bf16.msra.mxu0 0
      %225 = vmatpush.bf16.msra.mxu0 0
      %226 = vmatpush.bf16.msra.mxu0 0
      %227 = vmatpush.bf16.msra.mxu0 0
      %228 = vmatpush.bf16.msra.mxu0 0
      %229 = vmatpush.bf16.msra.mxu0 %v217
      %230 = vmatmul.bf16.gmra.mxu0 %v220
      %v231 = vpop.f32.mrf.mxu0
      %v232 = vadd.f32 0.0, %v231
      %v233 = vpop.f32.mrf.mxu0
      %v234 = vadd.f32 0.0, %v233
      %235 = vdwg.mxu0
      %v236 = vpack.c.bf16 %v232, %v232
      %v237 = vpack.c.bf16 %v234, %v234
      %vm238 = vcmask 125952
      %239 = vst.msk [vmem:[%s157] sm:$0xf] %vm238, %v236
      %240 = vst.msk [vmem:[%s157 + $0x4] sm:$0xf] %vm238, %v237
      %v241 = vld [vmem:[%s149] sm:$0xf]
      %v242 = vld [vmem:[%s149 + $0x4] sm:$0xf]
      %v245 = vunpack.c.l.b16 %v241
      %v246 = vunpack.c.l.b16 %v242
      %v247 = vpack.c.b16 %v246, %v245
      %248 = vrot.lane.b32.xlu0 %v247, 112
      %v249 = vpop.permute.xlu0 %248
      %250 = vrot.lane.b32.xlu0 %v247, 80
      %v251 = vpop.permute.xlu0 %250
      %v253 = vsel %vm172, %v249, 0
      %v256 = vsel %vm172, %v251, 0
      %258 = vmatpush.bf16.xpose.msra.mxu0 0
      %259 = vmatpush.bf16.xpose.msra.mxu0 0
      %260 = vmatpush.bf16.xpose.msra.mxu0 0
      %261 = vmatpush.bf16.xpose.msra.mxu0 0
      %262 = vmatpush.bf16.xpose.msra.mxu0 0
      %263 = vmatpush.bf16.xpose.msra.mxu0 0
      %264 = vmatpush.bf16.xpose.msra.mxu0 0
      %265 = vmatpush.bf16.xpose.msra.mxu0 %v256
      %266 = vmatmul.bf16.gmra.mxu0 %v253
      %v267 = vpop.f32.mrf.mxu0
      %v268 = vadd.f32 %v163, %v267
      %v269 = vpop.f32.mrf.mxu0
      %v270 = vadd.f32 %v163, %v269
      %271 = vdwg.mxu0
      %v272 = vsel %vm172, %v268, -inf
      %273 = vmax.xlane.f32.xlu0 %v272
      %v274 = vpop.xlane.xlu0 %273
      %v275 = vsel %vm172, %v270, -inf
      %276 = vmax.xlane.f32.xlu0 %v275
      %v277 = vpop.xlane.xlu0 %276
      %v278 = vsub.f32 %v268, %v274
      %v279 = vsub.f32 %v270, %v277
      %v280 = vmul.f32 %v278, 1.442695
      %v281 = vpow.pop %v280
      %v282 = vmul.f32 %v279, 1.442695
      %v283 = vpow.pop %v282
      %v284 = vsel %vm172, %v281, 0.0
      %285 = vadd.xlane.f32.xlu0 %v284
      %v286 = vpop.xlane.xlu0 %285
      %v287 = vsel %vm172, %v283, 0.0
      %288 = vadd.xlane.f32.xlu0 %v287
      %v289 = vpop.xlane.xlu0 %288
      %v290 = vrcp.pop %v286
      %v291 = vrcp.pop %v289
      %v292 = vmul.f32 %v281, %v290
      %v293 = vmul.f32 %v283, %v291
      %v294 = vpack.c.bf16 %v293, %v292
      %295 = vrot.lane.b32.xlu0 %v247, 48
      %v296 = vpop.permute.xlu0 %295
      %v299 = vsel %vm172, %v294, 0
      %301 = vmatpush.bf16.msra.mxu0 0
      %302 = vmatpush.bf16.msra.mxu0 0
      %303 = vmatpush.bf16.msra.mxu0 0
      %304 = vmatpush.bf16.msra.mxu0 0
      %305 = vmatpush.bf16.msra.mxu0 0
      %306 = vmatpush.bf16.msra.mxu0 0
      %307 = vmatpush.bf16.msra.mxu0 0
      %308 = vmatpush.bf16.msra.mxu0 %v296
      %309 = vmatmul.bf16.gmra.mxu0 %v299
      %v310 = vpop.f32.mrf.mxu0
      %v311 = vadd.f32 0.0, %v310
      %v312 = vpop.f32.mrf.mxu0
      %v313 = vadd.f32 0.0, %v312
      %314 = vdwg.mxu0
      %v315 = vpack.c.bf16 %v311, %v311
      %v316 = vpack.c.bf16 %v313, %v313
      %319 = vrot.lane.b32.xlu0 %v315, 16
      %v320 = vpop.permute.xlu0 %319
      %321 = vrot.lane.b32.xlu0 %v316, 16
      %v322 = vpop.permute.xlu0 %321
      %vm325 = vcmask 257152
      %326 = vst.msk [vmem:[%s157] sm:$0xf] %vm325, %v320
      %327 = vst.msk [vmem:[%s157 + $0x4] sm:$0xf] %vm325, %v322
      %p328 = scmp.lt.s32.totalorder %s13, 1
      %s329 = scalar_select %p328, %s13, 1
      %s330 = smul.addr %s329, 2
      %s331 = smul.addr %s330, 4
      %s332 = scalar_lea.vmem %s2, %s331
      // Predicated region
      $region29: #{bert_ext_forward.16} parent=27 // pred_check
        %p333 = pneg %p83
      $region30: #{bert_ext_forward.16} parent=27 // pred_check_branch
        %335 = sbr.rel (%p333) target = $region32
      $region31: #{bert_ext_forward.16} parent=27 // pred_region
        _
      $region32: #{bert_ext_forward.16} parent=27 // pred_fallthru
        _
    $region28: #{bert_ext_forward.16} parent=5 // pred_fallthru
      _
    %p336 = scmp.le.s32.totalorder 2, %s8
    // Predicated region
    $region33: #{bert_ext_forward.16} parent=5 // pred_check
      %p337 = pneg %p336
    $region34: #{bert_ext_forward.16} parent=5 // pred_check_branch
      %339 = sbr.rel (%p337) target = $region36
    $region35: #{bert_ext_forward.16} parent=5 // pred_region
      %s340 = ssub.s32 %s8, 2
      // Predicated region
      $region37: #{bert_ext_forward.16} parent=35 // pred_check
        %p341 = pneg %p89
      $region38: #{bert_ext_forward.16} parent=35 // pred_check_branch
        %343 = sbr.rel (%p341) target = $region40
      $region39: #{bert_ext_forward.16} parent=35 // pred_region
        %p344 = scmp.lt.s32.totalorder %s14, 1
        %s345 = scalar_select %p344, %s14, 1
        %s346 = smul.addr %s345, 2
        %s347 = smul.addr %s346, 4
        %s348 = scalar_lea.vmem %s2, %s347
      $region40: #{bert_ext_forward.16} parent=35 // pred_fallthru
        _
    $region36: #{bert_ext_forward.16} parent=5 // pred_fallthru
      _
  $region6: #{bert_ext_forward.16} parent=0 // loop_footer
    %s12 = sadd.s32 1, %s8
  $region7: #{bert_ext_forward.16} parent=0 // loop_footer_branch
    %7 = sbr.rel target = $region3
  $region8: #{bert_ext_forward.16} parent=0 // loop_exit
    _

// kernel: bert_ext_forward.17
$region0: #{bert_ext_forward.17}
  #allocation0 [shape = 'u32[]', space=smem, size = 0x4, offset = 0x4, fixed_abs, tag = 'smem constant byte address 0x4 - core index']
  #allocation1 [shape = 'u32[72,128]{1,0:T(1,128)}', space=vmem, size = 0x9000, scoped, tag = 'internal scratch']
  %s0 = inlined_call_operand.vmem [shape: bf16[2,16,32], index: 0, kind: input, shape index: {}]
  %s1 = inlined_call_operand.vmem [shape: bf16[2,16,32], index: 1, kind: input, shape index: {}]
  %s2 = inlined_call_operand.vmem [shape: bf16[32,32], index: 2, kind: input, shape index: {}]
  %s3 = inlined_call_operand.vmem [shape: f32[1,32], index: 3, kind: input, shape index: {}]
  %s4 = inlined_call_operand.vmem [shape: f32[1,32], index: 4, kind: input, shape index: {}]
  %s5 = inlined_call_operand.vmem [shape: f32[1,32], index: 5, kind: input, shape index: {}]
  %s6 = inlined_call_operand.vmem [shape: bf16[32,64], index: 6, kind: input, shape index: {}]
  %s7 = inlined_call_operand.vmem [shape: f32[1,64], index: 7, kind: input, shape index: {}]
  %s8 = inlined_call_operand.vmem [shape: bf16[64,32], index: 8, kind: input, shape index: {}]
  %s9 = inlined_call_operand.vmem [shape: f32[1,32], index: 9, kind: input, shape index: {}]
  %s10 = inlined_call_operand.vmem [shape: f32[1,32], index: 10, kind: input, shape index: {}]
  %s11 = inlined_call_operand.vmem [shape: f32[1,32], index: 11, kind: input, shape index: {}]
  %s12 = inlined_call_operand.vmem [shape: bf16[2,16,32], index: 12, kind: output, shape index: {}]
  %s13 = sld [smem:[#allocation0]]
  $region81: #{bert_ext_forward.17} parent=0
    _
  %s15 = ssub.s32 1, %s13
  %s16 = scalar_select 0, %s15, %s13
  loop: start=0, step=1, limit=4
  $region2: #{bert_ext_forward.17} parent=0 // loop_pre_header
    _
  $region3: #{bert_ext_forward.17} parent=0 // loop_header
    %s18 = sphi 0, %s22
    %p19 = scmp.ge.s32.totalorder %s18, 4
    %s25 = sphi 0, %s37
    %s26 = sphi 0, %s33
    %s27 = sphi 0, %s25
    %s28 = sphi 0, %s26
    %s29 = sphi 0, %s27
    %s30 = sphi 0, %s28
    %s42 = sphi 0, %s44
    %s45 = sphi 0, %s42
    %s46 = sphi 0, %s45
    %s62 = sphi 0, %s46
    %s70 = sphi 0, %s72
    %s73 = sphi 0, %s70
    %s74 = sphi 0, %s73
    %s90 = sphi 0, %s74
    %s94 = sphi 0, %s94
    %s96 = sphi 0, %s94
    %s97 = sphi 0, %s96
    %s111 = sphi 0, %s97
    %s115 = sphi 0, %s115
    %s117 = sphi 0, %s115
    %s118 = sphi 0, %s117
    %s132 = sphi 0, %s118
    %s136 = sphi 0, %s136
    %s138 = sphi 0, %s136
    %s139 = sphi 0, %s138
    %s153 = sphi 0, %s139
    %s157 = sphi 0, %s157
    %s159 = sphi 0, %s157
    %s160 = sphi 0, %s159
    %s174 = sphi 0, %s160
    %s178 = sphi 0, %s178
    %s180 = sphi 0, %s178
    %s181 = sphi 0, %s180
    %s195 = sphi 0, %s181
    %s199 = sphi 0, %s199
    %s201 = sphi 0, %s199
    %s202 = sphi 0, %s201
    %s216 = sphi 0, %s202
    %s220 = sphi 0, %s220
    %s222 = sphi 0, %s220
    %s223 = sphi 0, %s222
    %s237 = sphi 0, %s223
    %s241 = sphi 0, %s241
    %s243 = sphi 0, %s241
    %s244 = sphi 0, %s243
    %s258 = sphi 0, %s244
    %s262 = sphi 0, %s262
    %s264 = sphi 0, %s262
    %s265 = sphi 0, %s264
    %s279 = sphi 0, %s265
    %s283 = sphi 0, %s283
    %s285 = sphi 0, %s283
    %s286 = sphi 0, %s285
    %s300 = sphi 0, %s286
    %s308 = sphi 0, %s310
    %s311 = sphi 0, %s308
    %s312 = sphi 0, %s311
    %s328 = sphi 0, %s312
  $region4: #{bert_ext_forward.17} parent=0 // loop_header_branch
    %21 = sbr.rel (%p19) target = $region8
  $region5: #{bert_ext_forward.17} parent=0 // loop_body
    %s23 = ssub.s32 %s18, 1
    %s24 = ssub.s32 %s18, 2
    %s31 = sadd.s32 1, %s26
    %p32 = scmp.ge.s32.totalorder %s31, 1
    %s33 = scalar_select %p32, 0, %s31
    %s34 = sadd.s32 1, %s25
    %s35 = scalar_select %p32, %s34, %s25
    %p36 = scmp.ge.s32.totalorder %s35, 2
    %s37 = scalar_select %p36, 0, %s35
    %s38 = ssub.s32 %s25, %s37
    %s39 = ssub.s32 %s26, %s33
    %s40 = sor.u32 %s38, %s39
    %p41 = scmp.eq.s32.totalorder %s40, 0
    %s43 = sadd.s32 %s42, 1
    %s44 = scalar_select %p41, %s42, %s43
    %p47 = pneg %p41
    %p48 = scmp.eq.s32.totalorder %s18, 1
    %p49 = por %p47, %p48
    %p50 = scmp.ne.s32.totalorder %s42, %s45
    %p51 = scmp.eq.s32.totalorder %s18, 0
    %p52 = por %p50, %p51
    %p53 = scmp.ne.s32.totalorder %s42, %s45
    %p54 = scmp.eq.s32.totalorder %s23, 1
    %p55 = por %p53, %p54
    %p56 = scmp.ne.s32.totalorder %s45, %s46
    %p57 = scmp.eq.s32.totalorder %s23, 0
    %p58 = por %p56, %p57
    %p59 = scmp.ne.s32.totalorder %s45, %s46
    %p60 = scmp.eq.s32.totalorder %s24, 1
    %p61 = por %p59, %p60
    %p63 = scmp.ne.s32.totalorder %s46, %s62
    %p64 = scmp.eq.s32.totalorder %s24, 0
    %p65 = por %p63, %p64
    %s66 = ssub.s32 %s25, %s37
    %s67 = ssub.s32 %s26, %s33
    %s68 = sor.u32 %s66, %s67
    %p69 = scmp.eq.s32.totalorder %s68, 0
    %s71 = sadd.s32 %s70, 1
    %s72 = scalar_select %p69, %s70, %s71
    %p75 = pneg %p69
    %p76 = scmp.eq.s32.totalorder %s18, 1
    %p77 = por %p75, %p76
    %p78 = scmp.ne.s32.totalorder %s70, %s73
    %p79 = scmp.eq.s32.totalorder %s18, 0
    %p80 = por %p78, %p79
    %p81 = scmp.ne.s32.totalorder %s70, %s73
    %p82 = scmp.eq.s32.totalorder %s23, 1
    %p83 = por %p81, %p82
    %p84 = scmp.ne.s32.totalorder %s73, %s74
    %p85 = scmp.eq.s32.totalorder %s23, 0
    %p86 = por %p84, %p85
    %p87 = scmp.ne.s32.totalorder %s73, %s74
    %p88 = scmp.eq.s32.totalorder %s24, 1
    %p89 = por %p87, %p88
    %p91 = scmp.ne.s32.totalorder %s74, %s90
    %p92 = scmp.eq.s32.totalorder %s24, 0
    %p93 = por %p91, %p92
    %s95 = sadd.s32 %s94, 1
    %p98 = scmp.eq.s32.totalorder %s18, 1
    %p99 = scmp.ne.s32.totalorder %s94, %s96
    %p100 = scmp.eq.s32.totalorder %s18, 0
    %p101 = por %p99, %p100
    %p102 = scmp.ne.s32.totalorder %s94, %s96
    %p103 = scmp.eq.s32.totalorder %s23, 1
    %p104 = por %p102, %p103
    %p105 = scmp.ne.s32.totalorder %s96, %s97
    %p106 = scmp.eq.s32.totalorder %s23, 0
    %p107 = por %p105, %p106
    %p108 = scmp.ne.s32.totalorder %s96, %s97
    %p109 = scmp.eq.s32.totalorder %s24, 1
    %p110 = por %p108, %p109
    %p112 = scmp.ne.s32.totalorder %s97, %s111
    %p113 = scmp.eq.s32.totalorder %s24, 0
    %p114 = por %p112, %p113
    %s116 = sadd.s32 %s115, 1
    %p119 = scmp.eq.s32.totalorder %s18, 1
    %p120 = scmp.ne.s32.totalorder %s115, %s117
    %p121 = scmp.eq.s32.totalorder %s18, 0
    %p122 = por %p120, %p121
    %p123 = scmp.ne.s32.totalorder %s115, %s117
    %p124 = scmp.eq.s32.totalorder %s23, 1
    %p125 = por %p123, %p124
    %p126 = scmp.ne.s32.totalorder %s117, %s118
    %p127 = scmp.eq.s32.totalorder %s23, 0
    %p128 = por %p126, %p127
    %p129 = scmp.ne.s32.totalorder %s117, %s118
    %p130 = scmp.eq.s32.totalorder %s24, 1
    %p131 = por %p129, %p130
    %p133 = scmp.ne.s32.totalorder %s118, %s132
    %p134 = scmp.eq.s32.totalorder %s24, 0
    %p135 = por %p133, %p134
    %s137 = sadd.s32 %s136, 1
    %p140 = scmp.eq.s32.totalorder %s18, 1
    %p141 = scmp.ne.s32.totalorder %s136, %s138
    %p142 = scmp.eq.s32.totalorder %s18, 0
    %p143 = por %p141, %p142
    %p144 = scmp.ne.s32.totalorder %s136, %s138
    %p145 = scmp.eq.s32.totalorder %s23, 1
    %p146 = por %p144, %p145
    %p147 = scmp.ne.s32.totalorder %s138, %s139
    %p148 = scmp.eq.s32.totalorder %s23, 0
    %p149 = por %p147, %p148
    %p150 = scmp.ne.s32.totalorder %s138, %s139
    %p151 = scmp.eq.s32.totalorder %s24, 1
    %p152 = por %p150, %p151
    %p154 = scmp.ne.s32.totalorder %s139, %s153
    %p155 = scmp.eq.s32.totalorder %s24, 0
    %p156 = por %p154, %p155
    %s158 = sadd.s32 %s157, 1
    %p161 = scmp.eq.s32.totalorder %s18, 1
    %p162 = scmp.ne.s32.totalorder %s157, %s159
    %p163 = scmp.eq.s32.totalorder %s18, 0
    %p164 = por %p162, %p163
    %p165 = scmp.ne.s32.totalorder %s157, %s159
    %p166 = scmp.eq.s32.totalorder %s23, 1
    %p167 = por %p165, %p166
    %p168 = scmp.ne.s32.totalorder %s159, %s160
    %p169 = scmp.eq.s32.totalorder %s23, 0
    %p170 = por %p168, %p169
    %p171 = scmp.ne.s32.totalorder %s159, %s160
    %p172 = scmp.eq.s32.totalorder %s24, 1
    %p173 = por %p171, %p172
    %p175 = scmp.ne.s32.totalorder %s160, %s174
    %p176 = scmp.eq.s32.totalorder %s24, 0
    %p177 = por %p175, %p176
    %s179 = sadd.s32 %s178, 1
    %p182 = scmp.eq.s32.totalorder %s18, 1
    %p183 = scmp.ne.s32.totalorder %s178, %s180
    %p184 = scmp.eq.s32.totalorder %s18, 0
    %p185 = por %p183, %p184
    %p186 = scmp.ne.s32.totalorder %s178, %s180
    %p187 = scmp.eq.s32.totalorder %s23, 1
    %p188 = por %p186, %p187
    %p189 = scmp.ne.s32.totalorder %s180, %s181
    %p190 = scmp.eq.s32.totalorder %s23, 0
    %p191 = por %p189, %p190
    %p192 = scmp.ne.s32.totalorder %s180, %s181
    %p193 = scmp.eq.s32.totalorder %s24, 1
    %p194 = por %p192, %p193
    %p196 = scmp.ne.s32.totalorder %s181, %s195
    %p197 = scmp.eq.s32.totalorder %s24, 0
    %p198 = por %p196, %p197
    %s200 = sadd.s32 %s199, 1
    %p203 = scmp.eq.s32.totalorder %s18, 1
    %p204 = scmp.ne.s32.totalorder %s199, %s201
    %p205 = scmp.eq.s32.totalorder %s18, 0
    %p206 = por %p204, %p205
    %p207 = scmp.ne.s32.totalorder %s199, %s201
    %p208 = scmp.eq.s32.totalorder %s23, 1
    %p209 = por %p207, %p208
    %p210 = scmp.ne.s32.totalorder %s201, %s202
    %p211 = scmp.eq.s32.totalorder %s23, 0
    %p212 = por %p210, %p211
    %p213 = scmp.ne.s32.totalorder %s201, %s202
    %p214 = scmp.eq.s32.totalorder %s24, 1
    %p215 = por %p213, %p214
    %p217 = scmp.ne.s32.totalorder %s202, %s216
    %p218 = scmp.eq.s32.totalorder %s24, 0
    %p219 = por %p217, %p218
    %s221 = sadd.s32 %s220, 1
    %p224 = scmp.eq.s32.totalorder %s18, 1
    %p225 = scmp.ne.s32.totalorder %s220, %s222
    %p226 = scmp.eq.s32.totalorder %s18, 0
    %p227 = por %p225, %p226
    %p228 = scmp.ne.s32.totalorder %s220, %s222
    %p229 = scmp.eq.s32.totalorder %s23, 1
    %p230 = por %p228, %p229
    %p231 = scmp.ne.s32.totalorder %s222, %s223
    %p232 = scmp.eq.s32.totalorder %s23, 0
    %p233 = por %p231, %p232
    %p234 = scmp.ne.s32.totalorder %s222, %s223
    %p235 = scmp.eq.s32.totalorder %s24, 1
    %p236 = por %p234, %p235
    %p238 = scmp.ne.s32.totalorder %s223, %s237
    %p239 = scmp.eq.s32.totalorder %s24, 0
    %p240 = por %p238, %p239
    %s242 = sadd.s32 %s241, 1
    %p245 = scmp.eq.s32.totalorder %s18, 1
    %p246 = scmp.ne.s32.totalorder %s241, %s243
    %p247 = scmp.eq.s32.totalorder %s18, 0
    %p248 = por %p246, %p247
    %p249 = scmp.ne.s32.totalorder %s241, %s243
    %p250 = scmp.eq.s32.totalorder %s23, 1
    %p251 = por %p249, %p250
    %p252 = scmp.ne.s32.totalorder %s243, %s244
    %p253 = scmp.eq.s32.totalorder %s23, 0
    %p254 = por %p252, %p253
    %p255 = scmp.ne.s32.totalorder %s243, %s244
    %p256 = scmp.eq.s32.totalorder %s24, 1
    %p257 = por %p255, %p256
    %p259 = scmp.ne.s32.totalorder %s244, %s258
    %p260 = scmp.eq.s32.totalorder %s24, 0
    %p261 = por %p259, %p260
    %s263 = sadd.s32 %s262, 1
    %p266 = scmp.eq.s32.totalorder %s18, 1
    %p267 = scmp.ne.s32.totalorder %s262, %s264
    %p268 = scmp.eq.s32.totalorder %s18, 0
    %p269 = por %p267, %p268
    %p270 = scmp.ne.s32.totalorder %s262, %s264
    %p271 = scmp.eq.s32.totalorder %s23, 1
    %p272 = por %p270, %p271
    %p273 = scmp.ne.s32.totalorder %s264, %s265
    %p274 = scmp.eq.s32.totalorder %s23, 0
    %p275 = por %p273, %p274
    %p276 = scmp.ne.s32.totalorder %s264, %s265
    %p277 = scmp.eq.s32.totalorder %s24, 1
    %p278 = por %p276, %p277
    %p280 = scmp.ne.s32.totalorder %s265, %s279
    %p281 = scmp.eq.s32.totalorder %s24, 0
    %p282 = por %p280, %p281
    %s284 = sadd.s32 %s283, 1
    %p287 = scmp.eq.s32.totalorder %s18, 1
    %p288 = scmp.ne.s32.totalorder %s283, %s285
    %p289 = scmp.eq.s32.totalorder %s18, 0
    %p290 = por %p288, %p289
    %p291 = scmp.ne.s32.totalorder %s283, %s285
    %p292 = scmp.eq.s32.totalorder %s23, 1
    %p293 = por %p291, %p292
    %p294 = scmp.ne.s32.totalorder %s285, %s286
    %p295 = scmp.eq.s32.totalorder %s23, 0
    %p296 = por %p294, %p295
    %p297 = scmp.ne.s32.totalorder %s285, %s286
    %p298 = scmp.eq.s32.totalorder %s24, 1
    %p299 = por %p297, %p298
    %p301 = scmp.ne.s32.totalorder %s286, %s300
    %p302 = scmp.eq.s32.totalorder %s24, 0
    %p303 = por %p301, %p302
    %s304 = ssub.s32 %s25, %s37
    %s305 = ssub.s32 %s26, %s33
    %s306 = sor.u32 %s304, %s305
    %p307 = scmp.eq.s32.totalorder %s306, 0
    %s309 = sadd.s32 %s308, 1
    %s310 = scalar_select %p307, %s308, %s309
    %p313 = pneg %p307
    %p314 = scmp.eq.s32.totalorder %s18, 1
    %p315 = por %p313, %p314
    %p316 = scmp.ne.s32.totalorder %s308, %s311
    %p317 = scmp.eq.s32.totalorder %s18, 0
    %p318 = por %p316, %p317
    %p319 = scmp.ne.s32.totalorder %s308, %s311
    %p320 = scmp.eq.s32.totalorder %s23, 1
    %p321 = por %p319, %p320
    %p322 = scmp.ne.s32.totalorder %s311, %s312
    %p323 = scmp.eq.s32.totalorder %s23, 0
    %p324 = por %p322, %p323
    %p325 = scmp.ne.s32.totalorder %s311, %s312
    %p326 = scmp.eq.s32.totalorder %s24, 1
    %p327 = por %p325, %p326
    %p329 = scmp.ne.s32.totalorder %s312, %s328
    %p330 = scmp.eq.s32.totalorder %s24, 0
    %p331 = por %p329, %p330
    %p332 = scmp.le.s32.totalorder 1, %s18
    %p333 = scmp.lt.s32.totalorder %s18, 3
    %p334 = pnand %p332, %p333
    %p335 = pneg %p334
    // Predicated region
    $region9: #{bert_ext_forward.17} parent=5 // pred_check
      _
    $region10: #{bert_ext_forward.17} parent=5 // pred_check_branch
      %337 = sbr.rel (%p334) target = $region12
    $region11: #{bert_ext_forward.17} parent=5 // pred_region
      %s338 = ssub.s32 %s18, 1
      // Predicated region
      $region13: #{bert_ext_forward.17} parent=11 // pred_check
        %p339 = pneg %p107
      $region14: #{bert_ext_forward.17} parent=11 // pred_check_branch
        %341 = sbr.rel (%p339) target = $region16
      $region15: #{bert_ext_forward.17} parent=11 // pred_region
        _
      $region16: #{bert_ext_forward.17} parent=11 // pred_fallthru
        _
      // Predicated region
      $region17: #{bert_ext_forward.17} parent=11 // pred_check
        %p342 = pneg %p128
      $region18: #{bert_ext_forward.17} parent=11 // pred_check_branch
        %344 = sbr.rel (%p342) target = $region20
      $region19: #{bert_ext_forward.17} parent=11 // pred_region
        _
      $region20: #{bert_ext_forward.17} parent=11 // pred_fallthru
        _
      // Predicated region
      $region21: #{bert_ext_forward.17} parent=11 // pred_check
        %p345 = pneg %p149
      $region22: #{bert_ext_forward.17} parent=11 // pred_check_branch
        %347 = sbr.rel (%p345) target = $region24
      $region23: #{bert_ext_forward.17} parent=11 // pred_region
        _
      $region24: #{bert_ext_forward.17} parent=11 // pred_fallthru
        _
      // Predicated region
      $region25: #{bert_ext_forward.17} parent=11 // pred_check
        %p348 = pneg %p170
      $region26: #{bert_ext_forward.17} parent=11 // pred_check_branch
        %350 = sbr.rel (%p348) target = $region28
      $region27: #{bert_ext_forward.17} parent=11 // pred_region
        _
      $region28: #{bert_ext_forward.17} parent=11 // pred_fallthru
        _
      // Predicated region
      $region29: #{bert_ext_forward.17} parent=11 // pred_check
        %p351 = pneg %p191
      $region30: #{bert_ext_forward.17} parent=11 // pred_check_branch
        %353 = sbr.rel (%p351) target = $region32
      $region31: #{bert_ext_forward.17} parent=11 // pred_region
        _
      $region32: #{bert_ext_forward.17} parent=11 // pred_fallthru
        _
      // Predicated region
      $region33: #{bert_ext_forward.17} parent=11 // pred_check
        %p354 = pneg %p212
      $region34: #{bert_ext_forward.17} parent=11 // pred_check_branch
        %356 = sbr.rel (%p354) target = $region36
      $region35: #{bert_ext_forward.17} parent=11 // pred_region
        _
      $region36: #{bert_ext_forward.17} parent=11 // pred_fallthru
        _
      // Predicated region
      $region37: #{bert_ext_forward.17} parent=11 // pred_check
        %p357 = pneg %p233
      $region38: #{bert_ext_forward.17} parent=11 // pred_check_branch
        %359 = sbr.rel (%p357) target = $region40
      $region39: #{bert_ext_forward.17} parent=11 // pred_region
        _
      $region40: #{bert_ext_forward.17} parent=11 // pred_fallthru
        _
      // Predicated region
      $region41: #{bert_ext_forward.17} parent=11 // pred_check
        %p360 = pneg %p254
      $region42: #{bert_ext_forward.17} parent=11 // pred_check_branch
        %362 = sbr.rel (%p360) target = $region44
      $region43: #{bert_ext_forward.17} parent=11 // pred_region
        _
      $region44: #{bert_ext_forward.17} parent=11 // pred_fallthru
        _
      // Predicated region
      $region45: #{bert_ext_forward.17} parent=11 // pred_check
        %p363 = pneg %p275
      $region46: #{bert_ext_forward.17} parent=11 // pred_check_branch
        %365 = sbr.rel (%p363) target = $region48
      $region47: #{bert_ext_forward.17} parent=11 // pred_region
        _
      $region48: #{bert_ext_forward.17} parent=11 // pred_fallthru
        _
      // Predicated region
      $region49: #{bert_ext_forward.17} parent=11 // pred_check
        %p366 = pneg %p296
      $region50: #{bert_ext_forward.17} parent=11 // pred_check_branch
        %368 = sbr.rel (%p366) target = $region52
      $region51: #{bert_ext_forward.17} parent=11 // pred_region
        _
      $region52: #{bert_ext_forward.17} parent=11 // pred_fallthru
        _
    $region12: #{bert_ext_forward.17} parent=5 // pred_fallthru
      _
    %p369 = scmp.lt.s32.totalorder %s18, 2
    // Predicated region
    $region53: #{bert_ext_forward.17} parent=5 // pred_check
      %p370 = pneg %p369
    $region54: #{bert_ext_forward.17} parent=5 // pred_check_branch
      %372 = sbr.rel (%p370) target = $region56
    $region55: #{bert_ext_forward.17} parent=5 // pred_region
      // Predicated region
      $region57: #{bert_ext_forward.17} parent=55 // pred_check
        %p373 = pneg %p52
      $region58: #{bert_ext_forward.17} parent=55 // pred_check_branch
        %375 = sbr.rel (%p373) target = $region60
      $region59: #{bert_ext_forward.17} parent=55 // pred_region
        %s376 = smul.u32 2, %s26
        %p377 = scmp.lt.s32.totalorder %s25, 1
        %s378 = scalar_select %p377, %s25, 1
        %p379 = scmp.lt.s32.totalorder %s376, 1
        %s380 = scalar_select %p379, %s376, 1
        %s381 = smul.addr %s378, 2
        %s382 = sadd.s32 %s380, %s381
        %s383 = smul.addr %s382, 4
        %s384 = scalar_lea.vmem %s0, %s383
        %s385 = smul.u32 2, %s26
      $region60: #{bert_ext_forward.17} parent=55 // pred_fallthru
        _
      // Predicated region
      $region61: #{bert_ext_forward.17} parent=55 // pred_check
        %p386 = pneg %p80
      $region62: #{bert_ext_forward.17} parent=55 // pred_check_branch
        %388 = sbr.rel (%p386) target = $region64
      $region63: #{bert_ext_forward.17} parent=55 // pred_region
        %s389 = smul.u32 2, %s26
        %p390 = scmp.lt.s32.totalorder %s25, 1
        %s391 = scalar_select %p390, %s25, 1
        %p392 = scmp.lt.s32.totalorder %s389, 1
        %s393 = scalar_select %p392, %s389, 1
        %s394 = smul.addr %s391, 2
        %s395 = sadd.s32 %s393, %s394
        %s396 = smul.addr %s395, 4
        %s397 = scalar_lea.vmem %s1, %s396
        %s398 = smul.u32 2, %s26
      $region64: #{bert_ext_forward.17} parent=55 // pred_fallthru
        _
    $region56: #{bert_ext_forward.17} parent=5 // pred_fallthru
      _
    %p399 = scmp.le.s32.totalorder 1, %s18
    %p400 = scmp.lt.s32.totalorder %s18, 3
    %p401 = pnand %p399, %p400
    %p402 = pneg %p401
    // Predicated region
    $region65: #{bert_ext_forward.17} parent=5 // pred_check
      _
    $region66: #{bert_ext_forward.17} parent=5 // pred_check_branch
      %404 = sbr.rel (%p401) target = $region68
    $region67: #{bert_ext_forward.17} parent=5 // pred_region
      %s405 = ssub.s32 %s18, 1
      %s406 = smul.u32 2, %s28
      %p407 = scmp.lt.s32.totalorder %s27, 1
      %s408 = scalar_select %p407, %s27, 1
      %p409 = scmp.lt.s32.totalorder %s406, 1
      %s410 = scalar_select %p409, %s406, 1
      %s411 = smul.addr %s408, 2
      %s412 = sadd.s32 %s410, %s411
      %s413 = smul.addr %s412, 4
      %s414 = scalar_lea.vmem %s0, %s413
      %p415 = pneg %p58
      %p416 = pneg %p55
      %s417 = smul.u32 2, %s28
      %p418 = scmp.lt.s32.totalorder %s27, 1
      %s419 = scalar_select %p418, %s27, 1
      %p420 = scmp.lt.s32.totalorder %s417, 1
      %s421 = scalar_select %p420, %s417, 1
      %s422 = smul.addr %s419, 2
      %s423 = sadd.s32 %s421, %s422
      %s424 = smul.addr %s423, 4
      %s425 = scalar_lea.vmem %s1, %s424
      %p426 = pneg %p86
      %p427 = pneg %p83
      %p428 = pneg %p107
      %p429 = pneg %p104
      %p430 = pneg %p128
      %p431 = pneg %p125
      %p432 = pneg %p149
      %p433 = pneg %p146
      %p434 = pneg %p170
      %p435 = pneg %p167
      %p436 = pneg %p191
      %p437 = pneg %p188
      %p438 = pneg %p212
      %p439 = pneg %p209
      %p440 = pneg %p233
      %p441 = pneg %p230
      %p442 = pneg %p254
      %p443 = pneg %p251
      %p444 = pneg %p275
      %p445 = pneg %p272
      %p446 = pneg %p296
      %p447 = pneg %p293
      %p448 = pneg %p324
      %p449 = pneg %p321
      %s450 = smul.u32 2, %s28
      %p451 = scmp.lt.s32.totalorder %s27, 1
      %s452 = scalar_select %p451, %s27, 1
      %p453 = scmp.lt.s32.totalorder %s450, 1
      %s454 = scalar_select %p453, %s450, 1
      %s455 = smul.addr %s452, 2
      %s456 = sadd.s32 %s454, %s455
      %s457 = smul.addr %s456, 4
      %s458 = scalar_lea.vmem %s12, %s457
      %s459 = smul.u32 2, %s28
      %p460 = scmp.lt.s32.totalorder %s27, 1
      %s461 = scalar_select %p460, %s27, 1
      %p462 = scmp.lt.s32.totalorder %s459, 1
      %s463 = scalar_select %p462, %s459, 1
      %s464 = smul.addr %s461, 2
      %s465 = sadd.s32 %s463, %s464
      %s466 = smul.addr %s465, 4
      %s467 = scalar_lea.vmem %s0, %s466
      %s468 = smul.u32 2, %s28
      %s469 = smul.u32 2, %s28
      %p470 = scmp.lt.s32.totalorder %s27, 1
      %s471 = scalar_select %p470, %s27, 1
      %p472 = scmp.lt.s32.totalorder %s469, 1
      %s473 = scalar_select %p472, %s469, 1
      %s474 = smul.addr %s471, 2
      %s475 = sadd.s32 %s473, %s474
      %s476 = smul.addr %s475, 4
      %s477 = scalar_lea.vmem %s1, %s476
      %s478 = smul.u32 2, %s28
      %s479 = smul.u32 2, %s28
      %p480 = scmp.lt.s32.totalorder %s27, 1
      %s481 = scalar_select %p480, %s27, 1
      %p482 = scmp.lt.s32.totalorder %s479, 1
      %s483 = scalar_select %p482, %s479, 1
      %s484 = smul.addr %s481, 2
      %s485 = sadd.s32 %s483, %s484
      %s486 = smul.addr %s485, 4
      %s487 = scalar_lea.vmem %s12, %s486
      %s488 = smul.u32 2, %s28
      %v490 = vld [vmem:[%s467] sm:$0xf]
      %v491 = vld [vmem:[%s467 + $0x4] sm:$0xf]
      %v492 = vld [vmem:[%s2] sm:$0xf]
      %v493 = vld [vmem:[%s2 + $0x4] sm:$0xf]
      %v494 = vld [vmem:[%s2 + $0x8] sm:$0xf]
      %v495 = vld [vmem:[%s2 + $0xc] sm:$0xf]
      %v496 = vld [vmem:[%s3] sm:$0x1]
      %v498 = vperm.slane %v496, 0
      %v502 = vunpack.c.l.b16 %v490
      %v503 = vunpack.c.l.b16 %v491
      %v504 = vpack.c.b16 %v503, %v502
      %v509 = vunpack.c.l.b16 %v492
      %v510 = vunpack.c.l.b16 %v493
      %v511 = vunpack.c.l.b16 %v494
      %v512 = vunpack.c.l.b16 %v495
      %v513 = vpack.c.b16 %v510, %v509
      %v514 = vpack.c.b16 %v512, %v511
      %vm517 = vcmask 261120
      %v519 = vsel %vm517, %v504, 0
      %521 = vmatpush.bf16.msra.mxu0 0
      %522 = vmatpush.bf16.msra.mxu0 0
      %523 = vmatpush.bf16.msra.mxu0 0
      %524 = vmatpush.bf16.msra.mxu0 0
      %525 = vmatpush.bf16.msra.mxu0 0
      %526 = vmatpush.bf16.msra.mxu0 0
      %527 = vmatpush.bf16.msra.mxu0 %v514
      %528 = vmatpush.bf16.msra.mxu0 %v513
      %529 = vmatmul.bf16.gmra.mxu0 %v519
      %v530 = vpop.f32.mrf.mxu0
      %v531 = vadd.f32 %v498, %v530
      %v532 = vpop.f32.mrf.mxu0
      %v533 = vadd.f32 %v498, %v532
      %534 = vdwg.mxu0
      %v535 = vld [vmem:[%s477] sm:$0xf]
      %v536 = vld [vmem:[%s477 + $0x4] sm:$0xf]
      %v537 = vunpack.c.l.bf16 %v535
      %v538 = vunpack.c.l.bf16 %v536
      %v539 = vadd.f32 %v531, %v537
      %v540 = vadd.f32 %v533, %v538
      %v541 = vld [vmem:[%s4] sm:$0x1]
      %v542 = vld [vmem:[%s5] sm:$0x1]
      %v543 = vsel %vm517, %v539, 0.0
      %544 = vadd.xlane.f32.xlu0 %v543
      %v545 = vpop.xlane.xlu0 %544
      %v546 = vsel %vm517, %v540, 0.0
      %547 = vadd.xlane.f32.xlu0 %v546
      %v548 = vpop.xlane.xlu0 %547
      %v549 = vrcp.pop 32.0
      %v550 = vmul.f32 32.0, %v549
      %v551 = vsub.f32 1.0, %v550
      %v552 = vmul.f32 %v549, %v551
      %v553 = vadd.f32 %v549, %v552
      %vm554 = vweird.f32 %v549
      %v555 = vsel %vm554, %v549, %v553
      %v556 = vmul.f32 %v545, %v555
      %v557 = vmul.f32 %v548, %v555
      %v558 = vsub.f32 %v539, %v556
      %v559 = vsub.f32 %v540, %v557
      %v560 = vmul.f32 %v558, %v558
      %v561 = vmul.f32 %v559, %v559
      %v562 = vsel %vm517, %v560, 0.0
      %563 = vadd.xlane.f32.xlu0 %v562
      %v564 = vpop.xlane.xlu0 %563
      %v565 = vsel %vm517, %v561, 0.0
      %566 = vadd.xlane.f32.xlu0 %v565
      %v567 = vpop.xlane.xlu0 %566
      %v568 = vmul.f32 %v564, %v555
      %v569 = vmul.f32 %v567, %v555
      %v570 = vadd.f32 %v568, 1e-12
      %v571 = vadd.f32 %v569, 1e-12
      %v572 = vrsqrt.pop %v570
      %v573 = vmul.f32 %v572, %v570
      %v574 = vmul.f32 %v573, %v572
      %v575 = vmul.f32 0.5, %v574
      %v576 = vsub.f32 1.5, %v575
      %v577 = vmul.f32 %v572, %v576
      %vm578 = vweird.f32 %v570
      %vm579 = vweird.f32 %v572
      %vm580 = vmor %vm578, %vm579
      %v581 = vsel %vm580, %v572, %v577
      %v582 = vrsqrt.pop %v571
      %v583 = vmul.f32 %v582, %v571
      %v584 = vmul.f32 %v583, %v582
      %v585 = vmul.f32 0.5, %v584
      %v586 = vsub.f32 1.5, %v585
      %v587 = vmul.f32 %v582, %v586
      %vm588 = vweird.f32 %v571
      %vm589 = vweird.f32 %v582
      %vm590 = vmor %vm588, %vm589
      %v591 = vsel %vm590, %v582, %v587
      %v592 = vmul.f32 %v558, %v581
      %v593 = vmul.f32 %v559, %v591
      %v595 = vperm.slane %v541, 0
      %v597 = vmul.f32 %v592, %v595
      %v598 = vmul.f32 %v593, %v595
      %v600 = vperm.slane %v542, 0
      %v602 = vadd.f32 %v597, %v600
      %v603 = vadd.f32 %v598, %v600
      %v604 = vpack.c.bf16 %v603, %v602
      %v605 = vld [vmem:[%s6] sm:$0xf]
      %v606 = vld [vmem:[%s6 + $0x4] sm:$0xf]
      %v607 = vld [vmem:[%s6 + $0x8] sm:$0xf]
      %v608 = vld [vmem:[%s6 + $0xc] sm:$0xf]
      %v609 = vld [vmem:[%s7] sm:$0x1]
      %v611 = vperm.slane %v609, 0
      %v617 = vunpack.c.l.b16 %v605
      %v618 = vunpack.c.l.b16 %v606
      %v619 = vunpack.c.l.b16 %v607
      %v620 = vunpack.c.l.b16 %v608
      %v621 = vpack.c.b16 %v618, %v617
      %v622 = vpack.c.b16 %v620, %v619
      %v626 = vsel %vm517, %v604, 0
      %628 = vmatpush.bf16.msra.mxu0 0
      %629 = vmatpush.bf16.msra.mxu0 0
      %630 = vmatpush.bf16.msra.mxu0 0
      %631 = vmatpush.bf16.msra.mxu0 0
      %632 = vmatpush.bf16.msra.mxu0 0
      %633 = vmatpush.bf16.msra.mxu0 0
      %634 = vmatpush.bf16.msra.mxu0 %v622
      %635 = vmatpush.bf16.msra.mxu0 %v621
      %636 = vmatmul.bf16.gmra.mxu0 %v626
      %v637 = vpop.f32.mrf.mxu0
      %v638 = vadd.f32 %v611, %v637
      %v639 = vpop.f32.mrf.mxu0
      %v640 = vadd.f32 %v611, %v639
      %641 = vdwg.mxu0
      %v642 = vmul.f32 %v638, 0.5
      %v643 = vmul.f32 %v640, 0.5
      %v644 = vmul.f32 %v638, 0.044715
      %v645 = vmul.f32 %v640, 0.044715
      %v646 = vmul.f32 %v644, %v638
      %v647 = vmul.f32 %v645, %v640
      %v648 = vmul.f32 %v646, %v638
      %v649 = vmul.f32 %v647, %v640
      %v650 = vadd.f32 %v638, %v648
      %v651 = vadd.f32 %v640, %v649
      %v652 = vmul.f32 %v650, 0.7978846
      %v653 = vmul.f32 %v651, 0.7978846
      %v654 = vtanh.pop %v652
      %v655 = vtanh.pop %v653
      %v656 = vadd.f32 %v654, 1.0
      %v657 = vadd.f32 %v655, 1.0
      %v658 = vmul.f32 %v642, %v656
      %v659 = vmul.f32 %v643, %v657
      %v660 = vpack.c.bf16 %v659, %v658
      %v661 = vld [vmem:[%s8] sm:$0xf]
      %v662 = vld [vmem:[%s8 + $0x4] sm:$0xf]
      %v663 = vld [vmem:[%s8 + $0x8] sm:$0xf]
      %v664 = vld [vmem:[%s8 + $0xc] sm:$0xf]
      %v665 = vld [vmem:[%s8 + $0x10] sm:$0xf]
      %v666 = vld [vmem:[%s8 + $0x14] sm:$0xf]
      %v667 = vld [vmem:[%s8 + $0x18] sm:$0xf]
      %v668 = vld [vmem:[%s8 + $0x1c] sm:$0xf]
      %v669 = vld [vmem:[%s9] sm:$0x1]
      %v671 = vperm.slane %v669, 0
      %v681 = vunpack.c.l.b16 %v661
      %v682 = vunpack.c.l.b16 %v662
      %v683 = vunpack.c.l.b16 %v663
      %v684 = vunpack.c.l.b16 %v664
      %v685 = vunpack.c.l.b16 %v665
      %v686 = vunpack.c.l.b16 %v666
      %v687 = vunpack.c.l.b16 %v667
      %v688 = vunpack.c.l.b16 %v668
      %v689 = vpack.c.b16 %v682, %v681
      %v690 = vpack.c.b16 %v684, %v683
      %v691 = vpack.c.b16 %v686, %v685
      %v692 = vpack.c.b16 %v688, %v687
      %vm697 = vcmask 523264
      %v699 = vsel %vm697, %v660, 0
      %701 = vmatpush.bf16.msra.mxu0 0
      %702 = vmatpush.bf16.msra.mxu0 0
      %703 = vmatpush.bf16.msra.mxu0 0
      %704 = vmatpush.bf16.msra.mxu0 0
      %705 = vmatpush.bf16.msra.mxu0 %v692
      %706 = vmatpush.bf16.msra.mxu0 %v691
      %707 = vmatpush.bf16.msra.mxu0 %v690
      %708 = vmatpush.bf16.msra.mxu0 %v689
      %709 = vmatmul.bf16.gmra.mxu0 %v699
      %v710 = vpop.f32.mrf.mxu0
      %v711 = vadd.f32 %v671, %v710
      %v712 = vpop.f32.mrf.mxu0
      %v713 = vadd.f32 %v671, %v712
      %714 = vdwg.mxu0
      %v715 = vadd.f32 %v711, %v602
      %v716 = vadd.f32 %v713, %v603
      %v717 = vld [vmem:[%s10] sm:$0x1]
      %v718 = vld [vmem:[%s11] sm:$0x1]
      %v719 = vsel %vm517, %v715, 0.0
      %720 = vadd.xlane.f32.xlu0 %v719
      %v721 = vpop.xlane.xlu0 %720
      %v722 = vsel %vm517, %v716, 0.0
      %723 = vadd.xlane.f32.xlu0 %v722
      %v724 = vpop.xlane.xlu0 %723
      %v725 = vmul.f32 %v721, %v555
      %v726 = vmul.f32 %v724, %v555
      %v727 = vsub.f32 %v715, %v725
      %v728 = vsub.f32 %v716, %v726
      %v729 = vmul.f32 %v727, %v727
      %v730 = vmul.f32 %v728, %v728
      %v731 = vsel %vm517, %v729, 0.0
      %732 = vadd.xlane.f32.xlu0 %v731
      %v733 = vpop.xlane.xlu0 %732
      %v734 = vsel %vm517, %v730, 0.0
      %735 = vadd.xlane.f32.xlu0 %v734
      %v736 = vpop.xlane.xlu0 %735
      %v737 = vmul.f32 %v733, %v555
      %v738 = vmul.f32 %v736, %v555
      %v739 = vadd.f32 %v737, 1e-12
      %v740 = vadd.f32 %v738, 1e-12
      %v741 = vrsqrt.pop %v739
      %v742 = vmul.f32 %v741, %v739
      %v743 = vmul.f32 %v742, %v741
      %v744 = vmul.f32 0.5, %v743
      %v745 = vsub.f32 1.5, %v744
      %v746 = vmul.f32 %v741, %v745
      %vm747 = vweird.f32 %v739
      %vm748 = vweird.f32 %v741
      %vm749 = vmor %vm747, %vm748
      %v750 = vsel %vm749, %v741, %v746
      %v751 = vrsqrt.pop %v740
      %v752 = vmul.f32 %v751, %v740
      %v753 = vmul.f32 %v752, %v751
      %v754 = vmul.f32 0.5, %v753
      %v755 = vsub.f32 1.5, %v754
      %v756 = vmul.f32 %v751, %v755
      %vm757 = vweird.f32 %v740
      %vm758 = vweird.f32 %v751
      %vm759 = vmor %vm757, %vm758
      %v760 = vsel %vm759, %v751, %v756
      %v761 = vmul.f32 %v727, %v750
      %v762 = vmul.f32 %v728, %v760
      %v764 = vperm.slane %v717, 0
      %v766 = vmul.f32 %v761, %v764
      %v767 = vmul.f32 %v762, %v764
      %v769 = vperm.slane %v718, 0
      %v771 = vadd.f32 %v766, %v769
      %v772 = vadd.f32 %v767, %v769
      %v773 = vpack.c.bf16 %v771, %v771
      %v774 = vpack.c.bf16 %v772, %v772
      %vm775 = vcmask 257024
      %776 = vst.msk [vmem:[%s487] sm:$0xf] %vm775, %v773
      %777 = vst.msk [vmem:[%s487 + $0x4] sm:$0xf] %vm775, %v774
      %s778 = smul.u32 2, %s28
      %p779 = scmp.lt.s32.totalorder %s27, 1
      %s780 = scalar_select %p779, %s27, 1
      %p781 = scmp.lt.s32.totalorder %s778, 1
      %s782 = scalar_select %p781, %s778, 1
      %s783 = smul.addr %s780, 2
      %s784 = sadd.s32 %s782, %s783
      %s785 = smul.addr %s784, 4
      %s786 = scalar_lea.vmem %s12, %s785
      // Predicated region
      $region69: #{bert_ext_forward.17} parent=67 // pred_check
        %p787 = pneg %p321
      $region70: #{bert_ext_forward.17} parent=67 // pred_check_branch
        %789 = sbr.rel (%p787) target = $region72
      $region71: #{bert_ext_forward.17} parent=67 // pred_region
        %s790 = smul.u32 2, %s28
      $region72: #{bert_ext_forward.17} parent=67 // pred_fallthru
        _
    $region68: #{bert_ext_forward.17} parent=5 // pred_fallthru
      _
    %p791 = scmp.le.s32.totalorder 2, %s18
    // Predicated region
    $region73: #{bert_ext_forward.17} parent=5 // pred_check
      %p792 = pneg %p791
    $region74: #{bert_ext_forward.17} parent=5 // pred_check_branch
      %794 = sbr.rel (%p792) target = $region76
    $region75: #{bert_ext_forward.17} parent=5 // pred_region
      %s795 = ssub.s32 %s18, 2
      // Predicated region
      $region77: #{bert_ext_forward.17} parent=75 // pred_check
        %p796 = pneg %p327
      $region78: #{bert_ext_forward.17} parent=75 // pred_check_branch
        %798 = sbr.rel (%p796) target = $region80
      $region79: #{bert_ext_forward.17} parent=75 // pred_region
        %s799 = smul.u32 2, %s30
        %p800 = scmp.lt.s32.totalorder %s29, 1
        %s801 = scalar_select %p800, %s29, 1
        %p802 = scmp.lt.s32.totalorder %s799, 1
        %s803 = scalar_select %p802, %s799, 1
        %s804 = smul.addr %s801, 2
        %s805 = sadd.s32 %s803, %s804
        %s806 = smul.addr %s805, 4
        %s807 = scalar_lea.vmem %s12, %s806
      $region80: #{bert_ext_forward.17} parent=75 // pred_fallthru
        _
    $region76: #{bert_ext_forward.17} parent=5 // pred_fallthru
      _
  $region6: #{bert_ext_forward.17} parent=0 // loop_footer
    %s22 = sadd.s32 1, %s18
  $region7: #{bert_ext_forward.17} parent=0 // loop_footer_branch
    %17 = sbr.rel target = $region3
  $region8: #{bert_ext_forward.17} parent=0 // loop_exit
    _

// kernel: bert_ext_forward.24
$region0: #{bert_ext_forward.24}
  #allocation0 [shape = 'u32[]', space=smem, size = 0x4, offset = 0x4, fixed_abs, tag = 'smem constant byte address 0x4 - core index']
  #allocation1 [shape = 'u32[72,128]{1,0:T(1,128)}', space=vmem, size = 0x9000, scoped, tag = 'internal scratch']
  %s0 = inlined_call_operand.vmem [shape: bf16[2,16,32], index: 0, kind: input, shape index: {}]
  %s1 = inlined_call_operand.vmem [shape: f32[1,32], index: 1, kind: input, shape index: {}]
  %s2 = inlined_call_operand.vmem [shape: f32[1,32], index: 2, kind: input, shape index: {}]
  %s3 = inlined_call_operand.vmem [shape: bf16[32,96], index: 3, kind: input, shape index: {}]
  %s4 = inlined_call_operand.vmem [shape: f32[1,96], index: 4, kind: input, shape index: {}]
  %s5 = inlined_call_operand.vmem [shape: bf16[2,16,96], index: 5, kind: output, shape index: {}]
  %s6 = sld [smem:[#allocation0]]
  $region53: #{bert_ext_forward.24} parent=0
    _
  %s8 = ssub.s32 1, %s6
  %s9 = scalar_select 0, %s8, %s6
  loop: start=0, step=1, limit=4
  $region2: #{bert_ext_forward.24} parent=0 // loop_pre_header
    _
  $region3: #{bert_ext_forward.24} parent=0 // loop_header
    %s11 = sphi 0, %s15
    %p12 = scmp.ge.s32.totalorder %s11, 4
    %s18 = sphi 0, %s30
    %s19 = sphi 0, %s26
    %s20 = sphi 0, %s18
    %s21 = sphi 0, %s19
    %s22 = sphi 0, %s20
    %s23 = sphi 0, %s21
    %s35 = sphi 0, %s37
    %s38 = sphi 0, %s35
    %s39 = sphi 0, %s38
    %s55 = sphi 0, %s39
    %s59 = sphi 0, %s59
    %s61 = sphi 0, %s59
    %s62 = sphi 0, %s61
    %s76 = sphi 0, %s62
    %s80 = sphi 0, %s80
    %s82 = sphi 0, %s80
    %s83 = sphi 0, %s82
    %s97 = sphi 0, %s83
    %s101 = sphi 0, %s101
    %s103 = sphi 0, %s101
    %s104 = sphi 0, %s103
    %s118 = sphi 0, %s104
    %s122 = sphi 0, %s122
    %s124 = sphi 0, %s122
    %s125 = sphi 0, %s124
    %s139 = sphi 0, %s125
    %s147 = sphi 0, %s149
    %s150 = sphi 0, %s147
    %s151 = sphi 0, %s150
    %s167 = sphi 0, %s151
  $region4: #{bert_ext_forward.24} parent=0 // loop_header_branch
    %14 = sbr.rel (%p12) target = $region8
  $region5: #{bert_ext_forward.24} parent=0 // loop_body
    %s16 = ssub.s32 %s11, 1
    %s17 = ssub.s32 %s11, 2
    %s24 = sadd.s32 1, %s19
    %p25 = scmp.ge.s32.totalorder %s24, 1
    %s26 = scalar_select %p25, 0, %s24
    %s27 = sadd.s32 1, %s18
    %s28 = scalar_select %p25, %s27, %s18
    %p29 = scmp.ge.s32.totalorder %s28, 2
    %s30 = scalar_select %p29, 0, %s28
    %s31 = ssub.s32 %s18, %s30
    %s32 = ssub.s32 %s19, %s26
    %s33 = sor.u32 %s31, %s32
    %p34 = scmp.eq.s32.totalorder %s33, 0
    %s36 = sadd.s32 %s35, 1
    %s37 = scalar_select %p34, %s35, %s36
    %p40 = pneg %p34
    %p41 = scmp.eq.s32.totalorder %s11, 1
    %p42 = por %p40, %p41
    %p43 = scmp.ne.s32.totalorder %s35, %s38
    %p44 = scmp.eq.s32.totalorder %s11, 0
    %p45 = por %p43, %p44
    %p46 = scmp.ne.s32.totalorder %s35, %s38
    %p47 = scmp.eq.s32.totalorder %s16, 1
    %p48 = por %p46, %p47
    %p49 = scmp.ne.s32.totalorder %s38, %s39
    %p50 = scmp.eq.s32.totalorder %s16, 0
    %p51 = por %p49, %p50
    %p52 = scmp.ne.s32.totalorder %s38, %s39
    %p53 = scmp.eq.s32.totalorder %s17, 1
    %p54 = por %p52, %p53
    %p56 = scmp.ne.s32.totalorder %s39, %s55
    %p57 = scmp.eq.s32.totalorder %s17, 0
    %p58 = por %p56, %p57
    %s60 = sadd.s32 %s59, 1
    %p63 = scmp.eq.s32.totalorder %s11, 1
    %p64 = scmp.ne.s32.totalorder %s59, %s61
    %p65 = scmp.eq.s32.totalorder %s11, 0
    %p66 = por %p64, %p65
    %p67 = scmp.ne.s32.totalorder %s59, %s61
    %p68 = scmp.eq.s32.totalorder %s16, 1
    %p69 = por %p67, %p68
    %p70 = scmp.ne.s32.totalorder %s61, %s62
    %p71 = scmp.eq.s32.totalorder %s16, 0
    %p72 = por %p70, %p71
    %p73 = scmp.ne.s32.totalorder %s61, %s62
    %p74 = scmp.eq.s32.totalorder %s17, 1
    %p75 = por %p73, %p74
    %p77 = scmp.ne.s32.totalorder %s62, %s76
    %p78 = scmp.eq.s32.totalorder %s17, 0
    %p79 = por %p77, %p78
    %s81 = sadd.s32 %s80, 1
    %p84 = scmp.eq.s32.totalorder %s11, 1
    %p85 = scmp.ne.s32.totalorder %s80, %s82
    %p86 = scmp.eq.s32.totalorder %s11, 0
    %p87 = por %p85, %p86
    %p88 = scmp.ne.s32.totalorder %s80, %s82
    %p89 = scmp.eq.s32.totalorder %s16, 1
    %p90 = por %p88, %p89
    %p91 = scmp.ne.s32.totalorder %s82, %s83
    %p92 = scmp.eq.s32.totalorder %s16, 0
    %p93 = por %p91, %p92
    %p94 = scmp.ne.s32.totalorder %s82, %s83
    %p95 = scmp.eq.s32.totalorder %s17, 1
    %p96 = por %p94, %p95
    %p98 = scmp.ne.s32.totalorder %s83, %s97
    %p99 = scmp.eq.s32.totalorder %s17, 0
    %p100 = por %p98, %p99
    %s102 = sadd.s32 %s101, 1
    %p105 = scmp.eq.s32.totalorder %s11, 1
    %p106 = scmp.ne.s32.totalorder %s101, %s103
    %p107 = scmp.eq.s32.totalorder %s11, 0
    %p108 = por %p106, %p107
    %p109 = scmp.ne.s32.totalorder %s101, %s103
    %p110 = scmp.eq.s32.totalorder %s16, 1
    %p111 = por %p109, %p110
    %p112 = scmp.ne.s32.totalorder %s103, %s104
    %p113 = scmp.eq.s32.totalorder %s16, 0
    %p114 = por %p112, %p113
    %p115 = scmp.ne.s32.totalorder %s103, %s104
    %p116 = scmp.eq.s32.totalorder %s17, 1
    %p117 = por %p115, %p116
    %p119 = scmp.ne.s32.totalorder %s104, %s118
    %p120 = scmp.eq.s32.totalorder %s17, 0
    %p121 = por %p119, %p120
    %s123 = sadd.s32 %s122, 1
    %p126 = scmp.eq.s32.totalorder %s11, 1
    %p127 = scmp.ne.s32.totalorder %s122, %s124
    %p128 = scmp.eq.s32.totalorder %s11, 0
    %p129 = por %p127, %p128
    %p130 = scmp.ne.s32.totalorder %s122, %s124
    %p131 = scmp.eq.s32.totalorder %s16, 1
    %p132 = por %p130, %p131
    %p133 = scmp.ne.s32.totalorder %s124, %s125
    %p134 = scmp.eq.s32.totalorder %s16, 0
    %p135 = por %p133, %p134
    %p136 = scmp.ne.s32.totalorder %s124, %s125
    %p137 = scmp.eq.s32.totalorder %s17, 1
    %p138 = por %p136, %p137
    %p140 = scmp.ne.s32.totalorder %s125, %s139
    %p141 = scmp.eq.s32.totalorder %s17, 0
    %p142 = por %p140, %p141
    %s143 = ssub.s32 %s18, %s30
    %s144 = ssub.s32 %s19, %s26
    %s145 = sor.u32 %s143, %s144
    %p146 = scmp.eq.s32.totalorder %s145, 0
    %s148 = sadd.s32 %s147, 1
    %s149 = scalar_select %p146, %s147, %s148
    %p152 = pneg %p146
    %p153 = scmp.eq.s32.totalorder %s11, 1
    %p154 = por %p152, %p153
    %p155 = scmp.ne.s32.totalorder %s147, %s150
    %p156 = scmp.eq.s32.totalorder %s11, 0
    %p157 = por %p155, %p156
    %p158 = scmp.ne.s32.totalorder %s147, %s150
    %p159 = scmp.eq.s32.totalorder %s16, 1
    %p160 = por %p158, %p159
    %p161 = scmp.ne.s32.totalorder %s150, %s151
    %p162 = scmp.eq.s32.totalorder %s16, 0
    %p163 = por %p161, %p162
    %p164 = scmp.ne.s32.totalorder %s150, %s151
    %p165 = scmp.eq.s32.totalorder %s17, 1
    %p166 = por %p164, %p165
    %p168 = scmp.ne.s32.totalorder %s151, %s167
    %p169 = scmp.eq.s32.totalorder %s17, 0
    %p170 = por %p168, %p169
    %p171 = scmp.le.s32.totalorder 1, %s11
    %p172 = scmp.lt.s32.totalorder %s11, 3
    %p173 = pnand %p171, %p172
    %p174 = pneg %p173
    // Predicated region
    $region9: #{bert_ext_forward.24} parent=5 // pred_check
      _
    $region10: #{bert_ext_forward.24} parent=5 // pred_check_branch
      %176 = sbr.rel (%p173) target = $region12
    $region11: #{bert_ext_forward.24} parent=5 // pred_region
      %s177 = ssub.s32 %s11, 1
      // Predicated region
      $region13: #{bert_ext_forward.24} parent=11 // pred_check
        %p178 = pneg %p72
      $region14: #{bert_ext_forward.24} parent=11 // pred_check_branch
        %180 = sbr.rel (%p178) target = $region16
      $region15: #{bert_ext_forward.24} parent=11 // pred_region
        _
      $region16: #{bert_ext_forward.24} parent=11 // pred_fallthru
        _
      // Predicated region
      $region17: #{bert_ext_forward.24} parent=11 // pred_check
        %p181 = pneg %p93
      $region18: #{bert_ext_forward.24} parent=11 // pred_check_branch
        %183 = sbr.rel (%p181) target = $region20
      $region19: #{bert_ext_forward.24} parent=11 // pred_region
        _
      $region20: #{bert_ext_forward.24} parent=11 // pred_fallthru
        _
      // Predicated region
      $region21: #{bert_ext_forward.24} parent=11 // pred_check
        %p184 = pneg %p114
      $region22: #{bert_ext_forward.24} parent=11 // pred_check_branch
        %186 = sbr.rel (%p184) target = $region24
      $region23: #{bert_ext_forward.24} parent=11 // pred_region
        _
      $region24: #{bert_ext_forward.24} parent=11 // pred_fallthru
        _
      // Predicated region
      $region25: #{bert_ext_forward.24} parent=11 // pred_check
        %p187 = pneg %p135
      $region26: #{bert_ext_forward.24} parent=11 // pred_check_branch
        %189 = sbr.rel (%p187) target = $region28
      $region27: #{bert_ext_forward.24} parent=11 // pred_region
        _
      $region28: #{bert_ext_forward.24} parent=11 // pred_fallthru
        _
    $region12: #{bert_ext_forward.24} parent=5 // pred_fallthru
      _
    %p190 = scmp.lt.s32.totalorder %s11, 2
    // Predicated region
    $region29: #{bert_ext_forward.24} parent=5 // pred_check
      %p191 = pneg %p190
    $region30: #{bert_ext_forward.24} parent=5 // pred_check_branch
      %193 = sbr.rel (%p191) target = $region32
    $region31: #{bert_ext_forward.24} parent=5 // pred_region
      // Predicated region
      $region33: #{bert_ext_forward.24} parent=31 // pred_check
        %p194 = pneg %p45
      $region34: #{bert_ext_forward.24} parent=31 // pred_check_branch
        %196 = sbr.rel (%p194) target = $region36
      $region35: #{bert_ext_forward.24} parent=31 // pred_region
        %s197 = smul.u32 2, %s19
        %p198 = scmp.lt.s32.totalorder %s18, 1
        %s199 = scalar_select %p198, %s18, 1
        %p200 = scmp.lt.s32.totalorder %s197, 1
        %s201 = scalar_select %p200, %s197, 1
        %s202 = smul.addr %s199, 2
        %s203 = sadd.s32 %s201, %s202
        %s204 = smul.addr %s203, 4
        %s205 = scalar_lea.vmem %s0, %s204
        %s206 = smul.u32 2, %s19
      $region36: #{bert_ext_forward.24} parent=31 // pred_fallthru
        _
    $region32: #{bert_ext_forward.24} parent=5 // pred_fallthru
      _
    %p207 = scmp.le.s32.totalorder 1, %s11
    %p208 = scmp.lt.s32.totalorder %s11, 3
    %p209 = pnand %p207, %p208
    %p210 = pneg %p209
    // Predicated region
    $region37: #{bert_ext_forward.24} parent=5 // pred_check
      _
    $region38: #{bert_ext_forward.24} parent=5 // pred_check_branch
      %212 = sbr.rel (%p209) target = $region40
    $region39: #{bert_ext_forward.24} parent=5 // pred_region
      %s213 = ssub.s32 %s11, 1
      %s214 = smul.u32 2, %s21
      %p215 = scmp.lt.s32.totalorder %s20, 1
      %s216 = scalar_select %p215, %s20, 1
      %p217 = scmp.lt.s32.totalorder %s214, 1
      %s218 = scalar_select %p217, %s214, 1
      %s219 = smul.addr %s216, 2
      %s220 = sadd.s32 %s218, %s219
      %s221 = smul.addr %s220, 4
      %s222 = scalar_lea.vmem %s0, %s221
      %p223 = pneg %p51
      %p224 = pneg %p48
      %p225 = pneg %p72
      %p226 = pneg %p69
      %p227 = pneg %p93
      %p228 = pneg %p90
      %p229 = pneg %p114
      %p230 = pneg %p111
      %p231 = pneg %p135
      %p232 = pneg %p132
      %p233 = pneg %p163
      %p234 = pneg %p160
      %s235 = smul.u32 2, %s21
      %p236 = scmp.lt.s32.totalorder %s20, 1
      %s237 = scalar_select %p236, %s20, 1
      %p238 = scmp.lt.s32.totalorder %s235, 1
      %s239 = scalar_select %p238, %s235, 1
      %s240 = smul.addr %s237, 2
      %s241 = sadd.s32 %s239, %s240
      %s242 = smul.addr %s241, 4
      %s243 = scalar_lea.vmem %s5, %s242
      %s244 = smul.u32 2, %s21
      %p245 = scmp.lt.s32.totalorder %s20, 1
      %s246 = scalar_select %p245, %s20, 1
      %p247 = scmp.lt.s32.totalorder %s244, 1
      %s248 = scalar_select %p247, %s244, 1
      %s249 = smul.addr %s246, 2
      %s250 = sadd.s32 %s248, %s249
      %s251 = smul.addr %s250, 4
      %s252 = scalar_lea.vmem %s0, %s251
      %s253 = smul.u32 2, %s21
      %s254 = smul.u32 2, %s21
      %p255 = scmp.lt.s32.totalorder %s20, 1
      %s256 = scalar_select %p255, %s20, 1
      %p257 = scmp.lt.s32.totalorder %s254, 1
      %s258 = scalar_select %p257, %s254, 1
      %s259 = smul.addr %s256, 2
      %s260 = sadd.s32 %s258, %s259
      %s261 = smul.addr %s260, 4
      %s262 = scalar_lea.vmem %s5, %s261
      %s263 = smul.u32 2, %s21
      %v265 = vld [vmem:[%s252] sm:$0xf]
      %v266 = vld [vmem:[%s252 + $0x4] sm:$0xf]
      %v267 = vunpack.c.l.bf16 %v265
      %v268 = vunpack.c.l.bf16 %v266
      %v269 = vld [vmem:[%s1] sm:$0x1]
      %v270 = vld [vmem:[%s2] sm:$0x1]
      %vm271 = vcmask 261120
      %v272 = vsel %vm271, %v267, 0.0
      %273 = vadd.xlane.f32.xlu0 %v272
      %v274 = vpop.xlane.xlu0 %273
      %v275 = vsel %vm271, %v268, 0.0
      %276 = vadd.xlane.f32.xlu0 %v275
      %v277 = vpop.xlane.xlu0 %276
      %v278 = vrcp.pop 32.0
      %v279 = vmul.f32 32.0, %v278
      %v280 = vsub.f32 1.0, %v279
      %v281 = vmul.f32 %v278, %v280
      %v282 = vadd.f32 %v278, %v281
      %vm283 = vweird.f32 %v278
      %v284 = vsel %vm283, %v278, %v282
      %v285 = vmul.f32 %v274, %v284
      %v286 = vmul.f32 %v277, %v284
      %v287 = vsub.f32 %v267, %v285
      %v288 = vsub.f32 %v268, %v286
      %v289 = vmul.f32 %v287, %v287
      %v290 = vmul.f32 %v288, %v288
      %v291 = vsel %vm271, %v289, 0.0
      %292 = vadd.xlane.f32.xlu0 %v291
      %v293 = vpop.xlane.xlu0 %292
      %v294 = vsel %vm271, %v290, 0.0
      %295 = vadd.xlane.f32.xlu0 %v294
      %v296 = vpop.xlane.xlu0 %295
      %v297 = vmul.f32 %v293, %v284
      %v298 = vmul.f32 %v296, %v284
      %v299 = vadd.f32 %v297, 1e-06
      %v300 = vadd.f32 %v298, 1e-06
      %v301 = vrsqrt.pop %v299
      %v302 = vmul.f32 %v301, %v299
      %v303 = vmul.f32 %v302, %v301
      %v304 = vmul.f32 0.5, %v303
      %v305 = vsub.f32 1.5, %v304
      %v306 = vmul.f32 %v301, %v305
      %vm307 = vweird.f32 %v299
      %vm308 = vweird.f32 %v301
      %vm309 = vmor %vm307, %vm308
      %v310 = vsel %vm309, %v301, %v306
      %v311 = vrsqrt.pop %v300
      %v312 = vmul.f32 %v311, %v300
      %v313 = vmul.f32 %v312, %v311
      %v314 = vmul.f32 0.5, %v313
      %v315 = vsub.f32 1.5, %v314
      %v316 = vmul.f32 %v311, %v315
      %vm317 = vweird.f32 %v300
      %vm318 = vweird.f32 %v311
      %vm319 = vmor %vm317, %vm318
      %v320 = vsel %vm319, %v311, %v316
      %v321 = vmul.f32 %v287, %v310
      %v322 = vmul.f32 %v288, %v320
      %v324 = vperm.slane %v269, 0
      %v326 = vmul.f32 %v321, %v324
      %v327 = vmul.f32 %v322, %v324
      %v329 = vperm.slane %v270, 0
      %v331 = vadd.f32 %v326, %v329
      %v332 = vadd.f32 %v327, %v329
      %v333 = vpack.c.bf16 %v332, %v331
      %v334 = vld [vmem:[%s3] sm:$0xf]
      %v335 = vld [vmem:[%s3 + $0x4] sm:$0xf]
      %v336 = vld [vmem:[%s3 + $0x8] sm:$0xf]
      %v337 = vld [vmem:[%s3 + $0xc] sm:$0xf]
      %v338 = vld [vmem:[%s4] sm:$0x1]
      %v340 = vperm.slane %v338, 0
      %v346 = vunpack.c.l.b16 %v334
      %v347 = vunpack.c.l.b16 %v335
      %v348 = vunpack.c.l.b16 %v336
      %v349 = vunpack.c.l.b16 %v337
      %v350 = vpack.c.b16 %v347, %v346
      %v351 = vpack.c.b16 %v349, %v348
      %v355 = vsel %vm271, %v333, 0
      %357 = vmatpush.bf16.msra.mxu0 0
      %358 = vmatpush.bf16.msra.mxu0 0
      %359 = vmatpush.bf16.msra.mxu0 0
      %360 = vmatpush.bf16.msra.mxu0 0
      %361 = vmatpush.bf16.msra.mxu0 0
      %362 = vmatpush.bf16.msra.mxu0 0
      %363 = vmatpush.bf16.msra.mxu0 %v351
      %364 = vmatpush.bf16.msra.mxu0 %v350
      %365 = vmatmul.bf16.gmra.mxu0 %v355
      %v366 = vpop.f32.mrf.mxu0
      %v367 = vadd.f32 %v340, %v366
      %v368 = vpop.f32.mrf.mxu0
      %v369 = vadd.f32 %v340, %v368
      %370 = vdwg.mxu0
      %v371 = vpack.c.bf16 %v367, %v367
      %v372 = vpack.c.bf16 %v369, %v369
      %vm373 = vcmask 781312
      %374 = vst.msk [vmem:[%s262] sm:$0xf] %vm373, %v371
      %375 = vst.msk [vmem:[%s262 + $0x4] sm:$0xf] %vm373, %v372
      %s376 = smul.u32 2, %s21
      %p377 = scmp.lt.s32.totalorder %s20, 1
      %s378 = scalar_select %p377, %s20, 1
      %p379 = scmp.lt.s32.totalorder %s376, 1
      %s380 = scalar_select %p379, %s376, 1
      %s381 = smul.addr %s378, 2
      %s382 = sadd.s32 %s380, %s381
      %s383 = smul.addr %s382, 4
      %s384 = scalar_lea.vmem %s5, %s383
      // Predicated region
      $region41: #{bert_ext_forward.24} parent=39 // pred_check
        %p385 = pneg %p160
      $region42: #{bert_ext_forward.24} parent=39 // pred_check_branch
        %387 = sbr.rel (%p385) target = $region44
      $region43: #{bert_ext_forward.24} parent=39 // pred_region
        %s388 = smul.u32 2, %s21
      $region44: #{bert_ext_forward.24} parent=39 // pred_fallthru
        _
    $region40: #{bert_ext_forward.24} parent=5 // pred_fallthru
      _
    %p389 = scmp.le.s32.totalorder 2, %s11
    // Predicated region
    $region45: #{bert_ext_forward.24} parent=5 // pred_check
      %p390 = pneg %p389
    $region46: #{bert_ext_forward.24} parent=5 // pred_check_branch
      %392 = sbr.rel (%p390) target = $region48
    $region47: #{bert_ext_forward.24} parent=5 // pred_region
      %s393 = ssub.s32 %s11, 2
      // Predicated region
      $region49: #{bert_ext_forward.24} parent=47 // pred_check
        %p394 = pneg %p166
      $region50: #{bert_ext_forward.24} parent=47 // pred_check_branch
        %396 = sbr.rel (%p394) target = $region52
      $region51: #{bert_ext_forward.24} parent=47 // pred_region
        %s397 = smul.u32 2, %s23
        %p398 = scmp.lt.s32.totalorder %s22, 1
        %s399 = scalar_select %p398, %s22, 1
        %p400 = scmp.lt.s32.totalorder %s397, 1
        %s401 = scalar_select %p400, %s397, 1
        %s402 = smul.addr %s399, 2
        %s403 = sadd.s32 %s401, %s402
        %s404 = smul.addr %s403, 4
        %s405 = scalar_lea.vmem %s5, %s404
      $region52: #{bert_ext_forward.24} parent=47 // pred_fallthru
        _
    $region48: #{bert_ext_forward.24} parent=5 // pred_fallthru
      _
  $region6: #{bert_ext_forward.24} parent=0 // loop_footer
    %s15 = sadd.s32 1, %s11
  $region7: #{bert_ext_forward.24} parent=0 // loop_footer_branch
    %10 = sbr.rel target = $region3
  $region8: #{bert_ext_forward.24} parent=0 // loop_exit
    _

// kernel: bert_ext_forward.27
$region0: #{bert_ext_forward.27}
  #allocation0 [shape = 'u32[]', space=smem, size = 0x4, offset = 0x4, fixed_abs, tag = 'smem constant byte address 0x4 - core index']
  #allocation1 [shape = 'u32[72,128]{1,0:T(1,128)}', space=vmem, size = 0x9000, scoped, tag = 'internal scratch']
  #allocation2 [shape = 'f32[1]{0:T(128)S(6)}', space=smem, size = 0x200, scoped, tag = 'scoped memory for bert_ext_forward.27']
  %s0 = inlined_call_operand.vmem [shape: bf16[2,16,32], index: 0, kind: input, shape index: {}]
  %s1 = inlined_call_operand.vmem [shape: f32[1,32], index: 1, kind: input, shape index: {}]
  %s2 = inlined_call_operand.vmem [shape: f32[1,32], index: 2, kind: input, shape index: {}]
  %s3 = inlined_call_operand.vmem [shape: f32[1,32], index: 3, kind: input, shape index: {}]
  %s4 = inlined_call_operand.<no memory space> [shape: f32[1], index: 4, kind: input, shape index: {}]
  %s5 = inlined_call_operand.vmem [shape: f32[2,16,128], index: 5, kind: output, shape index: {}]
  %s6 = sld [smem:[#allocation0]]
  $region53: #{bert_ext_forward.27} parent=0
    _
  %s8 = ssub.s32 1, %s6
  %s9 = scalar_select 0, %s8, %s6
  %10 = sst [smem:[#allocation2]] %s4
  loop: start=0, step=1, limit=4
  $region2: #{bert_ext_forward.27} parent=0 // loop_pre_header
    _
  $region3: #{bert_ext_forward.27} parent=0 // loop_header
    %s12 = sphi 0, %s16
    %p13 = scmp.ge.s32.totalorder %s12, 4
    %s19 = sphi 0, %s31
    %s20 = sphi 0, %s27
    %s21 = sphi 0, %s19
    %s22 = sphi 0, %s20
    %s23 = sphi 0, %s21
    %s24 = sphi 0, %s22
    %s36 = sphi 0, %s38
    %s39 = sphi 0, %s36
    %s40 = sphi 0, %s39
    %s56 = sphi 0, %s40
    %s60 = sphi 0, %s60
    %s62 = sphi 0, %s60
    %s63 = sphi 0, %s62
    %s77 = sphi 0, %s63
    %s81 = sphi 0, %s81
    %s83 = sphi 0, %s81
    %s84 = sphi 0, %s83
    %s98 = sphi 0, %s84
    %s102 = sphi 0, %s102
    %s104 = sphi 0, %s102
    %s105 = sphi 0, %s104
    %s119 = sphi 0, %s105
    %s123 = sphi 0, %s123
    %s125 = sphi 0, %s123
    %s126 = sphi 0, %s125
    %s140 = sphi 0, %s126
    %s148 = sphi 0, %s150
    %s151 = sphi 0, %s148
    %s152 = sphi 0, %s151
    %s168 = sphi 0, %s152
  $region4: #{bert_ext_forward.27} parent=0 // loop_header_branch
    %15 = sbr.rel (%p13) target = $region8
  $region5: #{bert_ext_forward.27} parent=0 // loop_body
    %s17 = ssub.s32 %s12, 1
    %s18 = ssub.s32 %s12, 2
    %s25 = sadd.s32 1, %s20
    %p26 = scmp.ge.s32.totalorder %s25, 1
    %s27 = scalar_select %p26, 0, %s25
    %s28 = sadd.s32 1, %s19
    %s29 = scalar_select %p26, %s28, %s19
    %p30 = scmp.ge.s32.totalorder %s29, 2
    %s31 = scalar_select %p30, 0, %s29
    %s32 = ssub.s32 %s19, %s31
    %s33 = ssub.s32 %s20, %s27
    %s34 = sor.u32 %s32, %s33
    %p35 = scmp.eq.s32.totalorder %s34, 0
    %s37 = sadd.s32 %s36, 1
    %s38 = scalar_select %p35, %s36, %s37
    %p41 = pneg %p35
    %p42 = scmp.eq.s32.totalorder %s12, 1
    %p43 = por %p41, %p42
    %p44 = scmp.ne.s32.totalorder %s36, %s39
    %p45 = scmp.eq.s32.totalorder %s12, 0
    %p46 = por %p44, %p45
    %p47 = scmp.ne.s32.totalorder %s36, %s39
    %p48 = scmp.eq.s32.totalorder %s17, 1
    %p49 = por %p47, %p48
    %p50 = scmp.ne.s32.totalorder %s39, %s40
    %p51 = scmp.eq.s32.totalorder %s17, 0
    %p52 = por %p50, %p51
    %p53 = scmp.ne.s32.totalorder %s39, %s40
    %p54 = scmp.eq.s32.totalorder %s18, 1
    %p55 = por %p53, %p54
    %p57 = scmp.ne.s32.totalorder %s40, %s56
    %p58 = scmp.eq.s32.totalorder %s18, 0
    %p59 = por %p57, %p58
    %s61 = sadd.s32 %s60, 1
    %p64 = scmp.eq.s32.totalorder %s12, 1
    %p65 = scmp.ne.s32.totalorder %s60, %s62
    %p66 = scmp.eq.s32.totalorder %s12, 0
    %p67 = por %p65, %p66
    %p68 = scmp.ne.s32.totalorder %s60, %s62
    %p69 = scmp.eq.s32.totalorder %s17, 1
    %p70 = por %p68, %p69
    %p71 = scmp.ne.s32.totalorder %s62, %s63
    %p72 = scmp.eq.s32.totalorder %s17, 0
    %p73 = por %p71, %p72
    %p74 = scmp.ne.s32.totalorder %s62, %s63
    %p75 = scmp.eq.s32.totalorder %s18, 1
    %p76 = por %p74, %p75
    %p78 = scmp.ne.s32.totalorder %s63, %s77
    %p79 = scmp.eq.s32.totalorder %s18, 0
    %p80 = por %p78, %p79
    %s82 = sadd.s32 %s81, 1
    %p85 = scmp.eq.s32.totalorder %s12, 1
    %p86 = scmp.ne.s32.totalorder %s81, %s83
    %p87 = scmp.eq.s32.totalorder %s12, 0
    %p88 = por %p86, %p87
    %p89 = scmp.ne.s32.totalorder %s81, %s83
    %p90 = scmp.eq.s32.totalorder %s17, 1
    %p91 = por %p89, %p90
    %p92 = scmp.ne.s32.totalorder %s83, %s84
    %p93 = scmp.eq.s32.totalorder %s17, 0
    %p94 = por %p92, %p93
    %p95 = scmp.ne.s32.totalorder %s83, %s84
    %p96 = scmp.eq.s32.totalorder %s18, 1
    %p97 = por %p95, %p96
    %p99 = scmp.ne.s32.totalorder %s84, %s98
    %p100 = scmp.eq.s32.totalorder %s18, 0
    %p101 = por %p99, %p100
    %s103 = sadd.s32 %s102, 1
    %p106 = scmp.eq.s32.totalorder %s12, 1
    %p107 = scmp.ne.s32.totalorder %s102, %s104
    %p108 = scmp.eq.s32.totalorder %s12, 0
    %p109 = por %p107, %p108
    %p110 = scmp.ne.s32.totalorder %s102, %s104
    %p111 = scmp.eq.s32.totalorder %s17, 1
    %p112 = por %p110, %p111
    %p113 = scmp.ne.s32.totalorder %s104, %s105
    %p114 = scmp.eq.s32.totalorder %s17, 0
    %p115 = por %p113, %p114
    %p116 = scmp.ne.s32.totalorder %s104, %s105
    %p117 = scmp.eq.s32.totalorder %s18, 1
    %p118 = por %p116, %p117
    %p120 = scmp.ne.s32.totalorder %s105, %s119
    %p121 = scmp.eq.s32.totalorder %s18, 0
    %p122 = por %p120, %p121
    %s124 = sadd.s32 %s123, 1
    %p127 = scmp.eq.s32.totalorder %s12, 1
    %p128 = scmp.ne.s32.totalorder %s123, %s125
    %p129 = scmp.eq.s32.totalorder %s12, 0
    %p130 = por %p128, %p129
    %p131 = scmp.ne.s32.totalorder %s123, %s125
    %p132 = scmp.eq.s32.totalorder %s17, 1
    %p133 = por %p131, %p132
    %p134 = scmp.ne.s32.totalorder %s125, %s126
    %p135 = scmp.eq.s32.totalorder %s17, 0
    %p136 = por %p134, %p135
    %p137 = scmp.ne.s32.totalorder %s125, %s126
    %p138 = scmp.eq.s32.totalorder %s18, 1
    %p139 = por %p137, %p138
    %p141 = scmp.ne.s32.totalorder %s126, %s140
    %p142 = scmp.eq.s32.totalorder %s18, 0
    %p143 = por %p141, %p142
    %s144 = ssub.s32 %s19, %s31
    %s145 = ssub.s32 %s20, %s27
    %s146 = sor.u32 %s144, %s145
    %p147 = scmp.eq.s32.totalorder %s146, 0
    %s149 = sadd.s32 %s148, 1
    %s150 = scalar_select %p147, %s148, %s149
    %p153 = pneg %p147
    %p154 = scmp.eq.s32.totalorder %s12, 1
    %p155 = por %p153, %p154
    %p156 = scmp.ne.s32.totalorder %s148, %s151
    %p157 = scmp.eq.s32.totalorder %s12, 0
    %p158 = por %p156, %p157
    %p159 = scmp.ne.s32.totalorder %s148, %s151
    %p160 = scmp.eq.s32.totalorder %s17, 1
    %p161 = por %p159, %p160
    %p162 = scmp.ne.s32.totalorder %s151, %s152
    %p163 = scmp.eq.s32.totalorder %s17, 0
    %p164 = por %p162, %p163
    %p165 = scmp.ne.s32.totalorder %s151, %s152
    %p166 = scmp.eq.s32.totalorder %s18, 1
    %p167 = por %p165, %p166
    %p169 = scmp.ne.s32.totalorder %s152, %s168
    %p170 = scmp.eq.s32.totalorder %s18, 0
    %p171 = por %p169, %p170
    %p172 = scmp.le.s32.totalorder 1, %s12
    %p173 = scmp.lt.s32.totalorder %s12, 3
    %p174 = pnand %p172, %p173
    %p175 = pneg %p174
    // Predicated region
    $region9: #{bert_ext_forward.27} parent=5 // pred_check
      _
    $region10: #{bert_ext_forward.27} parent=5 // pred_check_branch
      %177 = sbr.rel (%p174) target = $region12
    $region11: #{bert_ext_forward.27} parent=5 // pred_region
      %s178 = ssub.s32 %s12, 1
      // Predicated region
      $region13: #{bert_ext_forward.27} parent=11 // pred_check
        %p179 = pneg %p73
      $region14: #{bert_ext_forward.27} parent=11 // pred_check_branch
        %181 = sbr.rel (%p179) target = $region16
      $region15: #{bert_ext_forward.27} parent=11 // pred_region
        _
      $region16: #{bert_ext_forward.27} parent=11 // pred_fallthru
        _
      // Predicated region
      $region17: #{bert_ext_forward.27} parent=11 // pred_check
        %p182 = pneg %p94
      $region18: #{bert_ext_forward.27} parent=11 // pred_check_branch
        %184 = sbr.rel (%p182) target = $region20
      $region19: #{bert_ext_forward.27} parent=11 // pred_region
        _
      $region20: #{bert_ext_forward.27} parent=11 // pred_fallthru
        _
      // Predicated region
      $region21: #{bert_ext_forward.27} parent=11 // pred_check
        %p185 = pneg %p115
      $region22: #{bert_ext_forward.27} parent=11 // pred_check_branch
        %187 = sbr.rel (%p185) target = $region24
      $region23: #{bert_ext_forward.27} parent=11 // pred_region
        _
      $region24: #{bert_ext_forward.27} parent=11 // pred_fallthru
        _
      // Predicated region
      $region25: #{bert_ext_forward.27} parent=11 // pred_check
        %p188 = pneg %p136
      $region26: #{bert_ext_forward.27} parent=11 // pred_check_branch
        %190 = sbr.rel (%p188) target = $region28
      $region27: #{bert_ext_forward.27} parent=11 // pred_region
        _
      $region28: #{bert_ext_forward.27} parent=11 // pred_fallthru
        _
    $region12: #{bert_ext_forward.27} parent=5 // pred_fallthru
      _
    %p191 = scmp.lt.s32.totalorder %s12, 2
    // Predicated region
    $region29: #{bert_ext_forward.27} parent=5 // pred_check
      %p192 = pneg %p191
    $region30: #{bert_ext_forward.27} parent=5 // pred_check_branch
      %194 = sbr.rel (%p192) target = $region32
    $region31: #{bert_ext_forward.27} parent=5 // pred_region
      // Predicated region
      $region33: #{bert_ext_forward.27} parent=31 // pred_check
        %p195 = pneg %p46
      $region34: #{bert_ext_forward.27} parent=31 // pred_check_branch
        %197 = sbr.rel (%p195) target = $region36
      $region35: #{bert_ext_forward.27} parent=31 // pred_region
        %s198 = smul.u32 2, %s20
        %p199 = scmp.lt.s32.totalorder %s19, 1
        %s200 = scalar_select %p199, %s19, 1
        %p201 = scmp.lt.s32.totalorder %s198, 1
        %s202 = scalar_select %p201, %s198, 1
        %s203 = smul.addr %s200, 2
        %s204 = sadd.s32 %s202, %s203
        %s205 = smul.addr %s204, 4
        %s206 = scalar_lea.vmem %s0, %s205
        %s207 = smul.u32 2, %s20
      $region36: #{bert_ext_forward.27} parent=31 // pred_fallthru
        _
    $region32: #{bert_ext_forward.27} parent=5 // pred_fallthru
      _
    %p208 = scmp.le.s32.totalorder 1, %s12
    %p209 = scmp.lt.s32.totalorder %s12, 3
    %p210 = pnand %p208, %p209
    %p211 = pneg %p210
    // Predicated region
    $region37: #{bert_ext_forward.27} parent=5 // pred_check
      _
    $region38: #{bert_ext_forward.27} parent=5 // pred_check_branch
      %213 = sbr.rel (%p210) target = $region40
    $region39: #{bert_ext_forward.27} parent=5 // pred_region
      %s214 = ssub.s32 %s12, 1
      %s215 = smul.u32 2, %s22
      %p216 = scmp.lt.s32.totalorder %s21, 1
      %s217 = scalar_select %p216, %s21, 1
      %p218 = scmp.lt.s32.totalorder %s215, 1
      %s219 = scalar_select %p218, %s215, 1
      %s220 = smul.addr %s217, 2
      %s221 = sadd.s32 %s219, %s220
      %s222 = smul.addr %s221, 4
      %s223 = scalar_lea.vmem %s0, %s222
      %p224 = pneg %p52
      %p225 = pneg %p49
      %p226 = pneg %p73
      %p227 = pneg %p70
      %p228 = pneg %p94
      %p229 = pneg %p91
      %p230 = pneg %p115
      %p231 = pneg %p112
      %p232 = pneg %p136
      %p233 = pneg %p133
      %p234 = pneg %p164
      %p235 = pneg %p161
      %s236 = smul.u32 2, %s22
      %p237 = scmp.lt.s32.totalorder %s21, 1
      %s238 = scalar_select %p237, %s21, 1
      %p239 = scmp.lt.s32.totalorder %s236, 1
      %s240 = scalar_select %p239, %s236, 1
      %s241 = smul.addr %s238, 2
      %s242 = sadd.s32 %s240, %s241
      %s243 = smul.addr %s242, 8
      %s244 = scalar_lea.vmem %s5, %s243
      %s245 = smul.u32 2, %s22
      %p246 = scmp.lt.s32.totalorder %s21, 1
      %s247 = scalar_select %p246, %s21, 1
      %p248 = scmp.lt.s32.totalorder %s245, 1
      %s249 = scalar_select %p248, %s245, 1
      %s250 = smul.addr %s247, 2
      %s251 = sadd.s32 %s249, %s250
      %s252 = smul.addr %s251, 4
      %s253 = scalar_lea.vmem %s0, %s252
      %s254 = smul.u32 2, %s22
      %s255 = smul.u32 2, %s22
      %p256 = scmp.lt.s32.totalorder %s21, 1
      %s257 = scalar_select %p256, %s21, 1
      %p258 = scmp.lt.s32.totalorder %s255, 1
      %s259 = scalar_select %p258, %s255, 1
      %s260 = smul.addr %s257, 2
      %s261 = sadd.s32 %s259, %s260
      %s262 = smul.addr %s261, 8
      %s263 = scalar_lea.vmem %s5, %s262
      %s264 = smul.u32 2, %s22
      %v265 = vld [vmem:[%s253] sm:$0xf]
      %v266 = vld [vmem:[%s253 + $0x4] sm:$0xf]
      %v267 = vunpack.c.l.bf16 %v265
      %v268 = vunpack.c.l.bf16 %v266
      %v269 = vld [vmem:[%s1] sm:$0x1]
      %v270 = vld [vmem:[%s2] sm:$0x1]
      %vm271 = vcmask 261120
      %v272 = vsel %vm271, %v267, 0.0
      %273 = vadd.xlane.f32.xlu0 %v272
      %v274 = vpop.xlane.xlu0 %273
      %v275 = vsel %vm271, %v268, 0.0
      %276 = vadd.xlane.f32.xlu0 %v275
      %v277 = vpop.xlane.xlu0 %276
      %v278 = vrcp.pop 32.0
      %v279 = vmul.f32 32.0, %v278
      %v280 = vsub.f32 1.0, %v279
      %v281 = vmul.f32 %v278, %v280
      %v282 = vadd.f32 %v278, %v281
      %vm283 = vweird.f32 %v278
      %v284 = vsel %vm283, %v278, %v282
      %v285 = vmul.f32 %v274, %v284
      %v286 = vmul.f32 %v277, %v284
      %v287 = vsub.f32 %v267, %v285
      %v288 = vsub.f32 %v268, %v286
      %v289 = vmul.f32 %v287, %v287
      %v290 = vmul.f32 %v288, %v288
      %v291 = vsel %vm271, %v289, 0.0
      %292 = vadd.xlane.f32.xlu0 %v291
      %v293 = vpop.xlane.xlu0 %292
      %v294 = vsel %vm271, %v290, 0.0
      %295 = vadd.xlane.f32.xlu0 %v294
      %v296 = vpop.xlane.xlu0 %295
      %v297 = vmul.f32 %v293, %v284
      %v298 = vmul.f32 %v296, %v284
      %v299 = vadd.f32 %v297, 1e-06
      %v300 = vadd.f32 %v298, 1e-06
      %v301 = vrsqrt.pop %v299
      %v302 = vmul.f32 %v301, %v299
      %v303 = vmul.f32 %v302, %v301
      %v304 = vmul.f32 0.5, %v303
      %v305 = vsub.f32 1.5, %v304
      %v306 = vmul.f32 %v301, %v305
      %vm307 = vweird.f32 %v299
      %vm308 = vweird.f32 %v301
      %vm309 = vmor %vm307, %vm308
      %v310 = vsel %vm309, %v301, %v306
      %v311 = vrsqrt.pop %v300
      %v312 = vmul.f32 %v311, %v300
      %v313 = vmul.f32 %v312, %v311
      %v314 = vmul.f32 0.5, %v313
      %v315 = vsub.f32 1.5, %v314
      %v316 = vmul.f32 %v311, %v315
      %vm317 = vweird.f32 %v300
      %vm318 = vweird.f32 %v311
      %vm319 = vmor %vm317, %vm318
      %v320 = vsel %vm319, %v311, %v316
      %v321 = vmul.f32 %v287, %v310
      %v322 = vmul.f32 %v288, %v320
      %v324 = vperm.slane %v269, 0
      %v326 = vmul.f32 %v321, %v324
      %v327 = vmul.f32 %v322, %v324
      %v329 = vperm.slane %v270, 0
      %v331 = vadd.f32 %v326, %v329
      %v332 = vadd.f32 %v327, %v329
      %v333 = vld [vmem:[%s3] sm:$0x1]
      %v335 = vperm.slane %v333, 0
      %v337 = vmul.f32 %v331, %v335
      %v338 = vmul.f32 %v332, %v335
      %v339 = vsel %vm271, %v337, 0.0
      %340 = vadd.xlane.f32.xlu0 %v339
      %v341 = vpop.xlane.xlu0 %340
      %v342 = vsel %vm271, %v338, 0.0
      %343 = vadd.xlane.f32.xlu0 %v342
      %v344 = vpop.xlane.xlu0 %343
      %s345 = sld [smem:[#allocation2]]
      %v346 = vstv %s345
      %v347 = vadd.f32 %v341, %v346
      %v348 = vadd.f32 %v344, %v346
      %v349 = vmul.f32 %v347, 0.5
      %v350 = vmul.f32 %v348, 0.5
      %v351 = vtanh.pop %v349
      %v352 = vtanh.pop %v350
      %v353 = vadd.f32 %v351, 1.0
      %v354 = vadd.f32 %v352, 1.0
      %v355 = vmul.f32 %v353, 0.5
      %v356 = vmul.f32 %v354, 0.5
      %357 = vst [vmem:[%s263] sm:$0xff] %v355
      %358 = vst [vmem:[%s263 + $0x8] sm:$0xff] %v356
      %s359 = smul.u32 2, %s22
      %p360 = scmp.lt.s32.totalorder %s21, 1
      %s361 = scalar_select %p360, %s21, 1
      %p362 = scmp.lt.s32.totalorder %s359, 1
      %s363 = scalar_select %p362, %s359, 1
      %s364 = smul.addr %s361, 2
      %s365 = sadd.s32 %s363, %s364
      %s366 = smul.addr %s365, 8
      %s367 = scalar_lea.vmem %s5, %s366
      // Predicated region
      $region41: #{bert_ext_forward.27} parent=39 // pred_check
        %p368 = pneg %p161
      $region42: #{bert_ext_forward.27} parent=39 // pred_check_branch
        %370 = sbr.rel (%p368) target = $region44
      $region43: #{bert_ext_forward.27} parent=39 // pred_region
        %s371 = smul.u32 2, %s22
      $region44: #{bert_ext_forward.27} parent=39 // pred_fallthru
        _
    $region40: #{bert_ext_forward.27} parent=5 // pred_fallthru
      _
    %p372 = scmp.le.s32.totalorder 2, %s12
    // Predicated region
    $region45: #{bert_ext_forward.27} parent=5 // pred_check
      %p373 = pneg %p372
    $region46: #{bert_ext_forward.27} parent=5 // pred_check_branch
      %375 = sbr.rel (%p373) target = $region48
    $region47: #{bert_ext_forward.27} parent=5 // pred_region
      %s376 = ssub.s32 %s12, 2
      // Predicated region
      $region49: #{bert_ext_forward.27} parent=47 // pred_check
        %p377 = pneg %p167
      $region50: #{bert_ext_forward.27} parent=47 // pred_check_branch
        %379 = sbr.rel (%p377) target = $region52
      $region51: #{bert_ext_forward.27} parent=47 // pred_region
        %s380 = smul.u32 2, %s24
        %p381 = scmp.lt.s32.totalorder %s23, 1
        %s382 = scalar_select %p381, %s23, 1
        %p383 = scmp.lt.s32.totalorder %s380, 1
        %s384 = scalar_select %p383, %s380, 1
        %s385 = smul.addr %s382, 2
        %s386 = sadd.s32 %s384, %s385
        %s387 = smul.addr %s386, 8
        %s388 = scalar_lea.vmem %s5, %s387
      $region52: #{bert_ext_forward.27} parent=47 // pred_fallthru
        _
    $region48: #{bert_ext_forward.27} parent=5 // pred_fallthru
      _
  $region6: #{bert_ext_forward.27} parent=0 // loop_footer
    %s16 = sadd.s32 1, %s12
  $region7: #{bert_ext_forward.27} parent=0 // loop_footer_branch
    %11 = sbr.rel target = $region3
  $region8: #{bert_ext_forward.27} parent=0 // loop_exit
    _

// kernel: bert_ext_forward.23
$region0: #{bert_ext_forward.23}
  #allocation0 [shape = 'u32[]', space=smem, size = 0x4, offset = 0x4, fixed_abs, tag = 'smem constant byte address 0x4 - core index']
  #allocation1 [shape = 'u32[72,128]{1,0:T(1,128)}', space=vmem, size = 0x9000, scoped, tag = 'internal scratch']
  %s0 = inlined_call_operand.vmem [shape: bf16[2,16,32], index: 0, kind: input, shape index: {}]
  %s1 = inlined_call_operand.vmem [shape: bf16[2,16,32], index: 1, kind: input, shape index: {}]
  %s2 = inlined_call_operand.vmem [shape: bf16[32,32], index: 2, kind: input, shape index: {}]
  %s3 = inlined_call_operand.vmem [shape: f32[1,32], index: 3, kind: input, shape index: {}]
  %s4 = inlined_call_operand.vmem [shape: f32[1,32], index: 4, kind: input, shape index: {}]
  %s5 = inlined_call_operand.vmem [shape: f32[1,32], index: 5, kind: input, shape index: {}]
  %s6 = inlined_call_operand.vmem [shape: bf16[32,64], index: 6, kind: input, shape index: {}]
  %s7 = inlined_call_operand.vmem [shape: f32[1,64], index: 7, kind: input, shape index: {}]
  %s8 = inlined_call_operand.vmem [shape: bf16[64,32], index: 8, kind: input, shape index: {}]
  %s9 = inlined_call_operand.vmem [shape: f32[1,32], index: 9, kind: input, shape index: {}]
  %s10 = inlined_call_operand.vmem [shape: f32[1,32], index: 10, kind: input, shape index: {}]
  %s11 = inlined_call_operand.vmem [shape: f32[1,32], index: 11, kind: input, shape index: {}]
  %s12 = inlined_call_operand.vmem [shape: bf16[2,16,32], index: 12, kind: output, shape index: {}]
  %s13 = sld [smem:[#allocation0]]
  $region81: #{bert_ext_forward.23} parent=0
    _
  %s15 = ssub.s32 1, %s13
  %s16 = scalar_select 0, %s15, %s13
  loop: start=0, step=1, limit=4
  $region2: #{bert_ext_forward.23} parent=0 // loop_pre_header
    _
  $region3: #{bert_ext_forward.23} parent=0 // loop_header
    %s18 = sphi 0, %s22
    %p19 = scmp.ge.s32.totalorder %s18, 4
    %s25 = sphi 0, %s37
    %s26 = sphi 0, %s33
    %s27 = sphi 0, %s25
    %s28 = sphi 0, %s26
    %s29 = sphi 0, %s27
    %s30 = sphi 0, %s28
    %s42 = sphi 0, %s44
    %s45 = sphi 0, %s42
    %s46 = sphi 0, %s45
    %s62 = sphi 0, %s46
    %s70 = sphi 0, %s72
    %s73 = sphi 0, %s70
    %s74 = sphi 0, %s73
    %s90 = sphi 0, %s74
    %s94 = sphi 0, %s94
    %s96 = sphi 0, %s94
    %s97 = sphi 0, %s96
    %s111 = sphi 0, %s97
    %s115 = sphi 0, %s115
    %s117 = sphi 0, %s115
    %s118 = sphi 0, %s117
    %s132 = sphi 0, %s118
    %s136 = sphi 0, %s136
    %s138 = sphi 0, %s136
    %s139 = sphi 0, %s138
    %s153 = sphi 0, %s139
    %s157 = sphi 0, %s157
    %s159 = sphi 0, %s157
    %s160 = sphi 0, %s159
    %s174 = sphi 0, %s160
    %s178 = sphi 0, %s178
    %s180 = sphi 0, %s178
    %s181 = sphi 0, %s180
    %s195 = sphi 0, %s181
    %s199 = sphi 0, %s199
    %s201 = sphi 0, %s199
    %s202 = sphi 0, %s201
    %s216 = sphi 0, %s202
    %s220 = sphi 0, %s220
    %s222 = sphi 0, %s220
    %s223 = sphi 0, %s222
    %s237 = sphi 0, %s223
    %s241 = sphi 0, %s241
    %s243 = sphi 0, %s241
    %s244 = sphi 0, %s243
    %s258 = sphi 0, %s244
    %s262 = sphi 0, %s262
    %s264 = sphi 0, %s262
    %s265 = sphi 0, %s264
    %s279 = sphi 0, %s265
    %s283 = sphi 0, %s283
    %s285 = sphi 0, %s283
    %s286 = sphi 0, %s285
    %s300 = sphi 0, %s286
    %s308 = sphi 0, %s310
    %s311 = sphi 0, %s308
    %s312 = sphi 0, %s311
    %s328 = sphi 0, %s312
  $region4: #{bert_ext_forward.23} parent=0 // loop_header_branch
    %21 = sbr.rel (%p19) target = $region8
  $region5: #{bert_ext_forward.23} parent=0 // loop_body
    %s23 = ssub.s32 %s18, 1
    %s24 = ssub.s32 %s18, 2
    %s31 = sadd.s32 1, %s26
    %p32 = scmp.ge.s32.totalorder %s31, 1
    %s33 = scalar_select %p32, 0, %s31
    %s34 = sadd.s32 1, %s25
    %s35 = scalar_select %p32, %s34, %s25
    %p36 = scmp.ge.s32.totalorder %s35, 2
    %s37 = scalar_select %p36, 0, %s35
    %s38 = ssub.s32 %s25, %s37
    %s39 = ssub.s32 %s26, %s33
    %s40 = sor.u32 %s38, %s39
    %p41 = scmp.eq.s32.totalorder %s40, 0
    %s43 = sadd.s32 %s42, 1
    %s44 = scalar_select %p41, %s42, %s43
    %p47 = pneg %p41
    %p48 = scmp.eq.s32.totalorder %s18, 1
    %p49 = por %p47, %p48
    %p50 = scmp.ne.s32.totalorder %s42, %s45
    %p51 = scmp.eq.s32.totalorder %s18, 0
    %p52 = por %p50, %p51
    %p53 = scmp.ne.s32.totalorder %s42, %s45
    %p54 = scmp.eq.s32.totalorder %s23, 1
    %p55 = por %p53, %p54
    %p56 = scmp.ne.s32.totalorder %s45, %s46
    %p57 = scmp.eq.s32.totalorder %s23, 0
    %p58 = por %p56, %p57
    %p59 = scmp.ne.s32.totalorder %s45, %s46
    %p60 = scmp.eq.s32.totalorder %s24, 1
    %p61 = por %p59, %p60
    %p63 = scmp.ne.s32.totalorder %s46, %s62
    %p64 = scmp.eq.s32.totalorder %s24, 0
    %p65 = por %p63, %p64
    %s66 = ssub.s32 %s25, %s37
    %s67 = ssub.s32 %s26, %s33
    %s68 = sor.u32 %s66, %s67
    %p69 = scmp.eq.s32.totalorder %s68, 0
    %s71 = sadd.s32 %s70, 1
    %s72 = scalar_select %p69, %s70, %s71
    %p75 = pneg %p69
    %p76 = scmp.eq.s32.totalorder %s18, 1
    %p77 = por %p75, %p76
    %p78 = scmp.ne.s32.totalorder %s70, %s73
    %p79 = scmp.eq.s32.totalorder %s18, 0
    %p80 = por %p78, %p79
    %p81 = scmp.ne.s32.totalorder %s70, %s73
    %p82 = scmp.eq.s32.totalorder %s23, 1
    %p83 = por %p81, %p82
    %p84 = scmp.ne.s32.totalorder %s73, %s74
    %p85 = scmp.eq.s32.totalorder %s23, 0
    %p86 = por %p84, %p85
    %p87 = scmp.ne.s32.totalorder %s73, %s74
    %p88 = scmp.eq.s32.totalorder %s24, 1
    %p89 = por %p87, %p88
    %p91 = scmp.ne.s32.totalorder %s74, %s90
    %p92 = scmp.eq.s32.totalorder %s24, 0
    %p93 = por %p91, %p92
    %s95 = sadd.s32 %s94, 1
    %p98 = scmp.eq.s32.totalorder %s18, 1
    %p99 = scmp.ne.s32.totalorder %s94, %s96
    %p100 = scmp.eq.s32.totalorder %s18, 0
    %p101 = por %p99, %p100
    %p102 = scmp.ne.s32.totalorder %s94, %s96
    %p103 = scmp.eq.s32.totalorder %s23, 1
    %p104 = por %p102, %p103
    %p105 = scmp.ne.s32.totalorder %s96, %s97
    %p106 = scmp.eq.s32.totalorder %s23, 0
    %p107 = por %p105, %p106
    %p108 = scmp.ne.s32.totalorder %s96, %s97
    %p109 = scmp.eq.s32.totalorder %s24, 1
    %p110 = por %p108, %p109
    %p112 = scmp.ne.s32.totalorder %s97, %s111
    %p113 = scmp.eq.s32.totalorder %s24, 0
    %p114 = por %p112, %p113
    %s116 = sadd.s32 %s115, 1
    %p119 = scmp.eq.s32.totalorder %s18, 1
    %p120 = scmp.ne.s32.totalorder %s115, %s117
    %p121 = scmp.eq.s32.totalorder %s18, 0
    %p122 = por %p120, %p121
    %p123 = scmp.ne.s32.totalorder %s115, %s117
    %p124 = scmp.eq.s32.totalorder %s23, 1
    %p125 = por %p123, %p124
    %p126 = scmp.ne.s32.totalorder %s117, %s118
    %p127 = scmp.eq.s32.totalorder %s23, 0
    %p128 = por %p126, %p127
    %p129 = scmp.ne.s32.totalorder %s117, %s118
    %p130 = scmp.eq.s32.totalorder %s24, 1
    %p131 = por %p129, %p130
    %p133 = scmp.ne.s32.totalorder %s118, %s132
    %p134 = scmp.eq.s32.totalorder %s24, 0
    %p135 = por %p133, %p134
    %s137 = sadd.s32 %s136, 1
    %p140 = scmp.eq.s32.totalorder %s18, 1
    %p141 = scmp.ne.s32.totalorder %s136, %s138
    %p142 = scmp.eq.s32.totalorder %s18, 0
    %p143 = por %p141, %p142
    %p144 = scmp.ne.s32.totalorder %s136, %s138
    %p145 = scmp.eq.s32.totalorder %s23, 1
    %p146 = por %p144, %p145
    %p147 = scmp.ne.s32.totalorder %s138, %s139
    %p148 = scmp.eq.s32.totalorder %s23, 0
    %p149 = por %p147, %p148
    %p150 = scmp.ne.s32.totalorder %s138, %s139
    %p151 = scmp.eq.s32.totalorder %s24, 1
    %p152 = por %p150, %p151
    %p154 = scmp.ne.s32.totalorder %s139, %s153
    %p155 = scmp.eq.s32.totalorder %s24, 0
    %p156 = por %p154, %p155
    %s158 = sadd.s32 %s157, 1
    %p161 = scmp.eq.s32.totalorder %s18, 1
    %p162 = scmp.ne.s32.totalorder %s157, %s159
    %p163 = scmp.eq.s32.totalorder %s18, 0
    %p164 = por %p162, %p163
    %p165 = scmp.ne.s32.totalorder %s157, %s159
    %p166 = scmp.eq.s32.totalorder %s23, 1
    %p167 = por %p165, %p166
    %p168 = scmp.ne.s32.totalorder %s159, %s160
    %p169 = scmp.eq.s32.totalorder %s23, 0
    %p170 = por %p168, %p169
    %p171 = scmp.ne.s32.totalorder %s159, %s160
    %p172 = scmp.eq.s32.totalorder %s24, 1
    %p173 = por %p171, %p172
    %p175 = scmp.ne.s32.totalorder %s160, %s174
    %p176 = scmp.eq.s32.totalorder %s24, 0
    %p177 = por %p175, %p176
    %s179 = sadd.s32 %s178, 1
    %p182 = scmp.eq.s32.totalorder %s18, 1
    %p183 = scmp.ne.s32.totalorder %s178, %s180
    %p184 = scmp.eq.s32.totalorder %s18, 0
    %p185 = por %p183, %p184
    %p186 = scmp.ne.s32.totalorder %s178, %s180
    %p187 = scmp.eq.s32.totalorder %s23, 1
    %p188 = por %p186, %p187
    %p189 = scmp.ne.s32.totalorder %s180, %s181
    %p190 = scmp.eq.s32.totalorder %s23, 0
    %p191 = por %p189, %p190
    %p192 = scmp.ne.s32.totalorder %s180, %s181
    %p193 = scmp.eq.s32.totalorder %s24, 1
    %p194 = por %p192, %p193
    %p196 = scmp.ne.s32.totalorder %s181, %s195
    %p197 = scmp.eq.s32.totalorder %s24, 0
    %p198 = por %p196, %p197
    %s200 = sadd.s32 %s199, 1
    %p203 = scmp.eq.s32.totalorder %s18, 1
    %p204 = scmp.ne.s32.totalorder %s199, %s201
    %p205 = scmp.eq.s32.totalorder %s18, 0
    %p206 = por %p204, %p205
    %p207 = scmp.ne.s32.totalorder %s199, %s201
    %p208 = scmp.eq.s32.totalorder %s23, 1
    %p209 = por %p207, %p208
    %p210 = scmp.ne.s32.totalorder %s201, %s202
    %p211 = scmp.eq.s32.totalorder %s23, 0
    %p212 = por %p210, %p211
    %p213 = scmp.ne.s32.totalorder %s201, %s202
    %p214 = scmp.eq.s32.totalorder %s24, 1
    %p215 = por %p213, %p214
    %p217 = scmp.ne.s32.totalorder %s202, %s216
    %p218 = scmp.eq.s32.totalorder %s24, 0
    %p219 = por %p217, %p218
    %s221 = sadd.s32 %s220, 1
    %p224 = scmp.eq.s32.totalorder %s18, 1
    %p225 = scmp.ne.s32.totalorder %s220, %s222
    %p226 = scmp.eq.s32.totalorder %s18, 0
    %p227 = por %p225, %p226
    %p228 = scmp.ne.s32.totalorder %s220, %s222
    %p229 = scmp.eq.s32.totalorder %s23, 1
    %p230 = por %p228, %p229
    %p231 = scmp.ne.s32.totalorder %s222, %s223
    %p232 = scmp.eq.s32.totalorder %s23, 0
    %p233 = por %p231, %p232
    %p234 = scmp.ne.s32.totalorder %s222, %s223
    %p235 = scmp.eq.s32.totalorder %s24, 1
    %p236 = por %p234, %p235
    %p238 = scmp.ne.s32.totalorder %s223, %s237
    %p239 = scmp.eq.s32.totalorder %s24, 0
    %p240 = por %p238, %p239
    %s242 = sadd.s32 %s241, 1
    %p245 = scmp.eq.s32.totalorder %s18, 1
    %p246 = scmp.ne.s32.totalorder %s241, %s243
    %p247 = scmp.eq.s32.totalorder %s18, 0
    %p248 = por %p246, %p247
    %p249 = scmp.ne.s32.totalorder %s241, %s243
    %p250 = scmp.eq.s32.totalorder %s23, 1
    %p251 = por %p249, %p250
    %p252 = scmp.ne.s32.totalorder %s243, %s244
    %p253 = scmp.eq.s32.totalorder %s23, 0
    %p254 = por %p252, %p253
    %p255 = scmp.ne.s32.totalorder %s243, %s244
    %p256 = scmp.eq.s32.totalorder %s24, 1
    %p257 = por %p255, %p256
    %p259 = scmp.ne.s32.totalorder %s244, %s258
    %p260 = scmp.eq.s32.totalorder %s24, 0
    %p261 = por %p259, %p260
    %s263 = sadd.s32 %s262, 1
    %p266 = scmp.eq.s32.totalorder %s18, 1
    %p267 = scmp.ne.s32.totalorder %s262, %s264
    %p268 = scmp.eq.s32.totalorder %s18, 0
    %p269 = por %p267, %p268
    %p270 = scmp.ne.s32.totalorder %s262, %s264
    %p271 = scmp.eq.s32.totalorder %s23, 1
    %p272 = por %p270, %p271
    %p273 = scmp.ne.s32.totalorder %s264, %s265
    %p274 = scmp.eq.s32.totalorder %s23, 0
    %p275 = por %p273, %p274
    %p276 = scmp.ne.s32.totalorder %s264, %s265
    %p277 = scmp.eq.s32.totalorder %s24, 1
    %p278 = por %p276, %p277
    %p280 = scmp.ne.s32.totalorder %s265, %s279
    %p281 = scmp.eq.s32.totalorder %s24, 0
    %p282 = por %p280, %p281
    %s284 = sadd.s32 %s283, 1
    %p287 = scmp.eq.s32.totalorder %s18, 1
    %p288 = scmp.ne.s32.totalorder %s283, %s285
    %p289 = scmp.eq.s32.totalorder %s18, 0
    %p290 = por %p288, %p289
    %p291 = scmp.ne.s32.totalorder %s283, %s285
    %p292 = scmp.eq.s32.totalorder %s23, 1
    %p293 = por %p291, %p292
    %p294 = scmp.ne.s32.totalorder %s285, %s286
    %p295 = scmp.eq.s32.totalorder %s23, 0
    %p296 = por %p294, %p295
    %p297 = scmp.ne.s32.totalorder %s285, %s286
    %p298 = scmp.eq.s32.totalorder %s24, 1
    %p299 = por %p297, %p298
    %p301 = scmp.ne.s32.totalorder %s286, %s300
    %p302 = scmp.eq.s32.totalorder %s24, 0
    %p303 = por %p301, %p302
    %s304 = ssub.s32 %s25, %s37
    %s305 = ssub.s32 %s26, %s33
    %s306 = sor.u32 %s304, %s305
    %p307 = scmp.eq.s32.totalorder %s306, 0
    %s309 = sadd.s32 %s308, 1
    %s310 = scalar_select %p307, %s308, %s309
    %p313 = pneg %p307
    %p314 = scmp.eq.s32.totalorder %s18, 1
    %p315 = por %p313, %p314
    %p316 = scmp.ne.s32.totalorder %s308, %s311
    %p317 = scmp.eq.s32.totalorder %s18, 0
    %p318 = por %p316, %p317
    %p319 = scmp.ne.s32.totalorder %s308, %s311
    %p320 = scmp.eq.s32.totalorder %s23, 1
    %p321 = por %p319, %p320
    %p322 = scmp.ne.s32.totalorder %s311, %s312
    %p323 = scmp.eq.s32.totalorder %s23, 0
    %p324 = por %p322, %p323
    %p325 = scmp.ne.s32.totalorder %s311, %s312
    %p326 = scmp.eq.s32.totalorder %s24, 1
    %p327 = por %p325, %p326
    %p329 = scmp.ne.s32.totalorder %s312, %s328
    %p330 = scmp.eq.s32.totalorder %s24, 0
    %p331 = por %p329, %p330
    %p332 = scmp.le.s32.totalorder 1, %s18
    %p333 = scmp.lt.s32.totalorder %s18, 3
    %p334 = pnand %p332, %p333
    %p335 = pneg %p334
    // Predicated region
    $region9: #{bert_ext_forward.23} parent=5 // pred_check
      _
    $region10: #{bert_ext_forward.23} parent=5 // pred_check_branch
      %337 = sbr.rel (%p334) target = $region12
    $region11: #{bert_ext_forward.23} parent=5 // pred_region
      %s338 = ssub.s32 %s18, 1
      // Predicated region
      $region13: #{bert_ext_forward.23} parent=11 // pred_check
        %p339 = pneg %p107
      $region14: #{bert_ext_forward.23} parent=11 // pred_check_branch
        %341 = sbr.rel (%p339) target = $region16
      $region15: #{bert_ext_forward.23} parent=11 // pred_region
        _
      $region16: #{bert_ext_forward.23} parent=11 // pred_fallthru
        _
      // Predicated region
      $region17: #{bert_ext_forward.23} parent=11 // pred_check
        %p342 = pneg %p128
      $region18: #{bert_ext_forward.23} parent=11 // pred_check_branch
        %344 = sbr.rel (%p342) target = $region20
      $region19: #{bert_ext_forward.23} parent=11 // pred_region
        _
      $region20: #{bert_ext_forward.23} parent=11 // pred_fallthru
        _
      // Predicated region
      $region21: #{bert_ext_forward.23} parent=11 // pred_check
        %p345 = pneg %p149
      $region22: #{bert_ext_forward.23} parent=11 // pred_check_branch
        %347 = sbr.rel (%p345) target = $region24
      $region23: #{bert_ext_forward.23} parent=11 // pred_region
        _
      $region24: #{bert_ext_forward.23} parent=11 // pred_fallthru
        _
      // Predicated region
      $region25: #{bert_ext_forward.23} parent=11 // pred_check
        %p348 = pneg %p170
      $region26: #{bert_ext_forward.23} parent=11 // pred_check_branch
        %350 = sbr.rel (%p348) target = $region28
      $region27: #{bert_ext_forward.23} parent=11 // pred_region
        _
      $region28: #{bert_ext_forward.23} parent=11 // pred_fallthru
        _
      // Predicated region
      $region29: #{bert_ext_forward.23} parent=11 // pred_check
        %p351 = pneg %p191
      $region30: #{bert_ext_forward.23} parent=11 // pred_check_branch
        %353 = sbr.rel (%p351) target = $region32
      $region31: #{bert_ext_forward.23} parent=11 // pred_region
        _
      $region32: #{bert_ext_forward.23} parent=11 // pred_fallthru
        _
      // Predicated region
      $region33: #{bert_ext_forward.23} parent=11 // pred_check
        %p354 = pneg %p212
      $region34: #{bert_ext_forward.23} parent=11 // pred_check_branch
        %356 = sbr.rel (%p354) target = $region36
      $region35: #{bert_ext_forward.23} parent=11 // pred_region
        _
      $region36: #{bert_ext_forward.23} parent=11 // pred_fallthru
        _
      // Predicated region
      $region37: #{bert_ext_forward.23} parent=11 // pred_check
        %p357 = pneg %p233
      $region38: #{bert_ext_forward.23} parent=11 // pred_check_branch
        %359 = sbr.rel (%p357) target = $region40
      $region39: #{bert_ext_forward.23} parent=11 // pred_region
        _
      $region40: #{bert_ext_forward.23} parent=11 // pred_fallthru
        _
      // Predicated region
      $region41: #{bert_ext_forward.23} parent=11 // pred_check
        %p360 = pneg %p254
      $region42: #{bert_ext_forward.23} parent=11 // pred_check_branch
        %362 = sbr.rel (%p360) target = $region44
      $region43: #{bert_ext_forward.23} parent=11 // pred_region
        _
      $region44: #{bert_ext_forward.23} parent=11 // pred_fallthru
        _
      // Predicated region
      $region45: #{bert_ext_forward.23} parent=11 // pred_check
        %p363 = pneg %p275
      $region46: #{bert_ext_forward.23} parent=11 // pred_check_branch
        %365 = sbr.rel (%p363) target = $region48
      $region47: #{bert_ext_forward.23} parent=11 // pred_region
        _
      $region48: #{bert_ext_forward.23} parent=11 // pred_fallthru
        _
      // Predicated region
      $region49: #{bert_ext_forward.23} parent=11 // pred_check
        %p366 = pneg %p296
      $region50: #{bert_ext_forward.23} parent=11 // pred_check_branch
        %368 = sbr.rel (%p366) target = $region52
      $region51: #{bert_ext_forward.23} parent=11 // pred_region
        _
      $region52: #{bert_ext_forward.23} parent=11 // pred_fallthru
        _
    $region12: #{bert_ext_forward.23} parent=5 // pred_fallthru
      _
    %p369 = scmp.lt.s32.totalorder %s18, 2
    // Predicated region
    $region53: #{bert_ext_forward.23} parent=5 // pred_check
      %p370 = pneg %p369
    $region54: #{bert_ext_forward.23} parent=5 // pred_check_branch
      %372 = sbr.rel (%p370) target = $region56
    $region55: #{bert_ext_forward.23} parent=5 // pred_region
      // Predicated region
      $region57: #{bert_ext_forward.23} parent=55 // pred_check
        %p373 = pneg %p52
      $region58: #{bert_ext_forward.23} parent=55 // pred_check_branch
        %375 = sbr.rel (%p373) target = $region60
      $region59: #{bert_ext_forward.23} parent=55 // pred_region
        %s376 = smul.u32 2, %s26
        %p377 = scmp.lt.s32.totalorder %s25, 1
        %s378 = scalar_select %p377, %s25, 1
        %p379 = scmp.lt.s32.totalorder %s376, 1
        %s380 = scalar_select %p379, %s376, 1
        %s381 = smul.addr %s378, 2
        %s382 = sadd.s32 %s380, %s381
        %s383 = smul.addr %s382, 4
        %s384 = scalar_lea.vmem %s0, %s383
        %s385 = smul.u32 2, %s26
      $region60: #{bert_ext_forward.23} parent=55 // pred_fallthru
        _
      // Predicated region
      $region61: #{bert_ext_forward.23} parent=55 // pred_check
        %p386 = pneg %p80
      $region62: #{bert_ext_forward.23} parent=55 // pred_check_branch
        %388 = sbr.rel (%p386) target = $region64
      $region63: #{bert_ext_forward.23} parent=55 // pred_region
        %s389 = smul.u32 2, %s26
        %p390 = scmp.lt.s32.totalorder %s25, 1
        %s391 = scalar_select %p390, %s25, 1
        %p392 = scmp.lt.s32.totalorder %s389, 1
        %s393 = scalar_select %p392, %s389, 1
        %s394 = smul.addr %s391, 2
        %s395 = sadd.s32 %s393, %s394
        %s396 = smul.addr %s395, 4
        %s397 = scalar_lea.vmem %s1, %s396
        %s398 = smul.u32 2, %s26
      $region64: #{bert_ext_forward.23} parent=55 // pred_fallthru
        _
    $region56: #{bert_ext_forward.23} parent=5 // pred_fallthru
      _
    %p399 = scmp.le.s32.totalorder 1, %s18
    %p400 = scmp.lt.s32.totalorder %s18, 3
    %p401 = pnand %p399, %p400
    %p402 = pneg %p401
    // Predicated region
    $region65: #{bert_ext_forward.23} parent=5 // pred_check
      _
    $region66: #{bert_ext_forward.23} parent=5 // pred_check_branch
      %404 = sbr.rel (%p401) target = $region68
    $region67: #{bert_ext_forward.23} parent=5 // pred_region
      %s405 = ssub.s32 %s18, 1
      %s406 = smul.u32 2, %s28
      %p407 = scmp.lt.s32.totalorder %s27, 1
      %s408 = scalar_select %p407, %s27, 1
      %p409 = scmp.lt.s32.totalorder %s406, 1
      %s410 = scalar_select %p409, %s406, 1
      %s411 = smul.addr %s408, 2
      %s412 = sadd.s32 %s410, %s411
      %s413 = smul.addr %s412, 4
      %s414 = scalar_lea.vmem %s0, %s413
      %p415 = pneg %p58
      %p416 = pneg %p55
      %s417 = smul.u32 2, %s28
      %p418 = scmp.lt.s32.totalorder %s27, 1
      %s419 = scalar_select %p418, %s27, 1
      %p420 = scmp.lt.s32.totalorder %s417, 1
      %s421 = scalar_select %p420, %s417, 1
      %s422 = smul.addr %s419, 2
      %s423 = sadd.s32 %s421, %s422
      %s424 = smul.addr %s423, 4
      %s425 = scalar_lea.vmem %s1, %s424
      %p426 = pneg %p86
      %p427 = pneg %p83
      %p428 = pneg %p107
      %p429 = pneg %p104
      %p430 = pneg %p128
      %p431 = pneg %p125
      %p432 = pneg %p149
      %p433 = pneg %p146
      %p434 = pneg %p170
      %p435 = pneg %p167
      %p436 = pneg %p191
      %p437 = pneg %p188
      %p438 = pneg %p212
      %p439 = pneg %p209
      %p440 = pneg %p233
      %p441 = pneg %p230
      %p442 = pneg %p254
      %p443 = pneg %p251
      %p444 = pneg %p275
      %p445 = pneg %p272
      %p446 = pneg %p296
      %p447 = pneg %p293
      %p448 = pneg %p324
      %p449 = pneg %p321
      %s450 = smul.u32 2, %s28
      %p451 = scmp.lt.s32.totalorder %s27, 1
      %s452 = scalar_select %p451, %s27, 1
      %p453 = scmp.lt.s32.totalorder %s450, 1
      %s454 = scalar_select %p453, %s450, 1
      %s455 = smul.addr %s452, 2
      %s456 = sadd.s32 %s454, %s455
      %s457 = smul.addr %s456, 4
      %s458 = scalar_lea.vmem %s12, %s457
      %s459 = smul.u32 2, %s28
      %p460 = scmp.lt.s32.totalorder %s27, 1
      %s461 = scalar_select %p460, %s27, 1
      %p462 = scmp.lt.s32.totalorder %s459, 1
      %s463 = scalar_select %p462, %s459, 1
      %s464 = smul.addr %s461, 2
      %s465 = sadd.s32 %s463, %s464
      %s466 = smul.addr %s465, 4
      %s467 = scalar_lea.vmem %s0, %s466
      %s468 = smul.u32 2, %s28
      %s469 = smul.u32 2, %s28
      %p470 = scmp.lt.s32.totalorder %s27, 1
      %s471 = scalar_select %p470, %s27, 1
      %p472 = scmp.lt.s32.totalorder %s469, 1
      %s473 = scalar_select %p472, %s469, 1
      %s474 = smul.addr %s471, 2
      %s475 = sadd.s32 %s473, %s474
      %s476 = smul.addr %s475, 4
      %s477 = scalar_lea.vmem %s1, %s476
      %s478 = smul.u32 2, %s28
      %s479 = smul.u32 2, %s28
      %p480 = scmp.lt.s32.totalorder %s27, 1
      %s481 = scalar_select %p480, %s27, 1
      %p482 = scmp.lt.s32.totalorder %s479, 1
      %s483 = scalar_select %p482, %s479, 1
      %s484 = smul.addr %s481, 2
      %s485 = sadd.s32 %s483, %s484
      %s486 = smul.addr %s485, 4
      %s487 = scalar_lea.vmem %s12, %s486
      %s488 = smul.u32 2, %s28
      %v490 = vld [vmem:[%s467] sm:$0xf]
      %v491 = vld [vmem:[%s467 + $0x4] sm:$0xf]
      %v492 = vld [vmem:[%s2] sm:$0xf]
      %v493 = vld [vmem:[%s2 + $0x4] sm:$0xf]
      %v494 = vld [vmem:[%s2 + $0x8] sm:$0xf]
      %v495 = vld [vmem:[%s2 + $0xc] sm:$0xf]
      %v496 = vld [vmem:[%s3] sm:$0x1]
      %v498 = vperm.slane %v496, 0
      %v502 = vunpack.c.l.b16 %v490
      %v503 = vunpack.c.l.b16 %v491
      %v504 = vpack.c.b16 %v503, %v502
      %v509 = vunpack.c.l.b16 %v492
      %v510 = vunpack.c.l.b16 %v493
      %v511 = vunpack.c.l.b16 %v494
      %v512 = vunpack.c.l.b16 %v495
      %v513 = vpack.c.b16 %v510, %v509
      %v514 = vpack.c.b16 %v512, %v511
      %vm517 = vcmask 261120
      %v519 = vsel %vm517, %v504, 0
      %521 = vmatpush.bf16.msra.mxu0 0
      %522 = vmatpush.bf16.msra.mxu0 0
      %523 = vmatpush.bf16.msra.mxu0 0
      %524 = vmatpush.bf16.msra.mxu0 0
      %525 = vmatpush.bf16.msra.mxu0 0
      %526 = vmatpush.bf16.msra.mxu0 0
      %527 = vmatpush.bf16.msra.mxu0 %v514
      %528 = vmatpush.bf16.msra.mxu0 %v513
      %529 = vmatmul.bf16.gmra.mxu0 %v519
      %v530 = vpop.f32.mrf.mxu0
      %v531 = vadd.f32 %v498, %v530
      %v532 = vpop.f32.mrf.mxu0
      %v533 = vadd.f32 %v498, %v532
      %534 = vdwg.mxu0
      %v535 = vld [vmem:[%s477] sm:$0xf]
      %v536 = vld [vmem:[%s477 + $0x4] sm:$0xf]
      %v537 = vunpack.c.l.bf16 %v535
      %v538 = vunpack.c.l.bf16 %v536
      %v539 = vadd.f32 %v531, %v537
      %v540 = vadd.f32 %v533, %v538
      %v541 = vld [vmem:[%s4] sm:$0x1]
      %v542 = vld [vmem:[%s5] sm:$0x1]
      %v543 = vsel %vm517, %v539, 0.0
      %544 = vadd.xlane.f32.xlu0 %v543
      %v545 = vpop.xlane.xlu0 %544
      %v546 = vsel %vm517, %v540, 0.0
      %547 = vadd.xlane.f32.xlu0 %v546
      %v548 = vpop.xlane.xlu0 %547
      %v549 = vrcp.pop 32.0
      %v550 = vmul.f32 32.0, %v549
      %v551 = vsub.f32 1.0, %v550
      %v552 = vmul.f32 %v549, %v551
      %v553 = vadd.f32 %v549, %v552
      %vm554 = vweird.f32 %v549
      %v555 = vsel %vm554, %v549, %v553
      %v556 = vmul.f32 %v545, %v555
      %v557 = vmul.f32 %v548, %v555
      %v558 = vsub.f32 %v539, %v556
      %v559 = vsub.f32 %v540, %v557
      %v560 = vmul.f32 %v558, %v558
      %v561 = vmul.f32 %v559, %v559
      %v562 = vsel %vm517, %v560, 0.0
      %563 = vadd.xlane.f32.xlu0 %v562
      %v564 = vpop.xlane.xlu0 %563
      %v565 = vsel %vm517, %v561, 0.0
      %566 = vadd.xlane.f32.xlu0 %v565
      %v567 = vpop.xlane.xlu0 %566
      %v568 = vmul.f32 %v564, %v555
      %v569 = vmul.f32 %v567, %v555
      %v570 = vadd.f32 %v568, 1e-06
      %v571 = vadd.f32 %v569, 1e-06
      %v572 = vrsqrt.pop %v570
      %v573 = vmul.f32 %v572, %v570
      %v574 = vmul.f32 %v573, %v572
      %v575 = vmul.f32 0.5, %v574
      %v576 = vsub.f32 1.5, %v575
      %v577 = vmul.f32 %v572, %v576
      %vm578 = vweird.f32 %v570
      %vm579 = vweird.f32 %v572
      %vm580 = vmor %vm578, %vm579
      %v581 = vsel %vm580, %v572, %v577
      %v582 = vrsqrt.pop %v571
      %v583 = vmul.f32 %v582, %v571
      %v584 = vmul.f32 %v583, %v582
      %v585 = vmul.f32 0.5, %v584
      %v586 = vsub.f32 1.5, %v585
      %v587 = vmul.f32 %v582, %v586
      %vm588 = vweird.f32 %v571
      %vm589 = vweird.f32 %v582
      %vm590 = vmor %vm588, %vm589
      %v591 = vsel %vm590, %v582, %v587
      %v592 = vmul.f32 %v558, %v581
      %v593 = vmul.f32 %v559, %v591
      %v595 = vperm.slane %v541, 0
      %v597 = vmul.f32 %v592, %v595
      %v598 = vmul.f32 %v593, %v595
      %v600 = vperm.slane %v542, 0
      %v602 = vadd.f32 %v597, %v600
      %v603 = vadd.f32 %v598, %v600
      %v604 = vpack.c.bf16 %v603, %v602
      %v605 = vld [vmem:[%s6] sm:$0xf]
      %v606 = vld [vmem:[%s6 + $0x4] sm:$0xf]
      %v607 = vld [vmem:[%s6 + $0x8] sm:$0xf]
      %v608 = vld [vmem:[%s6 + $0xc] sm:$0xf]
      %v609 = vld [vmem:[%s7] sm:$0x1]
      %v611 = vperm.slane %v609, 0
      %v617 = vunpack.c.l.b16 %v605
      %v618 = vunpack.c.l.b16 %v606
      %v619 = vunpack.c.l.b16 %v607
      %v620 = vunpack.c.l.b16 %v608
      %v621 = vpack.c.b16 %v618, %v617
      %v622 = vpack.c.b16 %v620, %v619
      %v626 = vsel %vm517, %v604, 0
      %628 = vmatpush.bf16.msra.mxu0 0
      %629 = vmatpush.bf16.msra.mxu0 0
      %630 = vmatpush.bf16.msra.mxu0 0
      %631 = vmatpush.bf16.msra.mxu0 0
      %632 = vmatpush.bf16.msra.mxu0 0
      %633 = vmatpush.bf16.msra.mxu0 0
      %634 = vmatpush.bf16.msra.mxu0 %v622
      %635 = vmatpush.bf16.msra.mxu0 %v621
      %636 = vmatmul.bf16.gmra.mxu0 %v626
      %v637 = vpop.f32.mrf.mxu0
      %v638 = vadd.f32 %v611, %v637
      %v639 = vpop.f32.mrf.mxu0
      %v640 = vadd.f32 %v611, %v639
      %641 = vdwg.mxu0
      %v642 = vmul.f32 %v638, 0.5
      %v643 = vmul.f32 %v640, 0.5
      %v644 = vmul.f32 %v638, 0.044715
      %v645 = vmul.f32 %v640, 0.044715
      %v646 = vmul.f32 %v644, %v638
      %v647 = vmul.f32 %v645, %v640
      %v648 = vmul.f32 %v646, %v638
      %v649 = vmul.f32 %v647, %v640
      %v650 = vadd.f32 %v638, %v648
      %v651 = vadd.f32 %v640, %v649
      %v652 = vmul.f32 %v650, 0.7978846
      %v653 = vmul.f32 %v651, 0.7978846
      %v654 = vtanh.pop %v652
      %v655 = vtanh.pop %v653
      %v656 = vadd.f32 %v654, 1.0
      %v657 = vadd.f32 %v655, 1.0
      %v658 = vmul.f32 %v642, %v656
      %v659 = vmul.f32 %v643, %v657
      %v660 = vpack.c.bf16 %v659, %v658
      %v661 = vld [vmem:[%s8] sm:$0xf]
      %v662 = vld [vmem:[%s8 + $0x4] sm:$0xf]
      %v663 = vld [vmem:[%s8 + $0x8] sm:$0xf]
      %v664 = vld [vmem:[%s8 + $0xc] sm:$0xf]
      %v665 = vld [vmem:[%s8 + $0x10] sm:$0xf]
      %v666 = vld [vmem:[%s8 + $0x14] sm:$0xf]
      %v667 = vld [vmem:[%s8 + $0x18] sm:$0xf]
      %v668 = vld [vmem:[%s8 + $0x1c] sm:$0xf]
      %v669 = vld [vmem:[%s9] sm:$0x1]
      %v671 = vperm.slane %v669, 0
      %v681 = vunpack.c.l.b16 %v661
      %v682 = vunpack.c.l.b16 %v662
      %v683 = vunpack.c.l.b16 %v663
      %v684 = vunpack.c.l.b16 %v664
      %v685 = vunpack.c.l.b16 %v665
      %v686 = vunpack.c.l.b16 %v666
      %v687 = vunpack.c.l.b16 %v667
      %v688 = vunpack.c.l.b16 %v668
      %v689 = vpack.c.b16 %v682, %v681
      %v690 = vpack.c.b16 %v684, %v683
      %v691 = vpack.c.b16 %v686, %v685
      %v692 = vpack.c.b16 %v688, %v687
      %vm697 = vcmask 523264
      %v699 = vsel %vm697, %v660, 0
      %701 = vmatpush.bf16.msra.mxu0 0
      %702 = vmatpush.bf16.msra.mxu0 0
      %703 = vmatpush.bf16.msra.mxu0 0
      %704 = vmatpush.bf16.msra.mxu0 0
      %705 = vmatpush.bf16.msra.mxu0 %v692
      %706 = vmatpush.bf16.msra.mxu0 %v691
      %707 = vmatpush.bf16.msra.mxu0 %v690
      %708 = vmatpush.bf16.msra.mxu0 %v689
      %709 = vmatmul.bf16.gmra.mxu0 %v699
      %v710 = vpop.f32.mrf.mxu0
      %v711 = vadd.f32 %v671, %v710
      %v712 = vpop.f32.mrf.mxu0
      %v713 = vadd.f32 %v671, %v712
      %714 = vdwg.mxu0
      %v715 = vadd.f32 %v711, %v539
      %v716 = vadd.f32 %v713, %v540
      %v717 = vpack.c.bf16 %v715, %v715
      %v718 = vpack.c.bf16 %v716, %v716
      %vm719 = vcmask 257024
      %720 = vst.msk [vmem:[%s487] sm:$0xf] %vm719, %v717
      %721 = vst.msk [vmem:[%s487 + $0x4] sm:$0xf] %vm719, %v718
      %s722 = smul.u32 2, %s28
      %p723 = scmp.lt.s32.totalorder %s27, 1
      %s724 = scalar_select %p723, %s27, 1
      %p725 = scmp.lt.s32.totalorder %s722, 1
      %s726 = scalar_select %p725, %s722, 1
      %s727 = smul.addr %s724, 2
      %s728 = sadd.s32 %s726, %s727
      %s729 = smul.addr %s728, 4
      %s730 = scalar_lea.vmem %s12, %s729
      // Predicated region
      $region69: #{bert_ext_forward.23} parent=67 // pred_check
        %p731 = pneg %p321
      $region70: #{bert_ext_forward.23} parent=67 // pred_check_branch
        %733 = sbr.rel (%p731) target = $region72
      $region71: #{bert_ext_forward.23} parent=67 // pred_region
        %s734 = smul.u32 2, %s28
      $region72: #{bert_ext_forward.23} parent=67 // pred_fallthru
        _
    $region68: #{bert_ext_forward.23} parent=5 // pred_fallthru
      _
    %p735 = scmp.le.s32.totalorder 2, %s18
    // Predicated region
    $region73: #{bert_ext_forward.23} parent=5 // pred_check
      %p736 = pneg %p735
    $region74: #{bert_ext_forward.23} parent=5 // pred_check_branch
      %738 = sbr.rel (%p736) target = $region76
    $region75: #{bert_ext_forward.23} parent=5 // pred_region
      %s739 = ssub.s32 %s18, 2
      // Predicated region
      $region77: #{bert_ext_forward.23} parent=75 // pred_check
        %p740 = pneg %p327
      $region78: #{bert_ext_forward.23} parent=75 // pred_check_branch
        %742 = sbr.rel (%p740) target = $region80
      $region79: #{bert_ext_forward.23} parent=75 // pred_region
        %s743 = smul.u32 2, %s30
        %p744 = scmp.lt.s32.totalorder %s29, 1
        %s745 = scalar_select %p744, %s29, 1
        %p746 = scmp.lt.s32.totalorder %s743, 1
        %s747 = scalar_select %p746, %s743, 1
        %s748 = smul.addr %s745, 2
        %s749 = sadd.s32 %s747, %s748
        %s750 = smul.addr %s749, 4
        %s751 = scalar_lea.vmem %s12, %s750
      $region80: #{bert_ext_forward.23} parent=75 // pred_fallthru
        _
    $region76: #{bert_ext_forward.23} parent=5 // pred_fallthru
      _
  $region6: #{bert_ext_forward.23} parent=0 // loop_footer
    %s22 = sadd.s32 1, %s18
  $region7: #{bert_ext_forward.23} parent=0 // loop_footer_branch
    %17 = sbr.rel target = $region3
  $region8: #{bert_ext_forward.23} parent=0 // loop_exit
    _

</llo_original>
